<compile_context>
chip_gen: v7x
topology: tpu7x:2x2x1
jax: 0.10.0
libtpu: 0.0.40
codegen_flags: <defaults>
</compile_context>

<pallas_src>
import jax
import jax.numpy as jnp
from jax.experimental import pallas as pl
from jax.experimental.pallas import tpu as pltpu


LN_EPS = 0.1


def _swish(x):
    return x * jax.nn.sigmoid(x)


def _layernorm(x, gamma, beta, eps):
    mu = jnp.mean(x, axis=-1, keepdims=True)
    var = jnp.mean((x - mu) ** 2, axis=-1, keepdims=True)
    return (x - mu) * jax.lax.rsqrt(var + eps) * gamma + beta


def encoder_kernel(x_ref, *refs):
    # refs = (w1,b1,g1,be1, ..., w5,b5,g5,be5, w_head, b_head, out_ref)
    out_ref = refs[-1]
    p = refs[:-1]

    x = x_ref[...].astype(jnp.float32)

    # L2 row normalization via rsqrt (single EUP op; no eps, matching PyTorch).
    inv_norm = jax.lax.rsqrt(jnp.sum(x * x, axis=-1, keepdims=True))
    x = x * inv_norm
    # Dropout skipped: eval mode (identity).
    # TODO(synk): training-mode dropout via pltpu.prng_random_bits.

    def linear(h, w_ref, b_ref):
        # Cast activations to the (bf16) weight dtype so the MXU runs in its
        # native low-precision mode; accumulate in f32.
        return (
            jnp.dot(h.astype(w_ref.dtype), w_ref[...],
                    preferred_element_type=jnp.float32)
            + b_ref[...]
        )

    w1, b1, g1, be1 = p[0:4]
    w2, b2, g2, be2 = p[4:8]
    w3, b3, g3, be3 = p[8:12]
    w4, b4, g4, be4 = p[12:16]
    w5, b5, g5, be5 = p[16:20]
    w_head, b_head = p[20:22]

    # Running residual accumulator (res = h1 + ... + h_{i-1}) replaces the
    # repeated O(n^2) adds of the naive formulation; same add order as the
    # PyTorch expression (left-to-right), so numerics match.
    h1 = _layernorm(_swish(linear(x, w1, b1)), g1[...], be1[...], LN_EPS)
    res = h1
    h2 = _layernorm(_swish(linear(h1, w2, b2) + res), g2[...], be2[...], LN_EPS)
    res = res + h2
    h3 = _layernorm(_swish(linear(h2, w3, b3) + res), g3[...], be3[...], LN_EPS)
    res = res + h3
    h4 = _layernorm(_swish(linear(h3, w4, b4) + res), g4[...], be4[...], LN_EPS)
    res = res + h4
    h5 = _layernorm(_swish(linear(h4, w5, b5) + res), g5[...], be5[...], LN_EPS)

    # Fused mu|logvar head: one MXU pass over h5, one lane-dense [blk, 2L] store.
    out_ref[...] = linear(h5, w_head, b_head).astype(out_ref.dtype)


def _const_param_spec(shape):
    """Single-buffered BlockSpec for grid-invariant (constant) parameters."""
    try:
        return pl.BlockSpec(shape, lambda i: (0, 0),
                            pipeline_mode=pl.Buffered(1))
    except TypeError:  # fallback if this jax version lacks pipeline_mode
        return pl.BlockSpec(shape, lambda i: (0, 0))


def _default_vmem_limit_bytes():
    try:
        cap = pltpu.get_tpu_info().vmem_capacity_bytes
    except Exception:
        cap = 64 * 1024 * 1024  # conservative fallback (v7x per-TC physical)
    return int(cap * 3 // 4)


def _pick_block_b(B):
    # Largest batch tile that still leaves >= 2 grid steps (so the BlockSpec
    # pipeline overlaps DMA with compute and megacore can shard the batch),
    # keeping the sublane dim a multiple of 8.
    for cand in (512, 256, 128, 64, 32, 16, 8):
        if B % cand == 0 and B // cand >= 2:
            return cand
    return B


def encoder_forward(x, params, *, block_b=None, weight_dtype=jnp.bfloat16,
                    vmem_limit_bytes=None):
    """params: flat list [w1,b1,g1,beta1, ..., w5,b5,g5,beta5, wmu,bmu,wlv,blv]
    (weights [in,out], biases / LN params [1, D]).  Returns (mu, logvar)."""
    B, D_in = x.shape
    (w1, b1, g1, be1, w2, b2, g2, be2, w3, b3, g3, be3,
     w4, b4, g4, be4, w5, b5, g5, be5, wmu, bmu, wlv, blv) = params
    L = wmu.shape[1]

    if block_b is None:
        block_b = _pick_block_b(B)
    assert B % block_b == 0
    if vmem_limit_bytes is None:
        vmem_limit_bytes = _default_vmem_limit_bytes()

    # Weights go through the MXU in bf16 (f32 accumulation); small [1, D]
    # params stay f32.  mu/logvar heads are fused into one [H, 2L] matmul so
    # the output store is lane-dense.
    cast = lambda w: w.astype(weight_dtype)
    w_head = jnp.concatenate([wmu, wlv], axis=1).astype(weight_dtype)
    b_head = jnp.concatenate([bmu, blv], axis=1)
    kernel_params = [
        cast(w1), b1, g1, be1,
        cast(w2), b2, g2, be2,
        cast(w3), b3, g3, be3,
        cast(w4), b4, g4, be4,
        cast(w5), b5, g5, be5,
        w_head, b_head,
    ]
    # TODO(synk): for very large item vocabularies (w1 = D_in x H too big for
    #             VMEM, esp. v7x 64 MiB), stream w1 in K-chunks
    #             (memory_space=pl.ANY + pltpu.emit_pipeline) instead of a
    #             fully VMEM-resident BlockSpec.

    x_spec = pl.BlockSpec((block_b, D_in), lambda i: (i, 0))
    param_specs = [_const_param_spec(p.shape) for p in kernel_params]
    out_spec = pl.BlockSpec((block_b, 2 * L), lambda i: (i, 0))

    out = pl.pallas_call(
        encoder_kernel,
        out_shape=jax.ShapeDtypeStruct((B, 2 * L), jnp.float32),
        grid_spec=pltpu.PrefetchScalarGridSpec(
            num_scalar_prefetch=0,
            grid=(B // block_b,),
            in_specs=[x_spec] + param_specs,
            out_specs=out_spec,
        ),
        compiler_params=pltpu.CompilerParams(
            dimension_semantics=("parallel",),
            vmem_limit_bytes=vmem_limit_bytes,
        ),
    )(x, *kernel_params)

    return out[:, :L], out[:, L:]


def make_params(key, d_in, d_hidden, d_latent):
    """Deterministic parameter init (synthetic; shapes match the PyTorch module)."""
    params = []
    dims = [(d_in, d_hidden)] + [(d_hidden, d_hidden)] * 4
    for (fan_in, fan_out) in dims:
        key, kw, kb = jax.random.split(key, 3)
        bound = 1.0 / jnp.sqrt(fan_in)
        w = jax.random.uniform(kw, (fan_in, fan_out), jnp.float32, -bound, bound)
        b = jax.random.uniform(kb, (1, fan_out), jnp.float32, -bound, bound)
        gamma = jnp.ones((1, fan_out), jnp.float32)
        beta = jnp.zeros((1, fan_out), jnp.float32)
        params += [w, b, gamma, beta]
    for _ in range(2):  # fc_mu, fc_logvar
        key, kw, kb = jax.random.split(key, 3)
        bound = 1.0 / jnp.sqrt(d_hidden)
        w = jax.random.uniform(kw, (d_hidden, d_latent), jnp.float32, -bound, bound)
        b = jax.random.uniform(kb, (1, d_latent), jnp.float32, -bound, bound)
        params += [w, b]
    return params


def reference_forward(x, params, weight_dtype=jnp.bfloat16):
    """Plain-JAX reference replicating the PyTorch forward (eval mode) with the
    same bf16-weight / f32-accumulation numerics as the kernel."""
    (w1, b1, g1, be1, w2, b2, g2, be2, w3, b3, g3, be3,
     w4, b4, g4, be4, w5, b5, g5, be5, wmu, bmu, wlv, blv) = params

    inv = jax.lax.rsqrt(jnp.sum(x * x, axis=-1, keepdims=True))
    x = x * inv

    def lin(h, w, b):
        return jnp.dot(h.astype(weight_dtype), w.astype(weight_dtype),
                       preferred_element_type=jnp.float32) + b

    h1 = _layernorm(_swish(lin(x, w1, b1)), g1, be1, LN_EPS)
    h2 = _layernorm(_swish(lin(h1, w2, b2) + h1), g2, be2, LN_EPS)
    h3 = _layernorm(_swish(lin(h2, w3, b3) + h1 + h2), g3, be3, LN_EPS)
    h4 = _layernorm(_swish(lin(h3, w4, b4) + h1 + h2 + h3), g4, be4, LN_EPS)
    h5 = _layernorm(_swish(lin(h4, w5, b5) + h1 + h2 + h3 + h4), g5, be5, LN_EPS)
    return lin(h5, wmu, bmu), lin(h5, wlv, blv)


if __name__ == "__main__":
    # Small but TPU-shaped sizes: lane dims are multiples of 128 and the batch
    # tiles into a multi-step parallel grid.
    B, D_IN, D_HIDDEN, D_LATENT = 128, 256, 128, 64

    key = jax.random.PRNGKey(0)
    key, kx = jax.random.split(key)
    # Non-negative "interaction counts"-like input; rows are nonzero so the
    # L2 norm is well defined (note: like PyTorch, an all-zero row would NaN).
    x = jax.random.uniform(kx, (B, D_IN), jnp.float32, 0.1, 1.0)

    params = make_params(key, D_IN, D_HIDDEN, D_LATENT)

    mu, logvar = encoder_forward(x, params)
    mu = jax.block_until_ready(mu)
    logvar = jax.block_until_ready(logvar)

    mu_ref, lv_ref = reference_forward(x, params)
    assert jnp.allclose(mu, mu_ref, atol=5e-3, rtol=5e-3), "mu mismatch"
    assert jnp.allclose(logvar, lv_ref, atol=5e-3, rtol=5e-3), "logvar mismatch"

    print("KERNEL_OK")
</pallas_src>

<mosaic_0001>
module attributes {stable_mosaic.version = 11 : i64} {
  func.func @encoder_kernel(%arg0: i32, %arg1: memref<64x256xf32, #tpu.memory_space<vmem>>, %arg2: memref<256x128xbf16, #tpu.memory_space<vmem>>, %arg3: memref<1x128xf32, #tpu.memory_space<vmem>>, %arg4: memref<1x128xf32, #tpu.memory_space<vmem>>, %arg5: memref<1x128xf32, #tpu.memory_space<vmem>>, %arg6: memref<128x128xbf16, #tpu.memory_space<vmem>>, %arg7: memref<1x128xf32, #tpu.memory_space<vmem>>, %arg8: memref<1x128xf32, #tpu.memory_space<vmem>>, %arg9: memref<1x128xf32, #tpu.memory_space<vmem>>, %arg10: memref<128x128xbf16, #tpu.memory_space<vmem>>, %arg11: memref<1x128xf32, #tpu.memory_space<vmem>>, %arg12: memref<1x128xf32, #tpu.memory_space<vmem>>, %arg13: memref<1x128xf32, #tpu.memory_space<vmem>>, %arg14: memref<128x128xbf16, #tpu.memory_space<vmem>>, %arg15: memref<1x128xf32, #tpu.memory_space<vmem>>, %arg16: memref<1x128xf32, #tpu.memory_space<vmem>>, %arg17: memref<1x128xf32, #tpu.memory_space<vmem>>, %arg18: memref<128x128xbf16, #tpu.memory_space<vmem>>, %arg19: memref<1x128xf32, #tpu.memory_space<vmem>>, %arg20: memref<1x128xf32, #tpu.memory_space<vmem>>, %arg21: memref<1x128xf32, #tpu.memory_space<vmem>>, %arg22: memref<128x128xbf16, #tpu.memory_space<vmem>>, %arg23: memref<1x128xf32, #tpu.memory_space<vmem>>, %arg24: memref<64x128xf32, #tpu.memory_space<vmem>>) attributes {dimension_semantics = [#tpu.dimension_semantics<parallel>], iteration_bounds = array<i64: 2>, scalar_prefetch = 0 : i64, scratch_operands = 0 : i64, tpu.core_type = #tpu.core_type<tc>, window_params = [{transform_indices = @transform_0, window_bounds = array<i64: 64, 256>}, {pipeline_mode = #tpu.pipeline_mode<synchronous>, transform_indices = @transform_1, window_bounds = array<i64: 256, 128>}, {pipeline_mode = #tpu.pipeline_mode<synchronous>, transform_indices = @transform_2, window_bounds = array<i64: 1, 128>}, {pipeline_mode = #tpu.pipeline_mode<synchronous>, transform_indices = @transform_3, window_bounds = array<i64: 1, 128>}, {pipeline_mode = #tpu.pipeline_mode<synchronous>, transform_indices = @transform_4, window_bounds = array<i64: 1, 128>}, {pipeline_mode = #tpu.pipeline_mode<synchronous>, transform_indices = @transform_5, window_bounds = array<i64: 128, 128>}, {pipeline_mode = #tpu.pipeline_mode<synchronous>, transform_indices = @transform_6, window_bounds = array<i64: 1, 128>}, {pipeline_mode = #tpu.pipeline_mode<synchronous>, transform_indices = @transform_7, window_bounds = array<i64: 1, 128>}, {pipeline_mode = #tpu.pipeline_mode<synchronous>, transform_indices = @transform_8, window_bounds = array<i64: 1, 128>}, {pipeline_mode = #tpu.pipeline_mode<synchronous>, transform_indices = @transform_9, window_bounds = array<i64: 128, 128>}, {pipeline_mode = #tpu.pipeline_mode<synchronous>, transform_indices = @transform_10, window_bounds = array<i64: 1, 128>}, {pipeline_mode = #tpu.pipeline_mode<synchronous>, transform_indices = @transform_11, window_bounds = array<i64: 1, 128>}, {pipeline_mode = #tpu.pipeline_mode<synchronous>, transform_indices = @transform_12, window_bounds = array<i64: 1, 128>}, {pipeline_mode = #tpu.pipeline_mode<synchronous>, transform_indices = @transform_13, window_bounds = array<i64: 128, 128>}, {pipeline_mode = #tpu.pipeline_mode<synchronous>, transform_indices = @transform_14, window_bounds = array<i64: 1, 128>}, {pipeline_mode = #tpu.pipeline_mode<synchronous>, transform_indices = @transform_15, window_bounds = array<i64: 1, 128>}, {pipeline_mode = #tpu.pipeline_mode<synchronous>, transform_indices = @transform_16, window_bounds = array<i64: 1, 128>}, {pipeline_mode = #tpu.pipeline_mode<synchronous>, transform_indices = @transform_17, window_bounds = array<i64: 128, 128>}, {pipeline_mode = #tpu.pipeline_mode<synchronous>, transform_indices = @transform_18, window_bounds = array<i64: 1, 128>}, {pipeline_mode = #tpu.pipeline_mode<synchronous>, transform_indices = @transform_19, window_bounds = array<i64: 1, 128>}, {pipeline_mode = #tpu.pipeline_mode<synchronous>, transform_indices = @transform_20, window_bounds = array<i64: 1, 128>}, {pipeline_mode = #tpu.pipeline_mode<synchronous>, transform_indices = @transform_21, window_bounds = array<i64: 128, 128>}, {pipeline_mode = #tpu.pipeline_mode<synchronous>, transform_indices = @transform_22, window_bounds = array<i64: 1, 128>}, {transform_indices = @transform_23, window_bounds = array<i64: 64, 128>}]} {
    %c0 = arith.constant 0 : index
    %c0_0 = arith.constant 0 : index
    %0 = vector.load %arg1[%c0, %c0_0] : memref<64x256xf32, #tpu.memory_space<vmem>>, vector<64x256xf32>
    %1 = arith.mulf %0, %0 : vector<64x256xf32>
    %cst = arith.constant dense<0.000000e+00> : vector<64xf32>
    %2 = vector.multi_reduction <add>, %1, %cst [1] : vector<64x256xf32> to vector<64xf32>
    %3 = vector.shape_cast %2 : vector<64xf32> to vector<64x1xf32>
    %4 = math.rsqrt %3 : vector<64x1xf32>
    %5 = vector.broadcast %4 : vector<64x1xf32> to vector<64x256xf32>
    %6 = arith.mulf %0, %5 : vector<64x256xf32>
    %7 = arith.truncf %6 : vector<64x256xf32> to vector<64x256xbf16>
    %c0_1 = arith.constant 0 : index
    %c0_2 = arith.constant 0 : index
    %8 = vector.load %arg2[%c0_1, %c0_2] : memref<256x128xbf16, #tpu.memory_space<vmem>>, vector<256x128xbf16>
    %cst_3 = arith.constant dense<0.000000e+00> : vector<64x128xf32>
    %9 = tpu.matmul %7, %8, %cst_3 {dimension_numbers = #tpu.dot_dimension_numbers<[1], [0], [0], [1], [0, 0, 1, 1], [], []>} : vector<64x256xbf16>, vector<256x128xbf16>, vector<64x128xf32> -> vector<64x128xf32>
    %c0_4 = arith.constant 0 : index
    %c0_5 = arith.constant 0 : index
    %10 = vector.load %arg3[%c0_4, %c0_5] : memref<1x128xf32, #tpu.memory_space<vmem>>, vector<1x128xf32>
    %11 = vector.broadcast %10 : vector<1x128xf32> to vector<64x128xf32>
    %12 = arith.addf %9, %11 : vector<64x128xf32>
    %13 = arith.negf %12 : vector<64x128xf32>
    %14 = math.exp %13 : vector<64x128xf32>
    %cst_6 = arith.constant 1.000000e+00 : f32
    %15 = vector.broadcast %cst_6 : f32 to vector<64x128xf32>
    %16 = arith.addf %15, %14 : vector<64x128xf32>
    %17 = arith.divf %15, %16 : vector<64x128xf32>
    %18 = arith.mulf %12, %17 : vector<64x128xf32>
    %c0_7 = arith.constant 0 : index
    %c0_8 = arith.constant 0 : index
    %19 = vector.load %arg4[%c0_7, %c0_8] : memref<1x128xf32, #tpu.memory_space<vmem>>, vector<1x128xf32>
    %c0_9 = arith.constant 0 : index
    %c0_10 = arith.constant 0 : index
    %20 = vector.load %arg5[%c0_9, %c0_10] : memref<1x128xf32, #tpu.memory_space<vmem>>, vector<1x128xf32>
    %cst_11 = arith.constant dense<0.000000e+00> : vector<64xf32>
    %21 = vector.multi_reduction <add>, %18, %cst_11 [1] : vector<64x128xf32> to vector<64xf32>
    %22 = vector.shape_cast %21 : vector<64xf32> to vector<64x1xf32>
    %cst_12 = arith.constant 1.280000e+02 : f32
    %23 = vector.broadcast %cst_12 : f32 to vector<64x1xf32>
    %24 = arith.divf %22, %23 : vector<64x1xf32>
    %25 = vector.broadcast %24 : vector<64x1xf32> to vector<64x128xf32>
    %26 = arith.subf %18, %25 : vector<64x128xf32>
    %27 = arith.mulf %26, %26 : vector<64x128xf32>
    %cst_13 = arith.constant dense<0.000000e+00> : vector<64xf32>
    %28 = vector.multi_reduction <add>, %27, %cst_13 [1] : vector<64x128xf32> to vector<64xf32>
    %29 = vector.shape_cast %28 : vector<64xf32> to vector<64x1xf32>
    %cst_14 = arith.constant 1.280000e+02 : f32
    %30 = vector.broadcast %cst_14 : f32 to vector<64x1xf32>
    %31 = arith.divf %29, %30 : vector<64x1xf32>
    %32 = vector.broadcast %24 : vector<64x1xf32> to vector<64x128xf32>
    %33 = arith.subf %18, %32 : vector<64x128xf32>
    %cst_15 = arith.constant 1.000000e-01 : f32
    %34 = vector.broadcast %cst_15 : f32 to vector<64x1xf32>
    %35 = arith.addf %31, %34 : vector<64x1xf32>
    %36 = math.rsqrt %35 : vector<64x1xf32>
    %37 = vector.broadcast %36 : vector<64x1xf32> to vector<64x128xf32>
    %38 = arith.mulf %33, %37 : vector<64x128xf32>
    %39 = vector.broadcast %19 : vector<1x128xf32> to vector<64x128xf32>
    %40 = arith.mulf %38, %39 : vector<64x128xf32>
    %41 = vector.broadcast %20 : vector<1x128xf32> to vector<64x128xf32>
    %42 = arith.addf %40, %41 : vector<64x128xf32>
    %43 = arith.truncf %42 : vector<64x128xf32> to vector<64x128xbf16>
    %c0_16 = arith.constant 0 : index
    %c0_17 = arith.constant 0 : index
    %44 = vector.load %arg6[%c0_16, %c0_17] : memref<128x128xbf16, #tpu.memory_space<vmem>>, vector<128x128xbf16>
    %cst_18 = arith.constant dense<0.000000e+00> : vector<64x128xf32>
    %45 = tpu.matmul %43, %44, %cst_18 {dimension_numbers = #tpu.dot_dimension_numbers<[1], [0], [0], [1], [0, 0, 1, 1], [], []>} : vector<64x128xbf16>, vector<128x128xbf16>, vector<64x128xf32> -> vector<64x128xf32>
    %c0_19 = arith.constant 0 : index
    %c0_20 = arith.constant 0 : index
    %46 = vector.load %arg7[%c0_19, %c0_20] : memref<1x128xf32, #tpu.memory_space<vmem>>, vector<1x128xf32>
    %47 = vector.broadcast %46 : vector<1x128xf32> to vector<64x128xf32>
    %48 = arith.addf %45, %47 : vector<64x128xf32>
    %49 = arith.addf %48, %42 : vector<64x128xf32>
    %50 = arith.negf %49 : vector<64x128xf32>
    %51 = math.exp %50 : vector<64x128xf32>
    %cst_21 = arith.constant 1.000000e+00 : f32
    %52 = vector.broadcast %cst_21 : f32 to vector<64x128xf32>
    %53 = arith.addf %52, %51 : vector<64x128xf32>
    %54 = arith.divf %52, %53 : vector<64x128xf32>
    %55 = arith.mulf %49, %54 : vector<64x128xf32>
    %c0_22 = arith.constant 0 : index
    %c0_23 = arith.constant 0 : index
    %56 = vector.load %arg8[%c0_22, %c0_23] : memref<1x128xf32, #tpu.memory_space<vmem>>, vector<1x128xf32>
    %c0_24 = arith.constant 0 : index
    %c0_25 = arith.constant 0 : index
    %57 = vector.load %arg9[%c0_24, %c0_25] : memref<1x128xf32, #tpu.memory_space<vmem>>, vector<1x128xf32>
    %cst_26 = arith.constant dense<0.000000e+00> : vector<64xf32>
    %58 = vector.multi_reduction <add>, %55, %cst_26 [1] : vector<64x128xf32> to vector<64xf32>
    %59 = vector.shape_cast %58 : vector<64xf32> to vector<64x1xf32>
    %cst_27 = arith.constant 1.280000e+02 : f32
    %60 = vector.broadcast %cst_27 : f32 to vector<64x1xf32>
    %61 = arith.divf %59, %60 : vector<64x1xf32>
    %62 = vector.broadcast %61 : vector<64x1xf32> to vector<64x128xf32>
    %63 = arith.subf %55, %62 : vector<64x128xf32>
    %64 = arith.mulf %63, %63 : vector<64x128xf32>
    %cst_28 = arith.constant dense<0.000000e+00> : vector<64xf32>
    %65 = vector.multi_reduction <add>, %64, %cst_28 [1] : vector<64x128xf32> to vector<64xf32>
    %66 = vector.shape_cast %65 : vector<64xf32> to vector<64x1xf32>
    %cst_29 = arith.constant 1.280000e+02 : f32
    %67 = vector.broadcast %cst_29 : f32 to vector<64x1xf32>
    %68 = arith.divf %66, %67 : vector<64x1xf32>
    %69 = vector.broadcast %61 : vector<64x1xf32> to vector<64x128xf32>
    %70 = arith.subf %55, %69 : vector<64x128xf32>
    %cst_30 = arith.constant 1.000000e-01 : f32
    %71 = vector.broadcast %cst_30 : f32 to vector<64x1xf32>
    %72 = arith.addf %68, %71 : vector<64x1xf32>
    %73 = math.rsqrt %72 : vector<64x1xf32>
    %74 = vector.broadcast %73 : vector<64x1xf32> to vector<64x128xf32>
    %75 = arith.mulf %70, %74 : vector<64x128xf32>
    %76 = vector.broadcast %56 : vector<1x128xf32> to vector<64x128xf32>
    %77 = arith.mulf %75, %76 : vector<64x128xf32>
    %78 = vector.broadcast %57 : vector<1x128xf32> to vector<64x128xf32>
    %79 = arith.addf %77, %78 : vector<64x128xf32>
    %80 = arith.addf %42, %79 : vector<64x128xf32>
    %81 = arith.truncf %79 : vector<64x128xf32> to vector<64x128xbf16>
    %c0_31 = arith.constant 0 : index
    %c0_32 = arith.constant 0 : index
    %82 = vector.load %arg10[%c0_31, %c0_32] : memref<128x128xbf16, #tpu.memory_space<vmem>>, vector<128x128xbf16>
    %cst_33 = arith.constant dense<0.000000e+00> : vector<64x128xf32>
    %83 = tpu.matmul %81, %82, %cst_33 {dimension_numbers = #tpu.dot_dimension_numbers<[1], [0], [0], [1], [0, 0, 1, 1], [], []>} : vector<64x128xbf16>, vector<128x128xbf16>, vector<64x128xf32> -> vector<64x128xf32>
    %c0_34 = arith.constant 0 : index
    %c0_35 = arith.constant 0 : index
    %84 = vector.load %arg11[%c0_34, %c0_35] : memref<1x128xf32, #tpu.memory_space<vmem>>, vector<1x128xf32>
    %85 = vector.broadcast %84 : vector<1x128xf32> to vector<64x128xf32>
    %86 = arith.addf %83, %85 : vector<64x128xf32>
    %87 = arith.addf %86, %80 : vector<64x128xf32>
    %88 = arith.negf %87 : vector<64x128xf32>
    %89 = math.exp %88 : vector<64x128xf32>
    %cst_36 = arith.constant 1.000000e+00 : f32
    %90 = vector.broadcast %cst_36 : f32 to vector<64x128xf32>
    %91 = arith.addf %90, %89 : vector<64x128xf32>
    %92 = arith.divf %90, %91 : vector<64x128xf32>
    %93 = arith.mulf %87, %92 : vector<64x128xf32>
    %c0_37 = arith.constant 0 : index
    %c0_38 = arith.constant 0 : index
    %94 = vector.load %arg12[%c0_37, %c0_38] : memref<1x128xf32, #tpu.memory_space<vmem>>, vector<1x128xf32>
    %c0_39 = arith.constant 0 : index
    %c0_40 = arith.constant 0 : index
    %95 = vector.load %arg13[%c0_39, %c0_40] : memref<1x128xf32, #tpu.memory_space<vmem>>, vector<1x128xf32>
    %cst_41 = arith.constant dense<0.000000e+00> : vector<64xf32>
    %96 = vector.multi_reduction <add>, %93, %cst_41 [1] : vector<64x128xf32> to vector<64xf32>
    %97 = vector.shape_cast %96 : vector<64xf32> to vector<64x1xf32>
    %cst_42 = arith.constant 1.280000e+02 : f32
    %98 = vector.broadcast %cst_42 : f32 to vector<64x1xf32>
    %99 = arith.divf %97, %98 : vector<64x1xf32>
    %100 = vector.broadcast %99 : vector<64x1xf32> to vector<64x128xf32>
    %101 = arith.subf %93, %100 : vector<64x128xf32>
    %102 = arith.mulf %101, %101 : vector<64x128xf32>
    %cst_43 = arith.constant dense<0.000000e+00> : vector<64xf32>
    %103 = vector.multi_reduction <add>, %102, %cst_43 [1] : vector<64x128xf32> to vector<64xf32>
    %104 = vector.shape_cast %103 : vector<64xf32> to vector<64x1xf32>
    %cst_44 = arith.constant 1.280000e+02 : f32
    %105 = vector.broadcast %cst_44 : f32 to vector<64x1xf32>
    %106 = arith.divf %104, %105 : vector<64x1xf32>
    %107 = vector.broadcast %99 : vector<64x1xf32> to vector<64x128xf32>
    %108 = arith.subf %93, %107 : vector<64x128xf32>
    %cst_45 = arith.constant 1.000000e-01 : f32
    %109 = vector.broadcast %cst_45 : f32 to vector<64x1xf32>
    %110 = arith.addf %106, %109 : vector<64x1xf32>
    %111 = math.rsqrt %110 : vector<64x1xf32>
    %112 = vector.broadcast %111 : vector<64x1xf32> to vector<64x128xf32>
    %113 = arith.mulf %108, %112 : vector<64x128xf32>
    %114 = vector.broadcast %94 : vector<1x128xf32> to vector<64x128xf32>
    %115 = arith.mulf %113, %114 : vector<64x128xf32>
    %116 = vector.broadcast %95 : vector<1x128xf32> to vector<64x128xf32>
    %117 = arith.addf %115, %116 : vector<64x128xf32>
    %118 = arith.addf %80, %117 : vector<64x128xf32>
    %119 = arith.truncf %117 : vector<64x128xf32> to vector<64x128xbf16>
    %c0_46 = arith.constant 0 : index
    %c0_47 = arith.constant 0 : index
    %120 = vector.load %arg14[%c0_46, %c0_47] : memref<128x128xbf16, #tpu.memory_space<vmem>>, vector<128x128xbf16>
    %cst_48 = arith.constant dense<0.000000e+00> : vector<64x128xf32>
    %121 = tpu.matmul %119, %120, %cst_48 {dimension_numbers = #tpu.dot_dimension_numbers<[1], [0], [0], [1], [0, 0, 1, 1], [], []>} : vector<64x128xbf16>, vector<128x128xbf16>, vector<64x128xf32> -> vector<64x128xf32>
    %c0_49 = arith.constant 0 : index
    %c0_50 = arith.constant 0 : index
    %122 = vector.load %arg15[%c0_49, %c0_50] : memref<1x128xf32, #tpu.memory_space<vmem>>, vector<1x128xf32>
    %123 = vector.broadcast %122 : vector<1x128xf32> to vector<64x128xf32>
    %124 = arith.addf %121, %123 : vector<64x128xf32>
    %125 = arith.addf %124, %118 : vector<64x128xf32>
    %126 = arith.negf %125 : vector<64x128xf32>
    %127 = math.exp %126 : vector<64x128xf32>
    %cst_51 = arith.constant 1.000000e+00 : f32
    %128 = vector.broadcast %cst_51 : f32 to vector<64x128xf32>
    %129 = arith.addf %128, %127 : vector<64x128xf32>
    %130 = arith.divf %128, %129 : vector<64x128xf32>
    %131 = arith.mulf %125, %130 : vector<64x128xf32>
    %c0_52 = arith.constant 0 : index
    %c0_53 = arith.constant 0 : index
    %132 = vector.load %arg16[%c0_52, %c0_53] : memref<1x128xf32, #tpu.memory_space<vmem>>, vector<1x128xf32>
    %c0_54 = arith.constant 0 : index
    %c0_55 = arith.constant 0 : index
    %133 = vector.load %arg17[%c0_54, %c0_55] : memref<1x128xf32, #tpu.memory_space<vmem>>, vector<1x128xf32>
    %cst_56 = arith.constant dense<0.000000e+00> : vector<64xf32>
    %134 = vector.multi_reduction <add>, %131, %cst_56 [1] : vector<64x128xf32> to vector<64xf32>
    %135 = vector.shape_cast %134 : vector<64xf32> to vector<64x1xf32>
    %cst_57 = arith.constant 1.280000e+02 : f32
    %136 = vector.broadcast %cst_57 : f32 to vector<64x1xf32>
    %137 = arith.divf %135, %136 : vector<64x1xf32>
    %138 = vector.broadcast %137 : vector<64x1xf32> to vector<64x128xf32>
    %139 = arith.subf %131, %138 : vector<64x128xf32>
    %140 = arith.mulf %139, %139 : vector<64x128xf32>
    %cst_58 = arith.constant dense<0.000000e+00> : vector<64xf32>
    %141 = vector.multi_reduction <add>, %140, %cst_58 [1] : vector<64x128xf32> to vector<64xf32>
    %142 = vector.shape_cast %141 : vector<64xf32> to vector<64x1xf32>
    %cst_59 = arith.constant 1.280000e+02 : f32
    %143 = vector.broadcast %cst_59 : f32 to vector<64x1xf32>
    %144 = arith.divf %142, %143 : vector<64x1xf32>
    %145 = vector.broadcast %137 : vector<64x1xf32> to vector<64x128xf32>
    %146 = arith.subf %131, %145 : vector<64x128xf32>
    %cst_60 = arith.constant 1.000000e-01 : f32
    %147 = vector.broadcast %cst_60 : f32 to vector<64x1xf32>
    %148 = arith.addf %144, %147 : vector<64x1xf32>
    %149 = math.rsqrt %148 : vector<64x1xf32>
    %150 = vector.broadcast %149 : vector<64x1xf32> to vector<64x128xf32>
    %151 = arith.mulf %146, %150 : vector<64x128xf32>
    %152 = vector.broadcast %132 : vector<1x128xf32> to vector<64x128xf32>
    %153 = arith.mulf %151, %152 : vector<64x128xf32>
    %154 = vector.broadcast %133 : vector<1x128xf32> to vector<64x128xf32>
    %155 = arith.addf %153, %154 : vector<64x128xf32>
    %156 = arith.addf %118, %155 : vector<64x128xf32>
    %157 = arith.truncf %155 : vector<64x128xf32> to vector<64x128xbf16>
    %c0_61 = arith.constant 0 : index
    %c0_62 = arith.constant 0 : index
    %158 = vector.load %arg18[%c0_61, %c0_62] : memref<128x128xbf16, #tpu.memory_space<vmem>>, vector<128x128xbf16>
    %cst_63 = arith.constant dense<0.000000e+00> : vector<64x128xf32>
    %159 = tpu.matmul %157, %158, %cst_63 {dimension_numbers = #tpu.dot_dimension_numbers<[1], [0], [0], [1], [0, 0, 1, 1], [], []>} : vector<64x128xbf16>, vector<128x128xbf16>, vector<64x128xf32> -> vector<64x128xf32>
    %c0_64 = arith.constant 0 : index
    %c0_65 = arith.constant 0 : index
    %160 = vector.load %arg19[%c0_64, %c0_65] : memref<1x128xf32, #tpu.memory_space<vmem>>, vector<1x128xf32>
    %161 = vector.broadcast %160 : vector<1x128xf32> to vector<64x128xf32>
    %162 = arith.addf %159, %161 : vector<64x128xf32>
    %163 = arith.addf %162, %156 : vector<64x128xf32>
    %164 = arith.negf %163 : vector<64x128xf32>
    %165 = math.exp %164 : vector<64x128xf32>
    %cst_66 = arith.constant 1.000000e+00 : f32
    %166 = vector.broadcast %cst_66 : f32 to vector<64x128xf32>
    %167 = arith.addf %166, %165 : vector<64x128xf32>
    %168 = arith.divf %166, %167 : vector<64x128xf32>
    %169 = arith.mulf %163, %168 : vector<64x128xf32>
    %c0_67 = arith.constant 0 : index
    %c0_68 = arith.constant 0 : index
    %170 = vector.load %arg20[%c0_67, %c0_68] : memref<1x128xf32, #tpu.memory_space<vmem>>, vector<1x128xf32>
    %c0_69 = arith.constant 0 : index
    %c0_70 = arith.constant 0 : index
    %171 = vector.load %arg21[%c0_69, %c0_70] : memref<1x128xf32, #tpu.memory_space<vmem>>, vector<1x128xf32>
    %cst_71 = arith.constant dense<0.000000e+00> : vector<64xf32>
    %172 = vector.multi_reduction <add>, %169, %cst_71 [1] : vector<64x128xf32> to vector<64xf32>
    %173 = vector.shape_cast %172 : vector<64xf32> to vector<64x1xf32>
    %cst_72 = arith.constant 1.280000e+02 : f32
    %174 = vector.broadcast %cst_72 : f32 to vector<64x1xf32>
    %175 = arith.divf %173, %174 : vector<64x1xf32>
    %176 = vector.broadcast %175 : vector<64x1xf32> to vector<64x128xf32>
    %177 = arith.subf %169, %176 : vector<64x128xf32>
    %178 = arith.mulf %177, %177 : vector<64x128xf32>
    %cst_73 = arith.constant dense<0.000000e+00> : vector<64xf32>
    %179 = vector.multi_reduction <add>, %178, %cst_73 [1] : vector<64x128xf32> to vector<64xf32>
    %180 = vector.shape_cast %179 : vector<64xf32> to vector<64x1xf32>
    %cst_74 = arith.constant 1.280000e+02 : f32
    %181 = vector.broadcast %cst_74 : f32 to vector<64x1xf32>
    %182 = arith.divf %180, %181 : vector<64x1xf32>
    %183 = vector.broadcast %175 : vector<64x1xf32> to vector<64x128xf32>
    %184 = arith.subf %169, %183 : vector<64x128xf32>
    %cst_75 = arith.constant 1.000000e-01 : f32
    %185 = vector.broadcast %cst_75 : f32 to vector<64x1xf32>
    %186 = arith.addf %182, %185 : vector<64x1xf32>
    %187 = math.rsqrt %186 : vector<64x1xf32>
    %188 = vector.broadcast %187 : vector<64x1xf32> to vector<64x128xf32>
    %189 = arith.mulf %184, %188 : vector<64x128xf32>
    %190 = vector.broadcast %170 : vector<1x128xf32> to vector<64x128xf32>
    %191 = arith.mulf %189, %190 : vector<64x128xf32>
    %192 = vector.broadcast %171 : vector<1x128xf32> to vector<64x128xf32>
    %193 = arith.addf %191, %192 : vector<64x128xf32>
    %194 = arith.truncf %193 : vector<64x128xf32> to vector<64x128xbf16>
    %c0_76 = arith.constant 0 : index
    %c0_77 = arith.constant 0 : index
    %195 = vector.load %arg22[%c0_76, %c0_77] : memref<128x128xbf16, #tpu.memory_space<vmem>>, vector<128x128xbf16>
    %cst_78 = arith.constant dense<0.000000e+00> : vector<64x128xf32>
    %196 = tpu.matmul %194, %195, %cst_78 {dimension_numbers = #tpu.dot_dimension_numbers<[1], [0], [0], [1], [0, 0, 1, 1], [], []>} : vector<64x128xbf16>, vector<128x128xbf16>, vector<64x128xf32> -> vector<64x128xf32>
    %c0_79 = arith.constant 0 : index
    %c0_80 = arith.constant 0 : index
    %197 = vector.load %arg23[%c0_79, %c0_80] : memref<1x128xf32, #tpu.memory_space<vmem>>, vector<1x128xf32>
    %198 = vector.broadcast %197 : vector<1x128xf32> to vector<64x128xf32>
    %199 = arith.addf %196, %198 : vector<64x128xf32>
    %c0_81 = arith.constant 0 : index
    %c0_82 = arith.constant 0 : index
    %200 = vector.load %arg24[%c0_81, %c0_82] : memref<64x128xf32, #tpu.memory_space<vmem>>, vector<64x128xf32>
    tpu.vector_store %arg24[%c0_81, %c0_82], %199 {strides = array<i32>} : memref<64x128xf32, #tpu.memory_space<vmem>>, vector<64x128xf32>,
    return
  }
  func.func @transform_0(%arg0: i32) -> (i32, i32) {
    %c0_i32 = arith.constant 0 : i32
    %c0_i32_0 = arith.constant 0 : i32
    return %arg0, %c0_i32 : i32, i32
  }
  func.func @transform_1(%arg0: i32) -> (i32, i32) {
    %c0_i32 = arith.constant 0 : i32
    %c0_i32_0 = arith.constant 0 : i32
    %c0_i32_1 = arith.constant 0 : i32
    return %c0_i32, %c0_i32_0 : i32, i32
  }
  func.func @transform_2(%arg0: i32) -> (i32, i32) {
    %c0_i32 = arith.constant 0 : i32
    %c0_i32_0 = arith.constant 0 : i32
    %c0_i32_1 = arith.constant 0 : i32
    return %c0_i32, %c0_i32_0 : i32, i32
  }
  func.func @transform_3(%arg0: i32) -> (i32, i32) {
    %c0_i32 = arith.constant 0 : i32
    %c0_i32_0 = arith.constant 0 : i32
    %c0_i32_1 = arith.constant 0 : i32
    return %c0_i32, %c0_i32_0 : i32, i32
  }
  func.func @transform_4(%arg0: i32) -> (i32, i32) {
    %c0_i32 = arith.constant 0 : i32
    %c0_i32_0 = arith.constant 0 : i32
    %c0_i32_1 = arith.constant 0 : i32
    return %c0_i32, %c0_i32_0 : i32, i32
  }
  func.func @transform_5(%arg0: i32) -> (i32, i32) {
    %c0_i32 = arith.constant 0 : i32
    %c0_i32_0 = arith.constant 0 : i32
    %c0_i32_1 = arith.constant 0 : i32
    return %c0_i32, %c0_i32_0 : i32, i32
  }
  func.func @transform_6(%arg0: i32) -> (i32, i32) {
    %c0_i32 = arith.constant 0 : i32
    %c0_i32_0 = arith.constant 0 : i32
    %c0_i32_1 = arith.constant 0 : i32
    return %c0_i32, %c0_i32_0 : i32, i32
  }
  func.func @transform_7(%arg0: i32) -> (i32, i32) {
    %c0_i32 = arith.constant 0 : i32
    %c0_i32_0 = arith.constant 0 : i32
    %c0_i32_1 = arith.constant 0 : i32
    return %c0_i32, %c0_i32_0 : i32, i32
  }
  func.func @transform_8(%arg0: i32) -> (i32, i32) {
    %c0_i32 = arith.constant 0 : i32
    %c0_i32_0 = arith.constant 0 : i32
    %c0_i32_1 = arith.constant 0 : i32
    return %c0_i32, %c0_i32_0 : i32, i32
  }
  func.func @transform_9(%arg0: i32) -> (i32, i32) {
    %c0_i32 = arith.constant 0 : i32
    %c0_i32_0 = arith.constant 0 : i32
    %c0_i32_1 = arith.constant 0 : i32
    return %c0_i32, %c0_i32_0 : i32, i32
  }
  func.func @transform_10(%arg0: i32) -> (i32, i32) {
    %c0_i32 = arith.constant 0 : i32
    %c0_i32_0 = arith.constant 0 : i32
    %c0_i32_1 = arith.constant 0 : i32
    return %c0_i32, %c0_i32_0 : i32, i32
  }
  func.func @transform_11(%arg0: i32) -> (i32, i32) {
    %c0_i32 = arith.constant 0 : i32
    %c0_i32_0 = arith.constant 0 : i32
    %c0_i32_1 = arith.constant 0 : i32
    return %c0_i32, %c0_i32_0 : i32, i32
  }
  func.func @transform_12(%arg0: i32) -> (i32, i32) {
    %c0_i32 = arith.constant 0 : i32
    %c0_i32_0 = arith.constant 0 : i32
    %c0_i32_1 = arith.constant 0 : i32
    return %c0_i32, %c0_i32_0 : i32, i32
  }
  func.func @transform_13(%arg0: i32) -> (i32, i32) {
    %c0_i32 = arith.constant 0 : i32
    %c0_i32_0 = arith.constant 0 : i32
    %c0_i32_1 = arith.constant 0 : i32
    return %c0_i32, %c0_i32_0 : i32, i32
  }
  func.func @transform_14(%arg0: i32) -> (i32, i32) {
    %c0_i32 = arith.constant 0 : i32
    %c0_i32_0 = arith.constant 0 : i32
    %c0_i32_1 = arith.constant 0 : i32
    return %c0_i32, %c0_i32_0 : i32, i32
  }
  func.func @transform_15(%arg0: i32) -> (i32, i32) {
    %c0_i32 = arith.constant 0 : i32
    %c0_i32_0 = arith.constant 0 : i32
    %c0_i32_1 = arith.constant 0 : i32
    return %c0_i32, %c0_i32_0 : i32, i32
  }
  func.func @transform_16(%arg0: i32) -> (i32, i32) {
    %c0_i32 = arith.constant 0 : i32
    %c0_i32_0 = arith.constant 0 : i32
    %c0_i32_1 = arith.constant 0 : i32
    return %c0_i32, %c0_i32_0 : i32, i32
  }
  func.func @transform_17(%arg0: i32) -> (i32, i32) {
    %c0_i32 = arith.constant 0 : i32
    %c0_i32_0 = arith.constant 0 : i32
    %c0_i32_1 = arith.constant 0 : i32
    return %c0_i32, %c0_i32_0 : i32, i32
  }
  func.func @transform_18(%arg0: i32) -> (i32, i32) {
    %c0_i32 = arith.constant 0 : i32
    %c0_i32_0 = arith.constant 0 : i32
    %c0_i32_1 = arith.constant 0 : i32
    return %c0_i32, %c0_i32_0 : i32, i32
  }
  func.func @transform_19(%arg0: i32) -> (i32, i32) {
    %c0_i32 = arith.constant 0 : i32
    %c0_i32_0 = arith.constant 0 : i32
    %c0_i32_1 = arith.constant 0 : i32
    return %c0_i32, %c0_i32_0 : i32, i32
  }
  func.func @transform_20(%arg0: i32) -> (i32, i32) {
    %c0_i32 = arith.constant 0 : i32
    %c0_i32_0 = arith.constant 0 : i32
    %c0_i32_1 = arith.constant 0 : i32
    return %c0_i32, %c0_i32_0 : i32, i32
  }
  func.func @transform_21(%arg0: i32) -> (i32, i32) {
    %c0_i32 = arith.constant 0 : i32
    %c0_i32_0 = arith.constant 0 : i32
    %c0_i32_1 = arith.constant 0 : i32
    return %c0_i32, %c0_i32_0 : i32, i32
  }
  func.func @transform_22(%arg0: i32) -> (i32, i32) {
    %c0_i32 = arith.constant 0 : i32
    %c0_i32_0 = arith.constant 0 : i32
    %c0_i32_1 = arith.constant 0 : i32
    return %c0_i32, %c0_i32_0 : i32, i32
  }
  func.func @transform_23(%arg0: i32) -> (i32, i32) {
    %c0_i32 = arith.constant 0 : i32
    %c0_i32_0 = arith.constant 0 : i32
    return %arg0, %c0_i32 : i32, i32
  }
}

</mosaic_0001>

<llo_original>
// kernel: tpu_custom_call.1
$region0: #{tpu_custom_call.1}
  #allocation0 [shape = 'u32[]', space=smem, size = 0x4, offset = 0x4, fixed_abs, tag = 'smem constant byte address 0x4 - core index']
  #allocation1 [shape = 'u32[144,128]{1,0:T(1,128)}', space=vmem, size = 0x12000, scoped, tag = 'internal scratch']
  %s0 = inlined_call_operand.hbm [shape: f32[128,256], index: 0, kind: input, shape index: {}]
  %s1 = inlined_call_operand.hbm [shape: bf16[256,128], index: 1, kind: input, shape index: {}]
  %s2 = inlined_call_operand.hbm [shape: f32[1,128], index: 2, kind: input, shape index: {}]
  %s3 = inlined_call_operand.hbm [shape: f32[1,128], index: 3, kind: input, shape index: {}]
  %s4 = inlined_call_operand.hbm [shape: f32[1,128], index: 4, kind: input, shape index: {}]
  %s5 = inlined_call_operand.hbm [shape: bf16[128,128], index: 5, kind: input, shape index: {}]
  %s6 = inlined_call_operand.hbm [shape: f32[1,128], index: 6, kind: input, shape index: {}]
  %s7 = inlined_call_operand.hbm [shape: f32[1,128], index: 7, kind: input, shape index: {}]
  %s8 = inlined_call_operand.hbm [shape: f32[1,128], index: 8, kind: input, shape index: {}]
  %s9 = inlined_call_operand.hbm [shape: bf16[128,128], index: 9, kind: input, shape index: {}]
  %s10 = inlined_call_operand.hbm [shape: f32[1,128], index: 10, kind: input, shape index: {}]
  %s11 = inlined_call_operand.hbm [shape: f32[1,128], index: 11, kind: input, shape index: {}]
  %s12 = inlined_call_operand.hbm [shape: f32[1,128], index: 12, kind: input, shape index: {}]
  %s13 = inlined_call_operand.hbm [shape: bf16[128,128], index: 13, kind: input, shape index: {}]
  %s14 = inlined_call_operand.hbm [shape: f32[1,128], index: 14, kind: input, shape index: {}]
  %s15 = inlined_call_operand.hbm [shape: f32[1,128], index: 15, kind: input, shape index: {}]
  %s16 = inlined_call_operand.hbm [shape: f32[1,128], index: 16, kind: input, shape index: {}]
  %s17 = inlined_call_operand.vmem [shape: bf16[128,128], index: 17, kind: input, shape index: {}]
  %s18 = inlined_call_operand.vmem [shape: f32[1,128], index: 18, kind: input, shape index: {}]
  %s19 = inlined_call_operand.vmem [shape: f32[1,128], index: 19, kind: input, shape index: {}]
  %s20 = inlined_call_operand.vmem [shape: f32[1,128], index: 20, kind: input, shape index: {}]
  %s21 = inlined_call_operand.hbm [shape: bf16[128,128], index: 21, kind: input, shape index: {}]
  %s22 = inlined_call_operand.vmem [shape: f32[1,128], index: 22, kind: input, shape index: {}]
  %s23 = inlined_call_operand.hbm [shape: f32[128,128], index: 23, kind: output, shape index: {}]
  %s24 = sld [smem:[#allocation0]]
  $region197: #{tpu_custom_call.1} parent=0
    _
  %s26 = ssub.s32 1, %s24
  %s27 = scalar_select 0, %s26, %s24
  $region1: #{tpu_custom_call.1} parent=0
    #allocation2 [shape = 'u8[131072]{0}', space=vmem, size = 0x20000, scoped, tag = 'input window, operand 0']
    #allocation3 [shape = 's32[2]{0}', space=sflag, size = 0x8, scoped, tag = 'scoped memory for tpu_custom_call.1']
    #allocation4 [shape = 's32[2]{0}', space=sflag, size = 0x8, scoped, tag = 'scoped memory for tpu_custom_call.1']
    #allocation5 [shape = 'u8[65536]{0}', space=vmem, size = 0x10000, scoped, tag = 'input window, operand 1, single buffered']
    #allocation6 [shape = 's32[1]{0}', space=sflag, size = 0x4, scoped, tag = 'scoped memory for tpu_custom_call.1']
    #allocation7 [shape = 'u8[512]{0}', space=vmem, size = 0x400, scoped, tag = 'input window, operand 2, single buffered']
    #allocation8 [shape = 'u8[512]{0}', space=vmem, size = 0x400, scoped, tag = 'input window, operand 3, single buffered']
    #allocation9 [shape = 's32[1]{0}', space=sflag, size = 0x4, scoped, tag = 'scoped memory for tpu_custom_call.1']
    #allocation10 [shape = 'u8[512]{0}', space=vmem, size = 0x400, scoped, tag = 'input window, operand 4, single buffered']
    #allocation11 [shape = 'u8[32768]{0}', space=vmem, size = 0x8000, scoped, tag = 'input window, operand 5, single buffered']
    #allocation12 [shape = 's32[1]{0}', space=sflag, size = 0x4, scoped, tag = 'scoped memory for tpu_custom_call.1']
    #allocation13 [shape = 'u8[512]{0}', space=vmem, size = 0x400, scoped, tag = 'input window, operand 6, single buffered']
    #allocation14 [shape = 'u8[512]{0}', space=vmem, size = 0x400, scoped, tag = 'input window, operand 7, single buffered']
    #allocation15 [shape = 's32[1]{0}', space=sflag, size = 0x4, scoped, tag = 'scoped memory for tpu_custom_call.1']
    #allocation16 [shape = 'u8[512]{0}', space=vmem, size = 0x400, scoped, tag = 'input window, operand 8, single buffered']
    #allocation17 [shape = 'u8[32768]{0}', space=vmem, size = 0x8000, scoped, tag = 'input window, operand 9, single buffered']
    #allocation18 [shape = 's32[1]{0}', space=sflag, size = 0x4, scoped, tag = 'scoped memory for tpu_custom_call.1']
    #allocation19 [shape = 'u8[512]{0}', space=vmem, size = 0x400, scoped, tag = 'input window, operand 10, single buffered']
    #allocation20 [shape = 'u8[512]{0}', space=vmem, size = 0x400, scoped, tag = 'input window, operand 11, single buffered']
    #allocation21 [shape = 's32[1]{0}', space=sflag, size = 0x4, scoped, tag = 'scoped memory for tpu_custom_call.1']
    #allocation22 [shape = 'u8[512]{0}', space=vmem, size = 0x400, scoped, tag = 'input window, operand 12, single buffered']
    #allocation23 [shape = 'u8[32768]{0}', space=vmem, size = 0x8000, scoped, tag = 'input window, operand 13, single buffered']
    #allocation24 [shape = 's32[1]{0}', space=sflag, size = 0x4, scoped, tag = 'scoped memory for tpu_custom_call.1']
    #allocation25 [shape = 'u8[512]{0}', space=vmem, size = 0x400, scoped, tag = 'input window, operand 14, single buffered']
    #allocation26 [shape = 'u8[512]{0}', space=vmem, size = 0x400, scoped, tag = 'input window, operand 15, single buffered']
    #allocation27 [shape = 's32[1]{0}', space=sflag, size = 0x4, scoped, tag = 'scoped memory for tpu_custom_call.1']
    #allocation28 [shape = 'u8[512]{0}', space=vmem, size = 0x400, scoped, tag = 'input window, operand 16, single buffered']
    #allocation29 [shape = 'u8[32768]{0}', space=vmem, size = 0x8000, scoped, tag = 'input window, operand 21, single buffered']
    #allocation30 [shape = 's32[1]{0}', space=sflag, size = 0x4, scoped, tag = 'scoped memory for tpu_custom_call.1']
    #allocation31 [shape = 'u8[65536]{0}', space=vmem, size = 0x10000, scoped, tag = 'output window, operand 0']
    %28 = vsyncpa [#allocation3], 0
    %s29 = scalar_lea.sflag [#allocation3], 1
    %30 = vsyncpa %s29, 0
    %31 = vsyncpa [#allocation6], 0
    %32 = vsyncpa [#allocation9], 0
    %33 = vsyncpa [#allocation12], 0
    %34 = vsyncpa [#allocation15], 0
    %35 = vsyncpa [#allocation18], 0
    %36 = vsyncpa [#allocation21], 0
    %37 = vsyncpa [#allocation24], 0
    %38 = vsyncpa [#allocation27], 0
    %39 = vsyncpa [#allocation30], 0
    %40 = vsyncpa [#allocation4], 0
    %s41 = scalar_lea.sflag [#allocation4], 1
    %42 = vsyncpa %s41, 0
    loop: start=0, step=1, limit=4
    $region2: #{tpu_custom_call.1} parent=1 // loop_pre_header
      _
    $region3: #{tpu_custom_call.1} parent=1 // loop_header
      %s44 = sphi 0, %s48
      %p45 = scmp.ge.s32.totalorder %s44, 4
      %s54 = sphi 0, %s56
      %s57 = sphi 0, %s54
      %s58 = sphi 0, %s57
      %s74 = sphi 0, %s58
      %s78 = sphi 0, %s78
      %s80 = sphi 0, %s78
      %s81 = sphi 0, %s80
      %s95 = sphi 0, %s81
      %s99 = sphi 0, %s99
      %s101 = sphi 0, %s99
      %s102 = sphi 0, %s101
      %s116 = sphi 0, %s102
      %s120 = sphi 0, %s120
      %s122 = sphi 0, %s120
      %s123 = sphi 0, %s122
      %s137 = sphi 0, %s123
      %s141 = sphi 0, %s141
      %s143 = sphi 0, %s141
      %s144 = sphi 0, %s143
      %s158 = sphi 0, %s144
      %s162 = sphi 0, %s162
      %s164 = sphi 0, %s162
      %s165 = sphi 0, %s164
      %s179 = sphi 0, %s165
      %s183 = sphi 0, %s183
      %s185 = sphi 0, %s183
      %s186 = sphi 0, %s185
      %s200 = sphi 0, %s186
      %s204 = sphi 0, %s204
      %s206 = sphi 0, %s204
      %s207 = sphi 0, %s206
      %s221 = sphi 0, %s207
      %s225 = sphi 0, %s225
      %s227 = sphi 0, %s225
      %s228 = sphi 0, %s227
      %s242 = sphi 0, %s228
      %s246 = sphi 0, %s246
      %s248 = sphi 0, %s246
      %s249 = sphi 0, %s248
      %s263 = sphi 0, %s249
      %s267 = sphi 0, %s267
      %s269 = sphi 0, %s267
      %s270 = sphi 0, %s269
      %s284 = sphi 0, %s270
      %s288 = sphi 0, %s288
      %s290 = sphi 0, %s288
      %s291 = sphi 0, %s290
      %s305 = sphi 0, %s291
      %s309 = sphi 0, %s309
      %s311 = sphi 0, %s309
      %s312 = sphi 0, %s311
      %s326 = sphi 0, %s312
      %s330 = sphi 0, %s330
      %s332 = sphi 0, %s330
      %s333 = sphi 0, %s332
      %s347 = sphi 0, %s333
      %s351 = sphi 0, %s351
      %s353 = sphi 0, %s351
      %s354 = sphi 0, %s353
      %s368 = sphi 0, %s354
      %s372 = sphi 0, %s372
      %s374 = sphi 0, %s372
      %s375 = sphi 0, %s374
      %s389 = sphi 0, %s375
      %s393 = sphi 0, %s393
      %s395 = sphi 0, %s393
      %s396 = sphi 0, %s395
      %s410 = sphi 0, %s396
      %s414 = sphi 0, %s414
      %s416 = sphi 0, %s414
      %s417 = sphi 0, %s416
      %s431 = sphi 0, %s417
      %s435 = sphi 0, %s435
      %s437 = sphi 0, %s435
      %s438 = sphi 0, %s437
      %s452 = sphi 0, %s438
      %s456 = sphi 0, %s456
      %s458 = sphi 0, %s456
      %s459 = sphi 0, %s458
      %s473 = sphi 0, %s459
      %s477 = sphi 0, %s477
      %s479 = sphi 0, %s477
      %s480 = sphi 0, %s479
      %s494 = sphi 0, %s480
      %s498 = sphi 0, %s498
      %s500 = sphi 0, %s498
      %s501 = sphi 0, %s500
      %s515 = sphi 0, %s501
      %s519 = sphi 0, %s519
      %s521 = sphi 0, %s519
      %s522 = sphi 0, %s521
      %s536 = sphi 0, %s522
      %s542 = sphi 0, %s544
      %s545 = sphi 0, %s542
      %s546 = sphi 0, %s545
      %s562 = sphi 0, %s546
    $region4: #{tpu_custom_call.1} parent=1 // loop_header_branch
      %47 = sbr.rel (%p45) target = $region8
    $region5: #{tpu_custom_call.1} parent=1 // loop_body
      %s49 = ssub.s32 %s44, 1
      %s50 = ssub.s32 %s44, 2
      %s51 = sadd.s32 %s44, 1
      %s52 = ssub.s32 %s44, %s51
      %p53 = scmp.eq.s32.totalorder %s52, 0
      %s55 = sadd.s32 %s54, 1
      %s56 = scalar_select %p53, %s54, %s55
      %p59 = pneg %p53
      %p60 = scmp.eq.s32.totalorder %s44, 1
      %p61 = por %p59, %p60
      %p62 = scmp.ne.s32.totalorder %s54, %s57
      %p63 = scmp.eq.s32.totalorder %s44, 0
      %p64 = por %p62, %p63
      %p65 = scmp.ne.s32.totalorder %s54, %s57
      %p66 = scmp.eq.s32.totalorder %s49, 1
      %p67 = por %p65, %p66
      %p68 = scmp.ne.s32.totalorder %s57, %s58
      %p69 = scmp.eq.s32.totalorder %s49, 0
      %p70 = por %p68, %p69
      %p71 = scmp.ne.s32.totalorder %s57, %s58
      %p72 = scmp.eq.s32.totalorder %s50, 1
      %p73 = por %p71, %p72
      %p75 = scmp.ne.s32.totalorder %s58, %s74
      %p76 = scmp.eq.s32.totalorder %s50, 0
      %p77 = por %p75, %p76
      %s79 = sadd.s32 %s78, 1
      %p82 = scmp.eq.s32.totalorder %s44, 1
      %p83 = scmp.ne.s32.totalorder %s78, %s80
      %p84 = scmp.eq.s32.totalorder %s44, 0
      %p85 = por %p83, %p84
      %p86 = scmp.ne.s32.totalorder %s78, %s80
      %p87 = scmp.eq.s32.totalorder %s49, 1
      %p88 = por %p86, %p87
      %p89 = scmp.ne.s32.totalorder %s80, %s81
      %p90 = scmp.eq.s32.totalorder %s49, 0
      %p91 = por %p89, %p90
      %p92 = scmp.ne.s32.totalorder %s80, %s81
      %p93 = scmp.eq.s32.totalorder %s50, 1
      %p94 = por %p92, %p93
      %p96 = scmp.ne.s32.totalorder %s81, %s95
      %p97 = scmp.eq.s32.totalorder %s50, 0
      %p98 = por %p96, %p97
      %s100 = sadd.s32 %s99, 1
      %p103 = scmp.eq.s32.totalorder %s44, 1
      %p104 = scmp.ne.s32.totalorder %s99, %s101
      %p105 = scmp.eq.s32.totalorder %s44, 0
      %p106 = por %p104, %p105
      %p107 = scmp.ne.s32.totalorder %s99, %s101
      %p108 = scmp.eq.s32.totalorder %s49, 1
      %p109 = por %p107, %p108
      %p110 = scmp.ne.s32.totalorder %s101, %s102
      %p111 = scmp.eq.s32.totalorder %s49, 0
      %p112 = por %p110, %p111
      %p113 = scmp.ne.s32.totalorder %s101, %s102
      %p114 = scmp.eq.s32.totalorder %s50, 1
      %p115 = por %p113, %p114
      %p117 = scmp.ne.s32.totalorder %s102, %s116
      %p118 = scmp.eq.s32.totalorder %s50, 0
      %p119 = por %p117, %p118
      %s121 = sadd.s32 %s120, 1
      %p124 = scmp.eq.s32.totalorder %s44, 1
      %p125 = scmp.ne.s32.totalorder %s120, %s122
      %p126 = scmp.eq.s32.totalorder %s44, 0
      %p127 = por %p125, %p126
      %p128 = scmp.ne.s32.totalorder %s120, %s122
      %p129 = scmp.eq.s32.totalorder %s49, 1
      %p130 = por %p128, %p129
      %p131 = scmp.ne.s32.totalorder %s122, %s123
      %p132 = scmp.eq.s32.totalorder %s49, 0
      %p133 = por %p131, %p132
      %p134 = scmp.ne.s32.totalorder %s122, %s123
      %p135 = scmp.eq.s32.totalorder %s50, 1
      %p136 = por %p134, %p135
      %p138 = scmp.ne.s32.totalorder %s123, %s137
      %p139 = scmp.eq.s32.totalorder %s50, 0
      %p140 = por %p138, %p139
      %s142 = sadd.s32 %s141, 1
      %p145 = scmp.eq.s32.totalorder %s44, 1
      %p146 = scmp.ne.s32.totalorder %s141, %s143
      %p147 = scmp.eq.s32.totalorder %s44, 0
      %p148 = por %p146, %p147
      %p149 = scmp.ne.s32.totalorder %s141, %s143
      %p150 = scmp.eq.s32.totalorder %s49, 1
      %p151 = por %p149, %p150
      %p152 = scmp.ne.s32.totalorder %s143, %s144
      %p153 = scmp.eq.s32.totalorder %s49, 0
      %p154 = por %p152, %p153
      %p155 = scmp.ne.s32.totalorder %s143, %s144
      %p156 = scmp.eq.s32.totalorder %s50, 1
      %p157 = por %p155, %p156
      %p159 = scmp.ne.s32.totalorder %s144, %s158
      %p160 = scmp.eq.s32.totalorder %s50, 0
      %p161 = por %p159, %p160
      %s163 = sadd.s32 %s162, 1
      %p166 = scmp.eq.s32.totalorder %s44, 1
      %p167 = scmp.ne.s32.totalorder %s162, %s164
      %p168 = scmp.eq.s32.totalorder %s44, 0
      %p169 = por %p167, %p168
      %p170 = scmp.ne.s32.totalorder %s162, %s164
      %p171 = scmp.eq.s32.totalorder %s49, 1
      %p172 = por %p170, %p171
      %p173 = scmp.ne.s32.totalorder %s164, %s165
      %p174 = scmp.eq.s32.totalorder %s49, 0
      %p175 = por %p173, %p174
      %p176 = scmp.ne.s32.totalorder %s164, %s165
      %p177 = scmp.eq.s32.totalorder %s50, 1
      %p178 = por %p176, %p177
      %p180 = scmp.ne.s32.totalorder %s165, %s179
      %p181 = scmp.eq.s32.totalorder %s50, 0
      %p182 = por %p180, %p181
      %s184 = sadd.s32 %s183, 1
      %p187 = scmp.eq.s32.totalorder %s44, 1
      %p188 = scmp.ne.s32.totalorder %s183, %s185
      %p189 = scmp.eq.s32.totalorder %s44, 0
      %p190 = por %p188, %p189
      %p191 = scmp.ne.s32.totalorder %s183, %s185
      %p192 = scmp.eq.s32.totalorder %s49, 1
      %p193 = por %p191, %p192
      %p194 = scmp.ne.s32.totalorder %s185, %s186
      %p195 = scmp.eq.s32.totalorder %s49, 0
      %p196 = por %p194, %p195
      %p197 = scmp.ne.s32.totalorder %s185, %s186
      %p198 = scmp.eq.s32.totalorder %s50, 1
      %p199 = por %p197, %p198
      %p201 = scmp.ne.s32.totalorder %s186, %s200
      %p202 = scmp.eq.s32.totalorder %s50, 0
      %p203 = por %p201, %p202
      %s205 = sadd.s32 %s204, 1
      %p208 = scmp.eq.s32.totalorder %s44, 1
      %p209 = scmp.ne.s32.totalorder %s204, %s206
      %p210 = scmp.eq.s32.totalorder %s44, 0
      %p211 = por %p209, %p210
      %p212 = scmp.ne.s32.totalorder %s204, %s206
      %p213 = scmp.eq.s32.totalorder %s49, 1
      %p214 = por %p212, %p213
      %p215 = scmp.ne.s32.totalorder %s206, %s207
      %p216 = scmp.eq.s32.totalorder %s49, 0
      %p217 = por %p215, %p216
      %p218 = scmp.ne.s32.totalorder %s206, %s207
      %p219 = scmp.eq.s32.totalorder %s50, 1
      %p220 = por %p218, %p219
      %p222 = scmp.ne.s32.totalorder %s207, %s221
      %p223 = scmp.eq.s32.totalorder %s50, 0
      %p224 = por %p222, %p223
      %s226 = sadd.s32 %s225, 1
      %p229 = scmp.eq.s32.totalorder %s44, 1
      %p230 = scmp.ne.s32.totalorder %s225, %s227
      %p231 = scmp.eq.s32.totalorder %s44, 0
      %p232 = por %p230, %p231
      %p233 = scmp.ne.s32.totalorder %s225, %s227
      %p234 = scmp.eq.s32.totalorder %s49, 1
      %p235 = por %p233, %p234
      %p236 = scmp.ne.s32.totalorder %s227, %s228
      %p237 = scmp.eq.s32.totalorder %s49, 0
      %p238 = por %p236, %p237
      %p239 = scmp.ne.s32.totalorder %s227, %s228
      %p240 = scmp.eq.s32.totalorder %s50, 1
      %p241 = por %p239, %p240
      %p243 = scmp.ne.s32.totalorder %s228, %s242
      %p244 = scmp.eq.s32.totalorder %s50, 0
      %p245 = por %p243, %p244
      %s247 = sadd.s32 %s246, 1
      %p250 = scmp.eq.s32.totalorder %s44, 1
      %p251 = scmp.ne.s32.totalorder %s246, %s248
      %p252 = scmp.eq.s32.totalorder %s44, 0
      %p253 = por %p251, %p252
      %p254 = scmp.ne.s32.totalorder %s246, %s248
      %p255 = scmp.eq.s32.totalorder %s49, 1
      %p256 = por %p254, %p255
      %p257 = scmp.ne.s32.totalorder %s248, %s249
      %p258 = scmp.eq.s32.totalorder %s49, 0
      %p259 = por %p257, %p258
      %p260 = scmp.ne.s32.totalorder %s248, %s249
      %p261 = scmp.eq.s32.totalorder %s50, 1
      %p262 = por %p260, %p261
      %p264 = scmp.ne.s32.totalorder %s249, %s263
      %p265 = scmp.eq.s32.totalorder %s50, 0
      %p266 = por %p264, %p265
      %s268 = sadd.s32 %s267, 1
      %p271 = scmp.eq.s32.totalorder %s44, 1
      %p272 = scmp.ne.s32.totalorder %s267, %s269
      %p273 = scmp.eq.s32.totalorder %s44, 0
      %p274 = por %p272, %p273
      %p275 = scmp.ne.s32.totalorder %s267, %s269
      %p276 = scmp.eq.s32.totalorder %s49, 1
      %p277 = por %p275, %p276
      %p278 = scmp.ne.s32.totalorder %s269, %s270
      %p279 = scmp.eq.s32.totalorder %s49, 0
      %p280 = por %p278, %p279
      %p281 = scmp.ne.s32.totalorder %s269, %s270
      %p282 = scmp.eq.s32.totalorder %s50, 1
      %p283 = por %p281, %p282
      %p285 = scmp.ne.s32.totalorder %s270, %s284
      %p286 = scmp.eq.s32.totalorder %s50, 0
      %p287 = por %p285, %p286
      %s289 = sadd.s32 %s288, 1
      %p292 = scmp.eq.s32.totalorder %s44, 1
      %p293 = scmp.ne.s32.totalorder %s288, %s290
      %p294 = scmp.eq.s32.totalorder %s44, 0
      %p295 = por %p293, %p294
      %p296 = scmp.ne.s32.totalorder %s288, %s290
      %p297 = scmp.eq.s32.totalorder %s49, 1
      %p298 = por %p296, %p297
      %p299 = scmp.ne.s32.totalorder %s290, %s291
      %p300 = scmp.eq.s32.totalorder %s49, 0
      %p301 = por %p299, %p300
      %p302 = scmp.ne.s32.totalorder %s290, %s291
      %p303 = scmp.eq.s32.totalorder %s50, 1
      %p304 = por %p302, %p303
      %p306 = scmp.ne.s32.totalorder %s291, %s305
      %p307 = scmp.eq.s32.totalorder %s50, 0
      %p308 = por %p306, %p307
      %s310 = sadd.s32 %s309, 1
      %p313 = scmp.eq.s32.totalorder %s44, 1
      %p314 = scmp.ne.s32.totalorder %s309, %s311
      %p315 = scmp.eq.s32.totalorder %s44, 0
      %p316 = por %p314, %p315
      %p317 = scmp.ne.s32.totalorder %s309, %s311
      %p318 = scmp.eq.s32.totalorder %s49, 1
      %p319 = por %p317, %p318
      %p320 = scmp.ne.s32.totalorder %s311, %s312
      %p321 = scmp.eq.s32.totalorder %s49, 0
      %p322 = por %p320, %p321
      %p323 = scmp.ne.s32.totalorder %s311, %s312
      %p324 = scmp.eq.s32.totalorder %s50, 1
      %p325 = por %p323, %p324
      %p327 = scmp.ne.s32.totalorder %s312, %s326
      %p328 = scmp.eq.s32.totalorder %s50, 0
      %p329 = por %p327, %p328
      %s331 = sadd.s32 %s330, 1
      %p334 = scmp.eq.s32.totalorder %s44, 1
      %p335 = scmp.ne.s32.totalorder %s330, %s332
      %p336 = scmp.eq.s32.totalorder %s44, 0
      %p337 = por %p335, %p336
      %p338 = scmp.ne.s32.totalorder %s330, %s332
      %p339 = scmp.eq.s32.totalorder %s49, 1
      %p340 = por %p338, %p339
      %p341 = scmp.ne.s32.totalorder %s332, %s333
      %p342 = scmp.eq.s32.totalorder %s49, 0
      %p343 = por %p341, %p342
      %p344 = scmp.ne.s32.totalorder %s332, %s333
      %p345 = scmp.eq.s32.totalorder %s50, 1
      %p346 = por %p344, %p345
      %p348 = scmp.ne.s32.totalorder %s333, %s347
      %p349 = scmp.eq.s32.totalorder %s50, 0
      %p350 = por %p348, %p349
      %s352 = sadd.s32 %s351, 1
      %p355 = scmp.eq.s32.totalorder %s44, 1
      %p356 = scmp.ne.s32.totalorder %s351, %s353
      %p357 = scmp.eq.s32.totalorder %s44, 0
      %p358 = por %p356, %p357
      %p359 = scmp.ne.s32.totalorder %s351, %s353
      %p360 = scmp.eq.s32.totalorder %s49, 1
      %p361 = por %p359, %p360
      %p362 = scmp.ne.s32.totalorder %s353, %s354
      %p363 = scmp.eq.s32.totalorder %s49, 0
      %p364 = por %p362, %p363
      %p365 = scmp.ne.s32.totalorder %s353, %s354
      %p366 = scmp.eq.s32.totalorder %s50, 1
      %p367 = por %p365, %p366
      %p369 = scmp.ne.s32.totalorder %s354, %s368
      %p370 = scmp.eq.s32.totalorder %s50, 0
      %p371 = por %p369, %p370
      %s373 = sadd.s32 %s372, 1
      %p376 = scmp.eq.s32.totalorder %s44, 1
      %p377 = scmp.ne.s32.totalorder %s372, %s374
      %p378 = scmp.eq.s32.totalorder %s44, 0
      %p379 = por %p377, %p378
      %p380 = scmp.ne.s32.totalorder %s372, %s374
      %p381 = scmp.eq.s32.totalorder %s49, 1
      %p382 = por %p380, %p381
      %p383 = scmp.ne.s32.totalorder %s374, %s375
      %p384 = scmp.eq.s32.totalorder %s49, 0
      %p385 = por %p383, %p384
      %p386 = scmp.ne.s32.totalorder %s374, %s375
      %p387 = scmp.eq.s32.totalorder %s50, 1
      %p388 = por %p386, %p387
      %p390 = scmp.ne.s32.totalorder %s375, %s389
      %p391 = scmp.eq.s32.totalorder %s50, 0
      %p392 = por %p390, %p391
      %s394 = sadd.s32 %s393, 1
      %p397 = scmp.eq.s32.totalorder %s44, 1
      %p398 = scmp.ne.s32.totalorder %s393, %s395
      %p399 = scmp.eq.s32.totalorder %s44, 0
      %p400 = por %p398, %p399
      %p401 = scmp.ne.s32.totalorder %s393, %s395
      %p402 = scmp.eq.s32.totalorder %s49, 1
      %p403 = por %p401, %p402
      %p404 = scmp.ne.s32.totalorder %s395, %s396
      %p405 = scmp.eq.s32.totalorder %s49, 0
      %p406 = por %p404, %p405
      %p407 = scmp.ne.s32.totalorder %s395, %s396
      %p408 = scmp.eq.s32.totalorder %s50, 1
      %p409 = por %p407, %p408
      %p411 = scmp.ne.s32.totalorder %s396, %s410
      %p412 = scmp.eq.s32.totalorder %s50, 0
      %p413 = por %p411, %p412
      %s415 = sadd.s32 %s414, 1
      %p418 = scmp.eq.s32.totalorder %s44, 1
      %p419 = scmp.ne.s32.totalorder %s414, %s416
      %p420 = scmp.eq.s32.totalorder %s44, 0
      %p421 = por %p419, %p420
      %p422 = scmp.ne.s32.totalorder %s414, %s416
      %p423 = scmp.eq.s32.totalorder %s49, 1
      %p424 = por %p422, %p423
      %p425 = scmp.ne.s32.totalorder %s416, %s417
      %p426 = scmp.eq.s32.totalorder %s49, 0
      %p427 = por %p425, %p426
      %p428 = scmp.ne.s32.totalorder %s416, %s417
      %p429 = scmp.eq.s32.totalorder %s50, 1
      %p430 = por %p428, %p429
      %p432 = scmp.ne.s32.totalorder %s417, %s431
      %p433 = scmp.eq.s32.totalorder %s50, 0
      %p434 = por %p432, %p433
      %s436 = sadd.s32 %s435, 1
      %p439 = scmp.eq.s32.totalorder %s44, 1
      %p440 = scmp.ne.s32.totalorder %s435, %s437
      %p441 = scmp.eq.s32.totalorder %s44, 0
      %p442 = por %p440, %p441
      %p443 = scmp.ne.s32.totalorder %s435, %s437
      %p444 = scmp.eq.s32.totalorder %s49, 1
      %p445 = por %p443, %p444
      %p446 = scmp.ne.s32.totalorder %s437, %s438
      %p447 = scmp.eq.s32.totalorder %s49, 0
      %p448 = por %p446, %p447
      %p449 = scmp.ne.s32.totalorder %s437, %s438
      %p450 = scmp.eq.s32.totalorder %s50, 1
      %p451 = por %p449, %p450
      %p453 = scmp.ne.s32.totalorder %s438, %s452
      %p454 = scmp.eq.s32.totalorder %s50, 0
      %p455 = por %p453, %p454
      %s457 = sadd.s32 %s456, 1
      %p460 = scmp.eq.s32.totalorder %s44, 1
      %p461 = scmp.ne.s32.totalorder %s456, %s458
      %p462 = scmp.eq.s32.totalorder %s44, 0
      %p463 = por %p461, %p462
      %p464 = scmp.ne.s32.totalorder %s456, %s458
      %p465 = scmp.eq.s32.totalorder %s49, 1
      %p466 = por %p464, %p465
      %p467 = scmp.ne.s32.totalorder %s458, %s459
      %p468 = scmp.eq.s32.totalorder %s49, 0
      %p469 = por %p467, %p468
      %p470 = scmp.ne.s32.totalorder %s458, %s459
      %p471 = scmp.eq.s32.totalorder %s50, 1
      %p472 = por %p470, %p471
      %p474 = scmp.ne.s32.totalorder %s459, %s473
      %p475 = scmp.eq.s32.totalorder %s50, 0
      %p476 = por %p474, %p475
      %s478 = sadd.s32 %s477, 1
      %p481 = scmp.eq.s32.totalorder %s44, 1
      %p482 = scmp.ne.s32.totalorder %s477, %s479
      %p483 = scmp.eq.s32.totalorder %s44, 0
      %p484 = por %p482, %p483
      %p485 = scmp.ne.s32.totalorder %s477, %s479
      %p486 = scmp.eq.s32.totalorder %s49, 1
      %p487 = por %p485, %p486
      %p488 = scmp.ne.s32.totalorder %s479, %s480
      %p489 = scmp.eq.s32.totalorder %s49, 0
      %p490 = por %p488, %p489
      %p491 = scmp.ne.s32.totalorder %s479, %s480
      %p492 = scmp.eq.s32.totalorder %s50, 1
      %p493 = por %p491, %p492
      %p495 = scmp.ne.s32.totalorder %s480, %s494
      %p496 = scmp.eq.s32.totalorder %s50, 0
      %p497 = por %p495, %p496
      %s499 = sadd.s32 %s498, 1
      %p502 = scmp.eq.s32.totalorder %s44, 1
      %p503 = scmp.ne.s32.totalorder %s498, %s500
      %p504 = scmp.eq.s32.totalorder %s44, 0
      %p505 = por %p503, %p504
      %p506 = scmp.ne.s32.totalorder %s498, %s500
      %p507 = scmp.eq.s32.totalorder %s49, 1
      %p508 = por %p506, %p507
      %p509 = scmp.ne.s32.totalorder %s500, %s501
      %p510 = scmp.eq.s32.totalorder %s49, 0
      %p511 = por %p509, %p510
      %p512 = scmp.ne.s32.totalorder %s500, %s501
      %p513 = scmp.eq.s32.totalorder %s50, 1
      %p514 = por %p512, %p513
      %p516 = scmp.ne.s32.totalorder %s501, %s515
      %p517 = scmp.eq.s32.totalorder %s50, 0
      %p518 = por %p516, %p517
      %s520 = sadd.s32 %s519, 1
      %p523 = scmp.eq.s32.totalorder %s44, 1
      %p524 = scmp.ne.s32.totalorder %s519, %s521
      %p525 = scmp.eq.s32.totalorder %s44, 0
      %p526 = por %p524, %p525
      %p527 = scmp.ne.s32.totalorder %s519, %s521
      %p528 = scmp.eq.s32.totalorder %s49, 1
      %p529 = por %p527, %p528
      %p530 = scmp.ne.s32.totalorder %s521, %s522
      %p531 = scmp.eq.s32.totalorder %s49, 0
      %p532 = por %p530, %p531
      %p533 = scmp.ne.s32.totalorder %s521, %s522
      %p534 = scmp.eq.s32.totalorder %s50, 1
      %p535 = por %p533, %p534
      %p537 = scmp.ne.s32.totalorder %s522, %s536
      %p538 = scmp.eq.s32.totalorder %s50, 0
      %p539 = por %p537, %p538
      %s540 = ssub.s32 %s44, %s51
      %p541 = scmp.eq.s32.totalorder %s540, 0
      %s543 = sadd.s32 %s542, 1
      %s544 = scalar_select %p541, %s542, %s543
      %p547 = pneg %p541
      %p548 = scmp.eq.s32.totalorder %s44, 1
      %p549 = por %p547, %p548
      %p550 = scmp.ne.s32.totalorder %s542, %s545
      %p551 = scmp.eq.s32.totalorder %s44, 0
      %p552 = por %p550, %p551
      %p553 = scmp.ne.s32.totalorder %s542, %s545
      %p554 = scmp.eq.s32.totalorder %s49, 1
      %p555 = por %p553, %p554
      %p556 = scmp.ne.s32.totalorder %s545, %s546
      %p557 = scmp.eq.s32.totalorder %s49, 0
      %p558 = por %p556, %p557
      %p559 = scmp.ne.s32.totalorder %s545, %s546
      %p560 = scmp.eq.s32.totalorder %s50, 1
      %p561 = por %p559, %p560
      %p563 = scmp.ne.s32.totalorder %s546, %s562
      %p564 = scmp.eq.s32.totalorder %s50, 0
      %p565 = por %p563, %p564
      %p566 = scmp.le.s32.totalorder 1, %s44
      %p567 = scmp.lt.s32.totalorder %s44, 3
      %p568 = pnand %p566, %p567
      %p569 = pneg %p568
      // Predicated region
      $region9: #{tpu_custom_call.1} parent=5 // pred_check
        _
      $region10: #{tpu_custom_call.1} parent=5 // pred_check_branch
        %571 = sbr.rel (%p568) target = $region12
      $region11: #{tpu_custom_call.1} parent=5 // pred_region
        %s572 = ssub.s32 %s44, 1
        // Predicated region
        $region13: #{tpu_custom_call.1} parent=11 // pred_check
          %p573 = pneg %p91
        $region14: #{tpu_custom_call.1} parent=11 // pred_check_branch
          %575 = sbr.rel (%p573) target = $region16
        $region15: #{tpu_custom_call.1} parent=11 // pred_region
          %s577 = ssub.s32 2048, 2048
          %578 = vsyncadd [#allocation6], %s577
          %s579 = sshll.u32 [#allocation5], 4
          %s580 = int_to_ptr.vmem [resolvable:$true] %s579
          %585 = dma.hbm_to_vmem [thread:$0]  %s1, 2048, %s580, [#allocation6], 64, 64, 4
        $region16: #{tpu_custom_call.1} parent=11 // pred_fallthru
          _
        // Predicated region
        $region17: #{tpu_custom_call.1} parent=11 // pred_check
          %p586 = pneg %p112
        $region18: #{tpu_custom_call.1} parent=11 // pred_check_branch
          %588 = sbr.rel (%p586) target = $region20
        $region19: #{tpu_custom_call.1} parent=11 // pred_region
          %s590 = ssub.s32 16, 16
          %591 = vsyncadd [#allocation6], %s590
          %s593 = sshll.u32 [#allocation7], 4
          %s594 = int_to_ptr.vmem [resolvable:$true] %s593
          %596 = dma.hbm_to_vmem [thread:$0]  %s2, 16, %s594, [#allocation6]
        $region20: #{tpu_custom_call.1} parent=11 // pred_fallthru
          _
        // Predicated region
        $region21: #{tpu_custom_call.1} parent=11 // pred_check
          %p597 = pneg %p133
        $region22: #{tpu_custom_call.1} parent=11 // pred_check_branch
          %599 = sbr.rel (%p597) target = $region24
        $region23: #{tpu_custom_call.1} parent=11 // pred_region
          %s601 = ssub.s32 16, 16
          %602 = vsyncadd [#allocation9], %s601
          %s604 = sshll.u32 [#allocation8], 4
          %s605 = int_to_ptr.vmem [resolvable:$true] %s604
          %607 = dma.hbm_to_vmem [thread:$0]  %s3, 16, %s605, [#allocation9]
        $region24: #{tpu_custom_call.1} parent=11 // pred_fallthru
          _
        // Predicated region
        $region25: #{tpu_custom_call.1} parent=11 // pred_check
          %p608 = pneg %p154
        $region26: #{tpu_custom_call.1} parent=11 // pred_check_branch
          %610 = sbr.rel (%p608) target = $region28
        $region27: #{tpu_custom_call.1} parent=11 // pred_region
          %s612 = ssub.s32 16, 16
          %613 = vsyncadd [#allocation9], %s612
          %s615 = sshll.u32 [#allocation10], 4
          %s616 = int_to_ptr.vmem [resolvable:$true] %s615
          %618 = dma.hbm_to_vmem [thread:$0]  %s4, 16, %s616, [#allocation9]
        $region28: #{tpu_custom_call.1} parent=11 // pred_fallthru
          _
        // Predicated region
        $region29: #{tpu_custom_call.1} parent=11 // pred_check
          %p619 = pneg %p175
        $region30: #{tpu_custom_call.1} parent=11 // pred_check_branch
          %621 = sbr.rel (%p619) target = $region32
        $region31: #{tpu_custom_call.1} parent=11 // pred_region
          %s623 = ssub.s32 1024, 1024
          %624 = vsyncadd [#allocation12], %s623
          %s625 = sshll.u32 [#allocation11], 4
          %s626 = int_to_ptr.vmem [resolvable:$true] %s625
          %631 = dma.hbm_to_vmem [thread:$0]  %s5, 1024, %s626, [#allocation12], 64, 64, 4
        $region32: #{tpu_custom_call.1} parent=11 // pred_fallthru
          _
        // Predicated region
        $region33: #{tpu_custom_call.1} parent=11 // pred_check
          %p632 = pneg %p196
        $region34: #{tpu_custom_call.1} parent=11 // pred_check_branch
          %634 = sbr.rel (%p632) target = $region36
        $region35: #{tpu_custom_call.1} parent=11 // pred_region
          %s636 = ssub.s32 16, 16
          %637 = vsyncadd [#allocation12], %s636
          %s639 = sshll.u32 [#allocation13], 4
          %s640 = int_to_ptr.vmem [resolvable:$true] %s639
          %642 = dma.hbm_to_vmem [thread:$0]  %s6, 16, %s640, [#allocation12]
        $region36: #{tpu_custom_call.1} parent=11 // pred_fallthru
          _
        // Predicated region
        $region37: #{tpu_custom_call.1} parent=11 // pred_check
          %p643 = pneg %p217
        $region38: #{tpu_custom_call.1} parent=11 // pred_check_branch
          %645 = sbr.rel (%p643) target = $region40
        $region39: #{tpu_custom_call.1} parent=11 // pred_region
          %s647 = ssub.s32 16, 16
          %648 = vsyncadd [#allocation15], %s647
          %s650 = sshll.u32 [#allocation14], 4
          %s651 = int_to_ptr.vmem [resolvable:$true] %s650
          %653 = dma.hbm_to_vmem [thread:$0]  %s7, 16, %s651, [#allocation15]
        $region40: #{tpu_custom_call.1} parent=11 // pred_fallthru
          _
        // Predicated region
        $region41: #{tpu_custom_call.1} parent=11 // pred_check
          %p654 = pneg %p238
        $region42: #{tpu_custom_call.1} parent=11 // pred_check_branch
          %656 = sbr.rel (%p654) target = $region44
        $region43: #{tpu_custom_call.1} parent=11 // pred_region
          %s658 = ssub.s32 16, 16
          %659 = vsyncadd [#allocation15], %s658
          %s661 = sshll.u32 [#allocation16], 4
          %s662 = int_to_ptr.vmem [resolvable:$true] %s661
          %664 = dma.hbm_to_vmem [thread:$0]  %s8, 16, %s662, [#allocation15]
        $region44: #{tpu_custom_call.1} parent=11 // pred_fallthru
          _
        // Predicated region
        $region45: #{tpu_custom_call.1} parent=11 // pred_check
          %p665 = pneg %p259
        $region46: #{tpu_custom_call.1} parent=11 // pred_check_branch
          %667 = sbr.rel (%p665) target = $region48
        $region47: #{tpu_custom_call.1} parent=11 // pred_region
          %s669 = ssub.s32 1024, 1024
          %670 = vsyncadd [#allocation18], %s669
          %s671 = sshll.u32 [#allocation17], 4
          %s672 = int_to_ptr.vmem [resolvable:$true] %s671
          %677 = dma.hbm_to_vmem [thread:$0]  %s9, 1024, %s672, [#allocation18], 64, 64, 4
        $region48: #{tpu_custom_call.1} parent=11 // pred_fallthru
          _
        // Predicated region
        $region49: #{tpu_custom_call.1} parent=11 // pred_check
          %p678 = pneg %p280
        $region50: #{tpu_custom_call.1} parent=11 // pred_check_branch
          %680 = sbr.rel (%p678) target = $region52
        $region51: #{tpu_custom_call.1} parent=11 // pred_region
          %s682 = ssub.s32 16, 16
          %683 = vsyncadd [#allocation18], %s682
          %s685 = sshll.u32 [#allocation19], 4
          %s686 = int_to_ptr.vmem [resolvable:$true] %s685
          %688 = dma.hbm_to_vmem [thread:$0]  %s10, 16, %s686, [#allocation18]
        $region52: #{tpu_custom_call.1} parent=11 // pred_fallthru
          _
        // Predicated region
        $region53: #{tpu_custom_call.1} parent=11 // pred_check
          %p689 = pneg %p301
        $region54: #{tpu_custom_call.1} parent=11 // pred_check_branch
          %691 = sbr.rel (%p689) target = $region56
        $region55: #{tpu_custom_call.1} parent=11 // pred_region
          %s693 = ssub.s32 16, 16
          %694 = vsyncadd [#allocation21], %s693
          %s696 = sshll.u32 [#allocation20], 4
          %s697 = int_to_ptr.vmem [resolvable:$true] %s696
          %699 = dma.hbm_to_vmem [thread:$0]  %s11, 16, %s697, [#allocation21]
        $region56: #{tpu_custom_call.1} parent=11 // pred_fallthru
          _
        // Predicated region
        $region57: #{tpu_custom_call.1} parent=11 // pred_check
          %p700 = pneg %p322
        $region58: #{tpu_custom_call.1} parent=11 // pred_check_branch
          %702 = sbr.rel (%p700) target = $region60
        $region59: #{tpu_custom_call.1} parent=11 // pred_region
          %s704 = ssub.s32 16, 16
          %705 = vsyncadd [#allocation21], %s704
          %s707 = sshll.u32 [#allocation22], 4
          %s708 = int_to_ptr.vmem [resolvable:$true] %s707
          %710 = dma.hbm_to_vmem [thread:$0]  %s12, 16, %s708, [#allocation21]
        $region60: #{tpu_custom_call.1} parent=11 // pred_fallthru
          _
        // Predicated region
        $region61: #{tpu_custom_call.1} parent=11 // pred_check
          %p711 = pneg %p343
        $region62: #{tpu_custom_call.1} parent=11 // pred_check_branch
          %713 = sbr.rel (%p711) target = $region64
        $region63: #{tpu_custom_call.1} parent=11 // pred_region
          %s715 = ssub.s32 1024, 1024
          %716 = vsyncadd [#allocation24], %s715
          %s717 = sshll.u32 [#allocation23], 4
          %s718 = int_to_ptr.vmem [resolvable:$true] %s717
          %723 = dma.hbm_to_vmem [thread:$0]  %s13, 1024, %s718, [#allocation24], 64, 64, 4
        $region64: #{tpu_custom_call.1} parent=11 // pred_fallthru
          _
        // Predicated region
        $region65: #{tpu_custom_call.1} parent=11 // pred_check
          %p724 = pneg %p364
        $region66: #{tpu_custom_call.1} parent=11 // pred_check_branch
          %726 = sbr.rel (%p724) target = $region68
        $region67: #{tpu_custom_call.1} parent=11 // pred_region
          %s728 = ssub.s32 16, 16
          %729 = vsyncadd [#allocation24], %s728
          %s731 = sshll.u32 [#allocation25], 4
          %s732 = int_to_ptr.vmem [resolvable:$true] %s731
          %734 = dma.hbm_to_vmem [thread:$0]  %s14, 16, %s732, [#allocation24]
        $region68: #{tpu_custom_call.1} parent=11 // pred_fallthru
          _
        // Predicated region
        $region69: #{tpu_custom_call.1} parent=11 // pred_check
          %p735 = pneg %p385
        $region70: #{tpu_custom_call.1} parent=11 // pred_check_branch
          %737 = sbr.rel (%p735) target = $region72
        $region71: #{tpu_custom_call.1} parent=11 // pred_region
          %s739 = ssub.s32 16, 16
          %740 = vsyncadd [#allocation27], %s739
          %s742 = sshll.u32 [#allocation26], 4
          %s743 = int_to_ptr.vmem [resolvable:$true] %s742
          %745 = dma.hbm_to_vmem [thread:$0]  %s15, 16, %s743, [#allocation27]
        $region72: #{tpu_custom_call.1} parent=11 // pred_fallthru
          _
        // Predicated region
        $region73: #{tpu_custom_call.1} parent=11 // pred_check
          %p746 = pneg %p406
        $region74: #{tpu_custom_call.1} parent=11 // pred_check_branch
          %748 = sbr.rel (%p746) target = $region76
        $region75: #{tpu_custom_call.1} parent=11 // pred_region
          %s750 = ssub.s32 16, 16
          %751 = vsyncadd [#allocation27], %s750
          %s753 = sshll.u32 [#allocation28], 4
          %s754 = int_to_ptr.vmem [resolvable:$true] %s753
          %756 = dma.hbm_to_vmem [thread:$0]  %s16, 16, %s754, [#allocation27]
        $region76: #{tpu_custom_call.1} parent=11 // pred_fallthru
          _
        // Predicated region
        $region77: #{tpu_custom_call.1} parent=11 // pred_check
          %p757 = pneg %p427
        $region78: #{tpu_custom_call.1} parent=11 // pred_check_branch
          %759 = sbr.rel (%p757) target = $region80
        $region79: #{tpu_custom_call.1} parent=11 // pred_region
          _
        $region80: #{tpu_custom_call.1} parent=11 // pred_fallthru
          _
        // Predicated region
        $region81: #{tpu_custom_call.1} parent=11 // pred_check
          %p760 = pneg %p448
        $region82: #{tpu_custom_call.1} parent=11 // pred_check_branch
          %762 = sbr.rel (%p760) target = $region84
        $region83: #{tpu_custom_call.1} parent=11 // pred_region
          _
        $region84: #{tpu_custom_call.1} parent=11 // pred_fallthru
          _
        // Predicated region
        $region85: #{tpu_custom_call.1} parent=11 // pred_check
          %p763 = pneg %p469
        $region86: #{tpu_custom_call.1} parent=11 // pred_check_branch
          %765 = sbr.rel (%p763) target = $region88
        $region87: #{tpu_custom_call.1} parent=11 // pred_region
          _
        $region88: #{tpu_custom_call.1} parent=11 // pred_fallthru
          _
        // Predicated region
        $region89: #{tpu_custom_call.1} parent=11 // pred_check
          %p766 = pneg %p490
        $region90: #{tpu_custom_call.1} parent=11 // pred_check_branch
          %768 = sbr.rel (%p766) target = $region92
        $region91: #{tpu_custom_call.1} parent=11 // pred_region
          _
        $region92: #{tpu_custom_call.1} parent=11 // pred_fallthru
          _
        // Predicated region
        $region93: #{tpu_custom_call.1} parent=11 // pred_check
          %p769 = pneg %p511
        $region94: #{tpu_custom_call.1} parent=11 // pred_check_branch
          %771 = sbr.rel (%p769) target = $region96
        $region95: #{tpu_custom_call.1} parent=11 // pred_region
          %s773 = ssub.s32 1024, 1024
          %774 = vsyncadd [#allocation30], %s773
          %s775 = sshll.u32 [#allocation29], 4
          %s776 = int_to_ptr.vmem [resolvable:$true] %s775
          %781 = dma.hbm_to_vmem [thread:$0]  %s21, 1024, %s776, [#allocation30], 64, 64, 4
        $region96: #{tpu_custom_call.1} parent=11 // pred_fallthru
          _
        // Predicated region
        $region97: #{tpu_custom_call.1} parent=11 // pred_check
          %p782 = pneg %p532
        $region98: #{tpu_custom_call.1} parent=11 // pred_check_branch
          %784 = sbr.rel (%p782) target = $region100
        $region99: #{tpu_custom_call.1} parent=11 // pred_region
          _
        $region100: #{tpu_custom_call.1} parent=11 // pred_fallthru
          _
      $region12: #{tpu_custom_call.1} parent=5 // pred_fallthru
        _
      %p785 = scmp.lt.s32.totalorder %s44, 2
      // Predicated region
      $region101: #{tpu_custom_call.1} parent=5 // pred_check
        %p786 = pneg %p785
      $region102: #{tpu_custom_call.1} parent=5 // pred_check_branch
        %788 = sbr.rel (%p786) target = $region104
      $region103: #{tpu_custom_call.1} parent=5 // pred_region
        // Predicated region
        $region105: #{tpu_custom_call.1} parent=103 // pred_check
          %p789 = pneg %p64
        $region106: #{tpu_custom_call.1} parent=103 // pred_check_branch
          %791 = sbr.rel (%p789) target = $region108
        $region107: #{tpu_custom_call.1} parent=103 // pred_region
          %s792 = sand.u32 %s54, 1
          %s793 = scalar_lea.sflag [#allocation3], %s792
          %s794 = sand.u32 %s54, 1
          %s795 = smul.addr %s794, 128
          %s796 = scalar_lea.vmem [#allocation2], %s795
          %s797 = smul.u32 8, %s44
          %s799 = ssub.s32 2048, 2048
          %800 = vsyncadd %s793, %s799
          %s801 = smul.addr %s797, 2
          %s802 = smul.addr %s801, 128
          %s803 = scalar_lea.hbm %s0, %s802
          %s804 = sshll.u32 %s796, 4
          %s805 = int_to_ptr.vmem [resolvable:$true] %s804
          %810 = dma.hbm_to_vmem [thread:$0]  %s803, 2048, %s805, %s793, 256, 256, 16
        $region108: #{tpu_custom_call.1} parent=103 // pred_fallthru
          _
      $region104: #{tpu_custom_call.1} parent=5 // pred_fallthru
        _
      %p811 = scmp.le.s32.totalorder 1, %s44
      %p812 = scmp.lt.s32.totalorder %s44, 3
      %p813 = pnand %p811, %p812
      %p814 = pneg %p813
      // Predicated region
      $region109: #{tpu_custom_call.1} parent=5 // pred_check
        _
      $region110: #{tpu_custom_call.1} parent=5 // pred_check_branch
        %816 = sbr.rel (%p813) target = $region112
      $region111: #{tpu_custom_call.1} parent=5 // pred_region
        %s817 = ssub.s32 %s44, 1
        %s818 = sand.u32 %s57, 1
        %s819 = scalar_lea.sflag [#allocation3], %s818
        %s820 = sand.u32 %s57, 1
        %s821 = smul.addr %s820, 128
        %s822 = scalar_lea.vmem [#allocation2], %s821
        // Predicated region
        $region113: #{tpu_custom_call.1} parent=111 // pred_check
          %p823 = pneg %p70
        $region114: #{tpu_custom_call.1} parent=111 // pred_check_branch
          %825 = sbr.rel (%p823) target = $region116
        $region115: #{tpu_custom_call.1} parent=111 // pred_region
          %826 = dma.done %s819, 2048
        $region116: #{tpu_custom_call.1} parent=111 // pred_fallthru
          _
        // Predicated region
        $region117: #{tpu_custom_call.1} parent=111 // pred_check
          %p827 = pneg %p91
        $region118: #{tpu_custom_call.1} parent=111 // pred_check_branch
          %829 = sbr.rel (%p827) target = $region120
        $region119: #{tpu_custom_call.1} parent=111 // pred_region
          %830 = dma.done [#allocation6], 2048
        $region120: #{tpu_custom_call.1} parent=111 // pred_fallthru
          _
        // Predicated region
        $region121: #{tpu_custom_call.1} parent=111 // pred_check
          %p831 = pneg %p112
        $region122: #{tpu_custom_call.1} parent=111 // pred_check_branch
          %833 = sbr.rel (%p831) target = $region124
        $region123: #{tpu_custom_call.1} parent=111 // pred_region
          %834 = dma.done [#allocation6], 16
        $region124: #{tpu_custom_call.1} parent=111 // pred_fallthru
          _
        // Predicated region
        $region125: #{tpu_custom_call.1} parent=111 // pred_check
          %p835 = pneg %p133
        $region126: #{tpu_custom_call.1} parent=111 // pred_check_branch
          %837 = sbr.rel (%p835) target = $region128
        $region127: #{tpu_custom_call.1} parent=111 // pred_region
          %838 = dma.done [#allocation9], 16
        $region128: #{tpu_custom_call.1} parent=111 // pred_fallthru
          _
        // Predicated region
        $region129: #{tpu_custom_call.1} parent=111 // pred_check
          %p839 = pneg %p154
        $region130: #{tpu_custom_call.1} parent=111 // pred_check_branch
          %841 = sbr.rel (%p839) target = $region132
        $region131: #{tpu_custom_call.1} parent=111 // pred_region
          %842 = dma.done [#allocation9], 16
        $region132: #{tpu_custom_call.1} parent=111 // pred_fallthru
          _
        // Predicated region
        $region133: #{tpu_custom_call.1} parent=111 // pred_check
          %p843 = pneg %p175
        $region134: #{tpu_custom_call.1} parent=111 // pred_check_branch
          %845 = sbr.rel (%p843) target = $region136
        $region135: #{tpu_custom_call.1} parent=111 // pred_region
          %846 = dma.done [#allocation12], 1024
        $region136: #{tpu_custom_call.1} parent=111 // pred_fallthru
          _
        // Predicated region
        $region137: #{tpu_custom_call.1} parent=111 // pred_check
          %p847 = pneg %p196
        $region138: #{tpu_custom_call.1} parent=111 // pred_check_branch
          %849 = sbr.rel (%p847) target = $region140
        $region139: #{tpu_custom_call.1} parent=111 // pred_region
          %850 = dma.done [#allocation12], 16
        $region140: #{tpu_custom_call.1} parent=111 // pred_fallthru
          _
        // Predicated region
        $region141: #{tpu_custom_call.1} parent=111 // pred_check
          %p851 = pneg %p217
        $region142: #{tpu_custom_call.1} parent=111 // pred_check_branch
          %853 = sbr.rel (%p851) target = $region144
        $region143: #{tpu_custom_call.1} parent=111 // pred_region
          %854 = dma.done [#allocation15], 16
        $region144: #{tpu_custom_call.1} parent=111 // pred_fallthru
          _
        // Predicated region
        $region145: #{tpu_custom_call.1} parent=111 // pred_check
          %p855 = pneg %p238
        $region146: #{tpu_custom_call.1} parent=111 // pred_check_branch
          %857 = sbr.rel (%p855) target = $region148
        $region147: #{tpu_custom_call.1} parent=111 // pred_region
          %858 = dma.done [#allocation15], 16
        $region148: #{tpu_custom_call.1} parent=111 // pred_fallthru
          _
        // Predicated region
        $region149: #{tpu_custom_call.1} parent=111 // pred_check
          %p859 = pneg %p259
        $region150: #{tpu_custom_call.1} parent=111 // pred_check_branch
          %861 = sbr.rel (%p859) target = $region152
        $region151: #{tpu_custom_call.1} parent=111 // pred_region
          %862 = dma.done [#allocation18], 1024
        $region152: #{tpu_custom_call.1} parent=111 // pred_fallthru
          _
        // Predicated region
        $region153: #{tpu_custom_call.1} parent=111 // pred_check
          %p863 = pneg %p280
        $region154: #{tpu_custom_call.1} parent=111 // pred_check_branch
          %865 = sbr.rel (%p863) target = $region156
        $region155: #{tpu_custom_call.1} parent=111 // pred_region
          %866 = dma.done [#allocation18], 16
        $region156: #{tpu_custom_call.1} parent=111 // pred_fallthru
          _
        // Predicated region
        $region157: #{tpu_custom_call.1} parent=111 // pred_check
          %p867 = pneg %p301
        $region158: #{tpu_custom_call.1} parent=111 // pred_check_branch
          %869 = sbr.rel (%p867) target = $region160
        $region159: #{tpu_custom_call.1} parent=111 // pred_region
          %870 = dma.done [#allocation21], 16
        $region160: #{tpu_custom_call.1} parent=111 // pred_fallthru
          _
        // Predicated region
        $region161: #{tpu_custom_call.1} parent=111 // pred_check
          %p871 = pneg %p322
        $region162: #{tpu_custom_call.1} parent=111 // pred_check_branch
          %873 = sbr.rel (%p871) target = $region164
        $region163: #{tpu_custom_call.1} parent=111 // pred_region
          %874 = dma.done [#allocation21], 16
        $region164: #{tpu_custom_call.1} parent=111 // pred_fallthru
          _
        // Predicated region
        $region165: #{tpu_custom_call.1} parent=111 // pred_check
          %p875 = pneg %p343
        $region166: #{tpu_custom_call.1} parent=111 // pred_check_branch
          %877 = sbr.rel (%p875) target = $region168
        $region167: #{tpu_custom_call.1} parent=111 // pred_region
          %878 = dma.done [#allocation24], 1024
        $region168: #{tpu_custom_call.1} parent=111 // pred_fallthru
          _
        // Predicated region
        $region169: #{tpu_custom_call.1} parent=111 // pred_check
          %p879 = pneg %p364
        $region170: #{tpu_custom_call.1} parent=111 // pred_check_branch
          %881 = sbr.rel (%p879) target = $region172
        $region171: #{tpu_custom_call.1} parent=111 // pred_region
          %882 = dma.done [#allocation24], 16
        $region172: #{tpu_custom_call.1} parent=111 // pred_fallthru
          _
        // Predicated region
        $region173: #{tpu_custom_call.1} parent=111 // pred_check
          %p883 = pneg %p385
        $region174: #{tpu_custom_call.1} parent=111 // pred_check_branch
          %885 = sbr.rel (%p883) target = $region176
        $region175: #{tpu_custom_call.1} parent=111 // pred_region
          %886 = dma.done [#allocation27], 16
        $region176: #{tpu_custom_call.1} parent=111 // pred_fallthru
          _
        // Predicated region
        $region177: #{tpu_custom_call.1} parent=111 // pred_check
          %p887 = pneg %p406
        $region178: #{tpu_custom_call.1} parent=111 // pred_check_branch
          %889 = sbr.rel (%p887) target = $region180
        $region179: #{tpu_custom_call.1} parent=111 // pred_region
          %890 = dma.done [#allocation27], 16
        $region180: #{tpu_custom_call.1} parent=111 // pred_fallthru
          _
        // Predicated region
        $region181: #{tpu_custom_call.1} parent=111 // pred_check
          %p891 = pneg %p511
        $region182: #{tpu_custom_call.1} parent=111 // pred_check_branch
          %893 = sbr.rel (%p891) target = $region184
        $region183: #{tpu_custom_call.1} parent=111 // pred_region
          %894 = dma.done [#allocation30], 1024
        $region184: #{tpu_custom_call.1} parent=111 // pred_fallthru
          _
        %s895 = sand.u32 %s57, 1
        %s896 = scalar_lea.sflag [#allocation3], %s895
        %s897 = sand.u32 %s57, 1
        %s898 = smul.addr %s897, 128
        %s899 = scalar_lea.vmem [#allocation2], %s898
        %p900 = pneg %p70
        %p901 = pneg %p67
        %p902 = pneg %p91
        %p903 = pneg %p88
        %p904 = pneg %p112
        %p905 = pneg %p109
        %p906 = pneg %p133
        %p907 = pneg %p130
        %p908 = pneg %p154
        %p909 = pneg %p151
        %p910 = pneg %p175
        %p911 = pneg %p172
        %p912 = pneg %p196
        %p913 = pneg %p193
        %p914 = pneg %p217
        %p915 = pneg %p214
        %p916 = pneg %p238
        %p917 = pneg %p235
        %p918 = pneg %p259
        %p919 = pneg %p256
        %p920 = pneg %p280
        %p921 = pneg %p277
        %p922 = pneg %p301
        %p923 = pneg %p298
        %p924 = pneg %p322
        %p925 = pneg %p319
        %p926 = pneg %p343
        %p927 = pneg %p340
        %p928 = pneg %p364
        %p929 = pneg %p361
        %p930 = pneg %p385
        %p931 = pneg %p382
        %p932 = pneg %p406
        %p933 = pneg %p403
        %p934 = pneg %p427
        %p935 = pneg %p424
        %p936 = pneg %p448
        %p937 = pneg %p445
        %p938 = pneg %p469
        %p939 = pneg %p466
        %p940 = pneg %p490
        %p941 = pneg %p487
        %p942 = pneg %p511
        %p943 = pneg %p508
        %p944 = pneg %p532
        %p945 = pneg %p529
        %p946 = pneg %p558
        %p947 = pneg %p555
        %s948 = sand.u32 %s545, 1
        %s949 = scalar_lea.sflag [#allocation4], %s948
        %s950 = sand.u32 %s545, 1
        %s951 = smul.addr %s950, 64
        %s952 = scalar_lea.vmem [#allocation31], %s951
        %s953 = smul.u32 8, %s49
        %s954 = smul.u32 8, %s49
        %v956 = vld [vmem:[%s822] sm:$0xff]
        %v957 = vld [vmem:[%s822 + $0x8] sm:$0xff]
        %v958 = vld [vmem:[%s822 + $0x10] sm:$0xff]
        %v959 = vld [vmem:[%s822 + $0x18] sm:$0xff]
        %v960 = vld [vmem:[%s822 + $0x20] sm:$0xff]
        %v961 = vld [vmem:[%s822 + $0x28] sm:$0xff]
        %v962 = vld [vmem:[%s822 + $0x30] sm:$0xff]
        %v963 = vld [vmem:[%s822 + $0x38] sm:$0xff]
        %v964 = vld [vmem:[%s822 + $0x40] sm:$0xff]
        %v965 = vld [vmem:[%s822 + $0x48] sm:$0xff]
        %v966 = vld [vmem:[%s822 + $0x50] sm:$0xff]
        %v967 = vld [vmem:[%s822 + $0x58] sm:$0xff]
        %v968 = vld [vmem:[%s822 + $0x60] sm:$0xff]
        %v969 = vld [vmem:[%s822 + $0x68] sm:$0xff]
        %v970 = vld [vmem:[%s822 + $0x70] sm:$0xff]
        %v971 = vld [vmem:[%s822 + $0x78] sm:$0xff]
        %v972 = vmul.f32 %v956, %v956
        %v973 = vmul.f32 %v957, %v957
        %v974 = vmul.f32 %v958, %v958
        %v975 = vmul.f32 %v959, %v959
        %v976 = vmul.f32 %v960, %v960
        %v977 = vmul.f32 %v961, %v961
        %v978 = vmul.f32 %v962, %v962
        %v979 = vmul.f32 %v963, %v963
        %v980 = vmul.f32 %v964, %v964
        %v981 = vmul.f32 %v965, %v965
        %v982 = vmul.f32 %v966, %v966
        %v983 = vmul.f32 %v967, %v967
        %v984 = vmul.f32 %v968, %v968
        %v985 = vmul.f32 %v969, %v969
        %v986 = vmul.f32 %v970, %v970
        %v987 = vmul.f32 %v971, %v971
        %v988 = vadd.f32 %v972, %v973
        %989 = vadd.xlane.f32.xlu0 %v988
        %v990 = vpop.xlane.xlu0 %989
        %v991 = vadd.f32 %v974, %v975
        %992 = vadd.xlane.f32.xlu0 %v991
        %v993 = vpop.xlane.xlu0 %992
        %v994 = vadd.f32 %v976, %v977
        %995 = vadd.xlane.f32.xlu0 %v994
        %v996 = vpop.xlane.xlu0 %995
        %v997 = vadd.f32 %v978, %v979
        %998 = vadd.xlane.f32.xlu0 %v997
        %v999 = vpop.xlane.xlu0 %998
        %v1000 = vadd.f32 %v980, %v981
        %1001 = vadd.xlane.f32.xlu0 %v1000
        %v1002 = vpop.xlane.xlu0 %1001
        %v1003 = vadd.f32 %v982, %v983
        %1004 = vadd.xlane.f32.xlu0 %v1003
        %v1005 = vpop.xlane.xlu0 %1004
        %v1006 = vadd.f32 %v984, %v985
        %1007 = vadd.xlane.f32.xlu0 %v1006
        %v1008 = vpop.xlane.xlu0 %1007
        %v1009 = vadd.f32 %v986, %v987
        %1010 = vadd.xlane.f32.xlu0 %v1009
        %v1011 = vpop.xlane.xlu0 %1010
        %v1012 = vrsqrt.pop %v990
        %v1013 = vrsqrt.pop %v993
        %v1014 = vrsqrt.pop %v996
        %v1015 = vrsqrt.pop %v999
        %v1016 = vrsqrt.pop %v1002
        %v1017 = vrsqrt.pop %v1005
        %v1018 = vrsqrt.pop %v1008
        %v1019 = vrsqrt.pop %v1011
        %v1020 = vmul.f32 %v956, %v1012
        %v1021 = vmul.f32 %v957, %v1012
        %v1022 = vmul.f32 %v958, %v1013
        %v1023 = vmul.f32 %v959, %v1013
        %v1024 = vmul.f32 %v960, %v1014
        %v1025 = vmul.f32 %v961, %v1014
        %v1026 = vmul.f32 %v962, %v1015
        %v1027 = vmul.f32 %v963, %v1015
        %v1028 = vmul.f32 %v964, %v1016
        %v1029 = vmul.f32 %v965, %v1016
        %v1030 = vmul.f32 %v966, %v1017
        %v1031 = vmul.f32 %v967, %v1017
        %v1032 = vmul.f32 %v968, %v1018
        %v1033 = vmul.f32 %v969, %v1018
        %v1034 = vmul.f32 %v970, %v1019
        %v1035 = vmul.f32 %v971, %v1019
        %v1036 = vpack.c.bf16 %v1022, %v1020
        %v1037 = vpack.c.bf16 %v1023, %v1021
        %v1038 = vpack.c.bf16 %v1026, %v1024
        %v1039 = vpack.c.bf16 %v1027, %v1025
        %v1040 = vpack.c.bf16 %v1030, %v1028
        %v1041 = vpack.c.bf16 %v1031, %v1029
        %v1042 = vpack.c.bf16 %v1034, %v1032
        %v1043 = vpack.c.bf16 %v1035, %v1033
        %v1044 = vld [vmem:[#allocation5] sm:$0xf]
        %v1045 = vld [vmem:[#allocation5 + $0x4] sm:$0xf]
        %v1046 = vld [vmem:[#allocation5 + $0x8] sm:$0xf]
        %v1047 = vld [vmem:[#allocation5 + $0xc] sm:$0xf]
        %v1048 = vld [vmem:[#allocation5 + $0x10] sm:$0xf]
        %v1049 = vld [vmem:[#allocation5 + $0x14] sm:$0xf]
        %v1050 = vld [vmem:[#allocation5 + $0x18] sm:$0xf]
        %v1051 = vld [vmem:[#allocation5 + $0x1c] sm:$0xf]
        %v1052 = vld [vmem:[#allocation5 + $0x20] sm:$0xf]
        %v1053 = vld [vmem:[#allocation5 + $0x24] sm:$0xf]
        %v1054 = vld [vmem:[#allocation5 + $0x28] sm:$0xf]
        %v1055 = vld [vmem:[#allocation5 + $0x2c] sm:$0xf]
        %v1056 = vld [vmem:[#allocation5 + $0x30] sm:$0xf]
        %v1057 = vld [vmem:[#allocation5 + $0x34] sm:$0xf]
        %v1058 = vld [vmem:[#allocation5 + $0x38] sm:$0xf]
        %v1059 = vld [vmem:[#allocation5 + $0x3c] sm:$0xf]
        %v1060 = vld [vmem:[#allocation5 + $0x40] sm:$0xf]
        %v1061 = vld [vmem:[#allocation5 + $0x44] sm:$0xf]
        %v1062 = vld [vmem:[#allocation5 + $0x48] sm:$0xf]
        %v1063 = vld [vmem:[#allocation5 + $0x4c] sm:$0xf]
        %v1064 = vld [vmem:[#allocation5 + $0x50] sm:$0xf]
        %v1065 = vld [vmem:[#allocation5 + $0x54] sm:$0xf]
        %v1066 = vld [vmem:[#allocation5 + $0x58] sm:$0xf]
        %v1067 = vld [vmem:[#allocation5 + $0x5c] sm:$0xf]
        %v1068 = vld [vmem:[#allocation5 + $0x60] sm:$0xf]
        %v1069 = vld [vmem:[#allocation5 + $0x64] sm:$0xf]
        %v1070 = vld [vmem:[#allocation5 + $0x68] sm:$0xf]
        %v1071 = vld [vmem:[#allocation5 + $0x6c] sm:$0xf]
        %v1072 = vld [vmem:[#allocation5 + $0x70] sm:$0xf]
        %v1073 = vld [vmem:[#allocation5 + $0x74] sm:$0xf]
        %v1074 = vld [vmem:[#allocation5 + $0x78] sm:$0xf]
        %v1075 = vld [vmem:[#allocation5 + $0x7c] sm:$0xf]
        %v1076 = vld [vmem:[#allocation7] sm:$0x1]
        %v1078 = vlaneseq
        %v1079 = vshrl.u32 %v1078, 7
        %v1080 = vsub.s32 0, %v1079
        %v1081 = vrot.slane %v1076, %v1080
        %v1115 = vunpack.c.l.b16 %v1044
        %v1116 = vunpack.c.l.b16 %v1045
        %v1117 = vunpack.c.l.b16 %v1046
        %v1118 = vunpack.c.l.b16 %v1047
        %v1119 = vunpack.c.l.b16 %v1048
        %v1120 = vunpack.c.l.b16 %v1049
        %v1121 = vunpack.c.l.b16 %v1050
        %v1122 = vunpack.c.l.b16 %v1051
        %v1123 = vunpack.c.l.b16 %v1052
        %v1124 = vunpack.c.l.b16 %v1053
        %v1125 = vunpack.c.l.b16 %v1054
        %v1126 = vunpack.c.l.b16 %v1055
        %v1127 = vunpack.c.l.b16 %v1056
        %v1128 = vunpack.c.l.b16 %v1057
        %v1129 = vunpack.c.l.b16 %v1058
        %v1130 = vunpack.c.l.b16 %v1059
        %v1131 = vunpack.c.l.b16 %v1060
        %v1132 = vunpack.c.l.b16 %v1061
        %v1133 = vunpack.c.l.b16 %v1062
        %v1134 = vunpack.c.l.b16 %v1063
        %v1135 = vunpack.c.l.b16 %v1064
        %v1136 = vunpack.c.l.b16 %v1065
        %v1137 = vunpack.c.l.b16 %v1066
        %v1138 = vunpack.c.l.b16 %v1067
        %v1139 = vunpack.c.l.b16 %v1068
        %v1140 = vunpack.c.l.b16 %v1069
        %v1141 = vunpack.c.l.b16 %v1070
        %v1142 = vunpack.c.l.b16 %v1071
        %v1143 = vunpack.c.l.b16 %v1072
        %v1144 = vunpack.c.l.b16 %v1073
        %v1145 = vunpack.c.l.b16 %v1074
        %v1146 = vunpack.c.l.b16 %v1075
        %v1147 = vpack.c.b16 %v1116, %v1115
        %v1148 = vpack.c.b16 %v1118, %v1117
        %v1149 = vpack.c.b16 %v1120, %v1119
        %v1150 = vpack.c.b16 %v1122, %v1121
        %v1151 = vpack.c.b16 %v1124, %v1123
        %v1152 = vpack.c.b16 %v1126, %v1125
        %v1153 = vpack.c.b16 %v1128, %v1127
        %v1154 = vpack.c.b16 %v1130, %v1129
        %v1155 = vpack.c.b16 %v1132, %v1131
        %v1156 = vpack.c.b16 %v1134, %v1133
        %v1157 = vpack.c.b16 %v1136, %v1135
        %v1158 = vpack.c.b16 %v1138, %v1137
        %v1159 = vpack.c.b16 %v1140, %v1139
        %v1160 = vpack.c.b16 %v1142, %v1141
        %v1161 = vpack.c.b16 %v1144, %v1143
        %v1162 = vpack.c.b16 %v1146, %v1145
        %1179 = vmatprep.subr.bf16.mxu0 0
        %1180 = vmatpush1.bf16.msra.mxu0 %v1147
        %1181 = vmatprep.subr.bf16.mxu0 0
        %1182 = vmatpush1.bf16.msra.mxu0 %v1148
        %1183 = vmatprep.subr.bf16.mxu0 0
        %1184 = vmatpush1.bf16.msra.mxu0 %v1149
        %1185 = vmatprep.subr.bf16.mxu0 0
        %1186 = vmatpush1.bf16.msra.mxu0 %v1150
        %1187 = vmatprep.subr.bf16.mxu0 0
        %1188 = vmatpush1.bf16.msra.mxu0 %v1151
        %1189 = vmatprep.subr.bf16.mxu0 0
        %1190 = vmatpush1.bf16.msra.mxu0 %v1152
        %1191 = vmatprep.subr.bf16.mxu0 0
        %1192 = vmatpush1.bf16.msra.mxu0 %v1153
        %1193 = vmatprep.subr.bf16.mxu0 0
        %1194 = vmatpush1.bf16.msra.mxu0 %v1154
        %1195 = vmatprep.subr.bf16.mxu0 0
        %1196 = vmatpush1.bf16.msra.mxu0 %v1155
        %1197 = vmatprep.subr.bf16.mxu0 0
        %1198 = vmatpush1.bf16.msra.mxu0 %v1156
        %1199 = vmatprep.subr.bf16.mxu0 0
        %1200 = vmatpush1.bf16.msra.mxu0 %v1157
        %1201 = vmatprep.subr.bf16.mxu0 0
        %1202 = vmatpush1.bf16.msra.mxu0 %v1158
        %1203 = vmatprep.subr.bf16.mxu0 0
        %1204 = vmatpush1.bf16.msra.mxu0 %v1159
        %1205 = vmatprep.subr.bf16.mxu0 0
        %1206 = vmatpush1.bf16.msra.mxu0 %v1160
        %1207 = vmatprep.subr.bf16.mxu0 0
        %1208 = vmatpush1.bf16.msra.mxu0 %v1161
        %1209 = vmatprep.subr.bf16.mxu0 0
        %1210 = vmatpush1.bf16.msra.mxu0 %v1162
        %1211 = vmatprep.mubr.bf16.mxu0 %v1037
        %1212 = vmatmul.mubr.bf16.gmra.mrb[0].mxu0 %v1036
        %v1213 = vpop.f32.mrb[0].mxu0
        %v1214 = vadd.f32 %v1081, %v1213
        %v1215 = vpop.f32.mrb[0].mxu0
        %v1216 = vpop.f32.mrb[0].mxu0
        %v1217 = vadd.f32 %v1081, %v1216
        %v1218 = vpop.f32.mrb[0].mxu0
        %1219 = vmatprep.mubr.bf16.mxu0 %v1039
        %1220 = vmatmul.mubr.bf16.gmra.mrb[0].mxu0 %v1038
        %v1221 = vpop.f32.mrb[0].mxu0
        %v1222 = vadd.f32 %v1081, %v1221
        %v1223 = vpop.f32.mrb[0].mxu0
        %v1224 = vpop.f32.mrb[0].mxu0
        %v1225 = vadd.f32 %v1081, %v1224
        %v1226 = vpop.f32.mrb[0].mxu0
        %1227 = vmatprep.mubr.bf16.mxu0 %v1041
        %1228 = vmatmul.mubr.bf16.gmra.mrb[0].mxu0 %v1040
        %v1229 = vpop.f32.mrb[0].mxu0
        %v1230 = vadd.f32 %v1081, %v1229
        %v1231 = vpop.f32.mrb[0].mxu0
        %v1232 = vpop.f32.mrb[0].mxu0
        %v1233 = vadd.f32 %v1081, %v1232
        %v1234 = vpop.f32.mrb[0].mxu0
        %1235 = vmatprep.mubr.bf16.mxu0 %v1043
        %1236 = vmatmul.mubr.bf16.gmra.mrb[0].mxu0 %v1042
        %v1237 = vpop.f32.mrb[0].mxu0
        %v1238 = vadd.f32 %v1081, %v1237
        %v1239 = vpop.f32.mrb[0].mxu0
        %v1240 = vpop.f32.mrb[0].mxu0
        %v1241 = vadd.f32 %v1081, %v1240
        %v1242 = vpop.f32.mrb[0].mxu0
        %1243 = vdwg.mxu0
        %v1244 = vxor.u32 %v1214, 2147483648
        %v1245 = vxor.u32 %v1217, 2147483648
        %v1246 = vxor.u32 %v1222, 2147483648
        %v1247 = vxor.u32 %v1225, 2147483648
        %v1248 = vxor.u32 %v1230, 2147483648
        %v1249 = vxor.u32 %v1233, 2147483648
        %v1250 = vxor.u32 %v1238, 2147483648
        %v1251 = vxor.u32 %v1241, 2147483648
        %v1252 = vmul.f32 %v1244, 1.442695
        %v1253 = vpow.pop %v1252
        %v1254 = vmul.f32 %v1245, 1.442695
        %v1255 = vpow.pop %v1254
        %v1256 = vmul.f32 %v1246, 1.442695
        %v1257 = vpow.pop %v1256
        %v1258 = vmul.f32 %v1247, 1.442695
        %v1259 = vpow.pop %v1258
        %v1260 = vmul.f32 %v1248, 1.442695
        %v1261 = vpow.pop %v1260
        %v1262 = vmul.f32 %v1249, 1.442695
        %v1263 = vpow.pop %v1262
        %v1264 = vmul.f32 %v1250, 1.442695
        %v1265 = vpow.pop %v1264
        %v1266 = vmul.f32 %v1251, 1.442695
        %v1267 = vpow.pop %v1266
        %v1268 = vadd.f32 %v1253, 1.0
        %v1269 = vadd.f32 %v1255, 1.0
        %v1270 = vadd.f32 %v1257, 1.0
        %v1271 = vadd.f32 %v1259, 1.0
        %v1272 = vadd.f32 %v1261, 1.0
        %v1273 = vadd.f32 %v1263, 1.0
        %v1274 = vadd.f32 %v1265, 1.0
        %v1275 = vadd.f32 %v1267, 1.0
        %v1276 = vrcp.pop %v1268
        %v1277 = vmul.f32 1.0, %v1276
        %v1278 = vrcp.pop %v1269
        %v1279 = vmul.f32 1.0, %v1278
        %v1280 = vrcp.pop %v1270
        %v1281 = vmul.f32 1.0, %v1280
        %v1282 = vrcp.pop %v1271
        %v1283 = vmul.f32 1.0, %v1282
        %v1284 = vrcp.pop %v1272
        %v1285 = vmul.f32 1.0, %v1284
        %v1286 = vrcp.pop %v1273
        %v1287 = vmul.f32 1.0, %v1286
        %v1288 = vrcp.pop %v1274
        %v1289 = vmul.f32 1.0, %v1288
        %v1290 = vrcp.pop %v1275
        %v1291 = vmul.f32 1.0, %v1290
        %v1292 = vmul.f32 %v1214, %v1277
        %v1293 = vmul.f32 %v1217, %v1279
        %v1294 = vmul.f32 %v1222, %v1281
        %v1295 = vmul.f32 %v1225, %v1283
        %v1296 = vmul.f32 %v1230, %v1285
        %v1297 = vmul.f32 %v1233, %v1287
        %v1298 = vmul.f32 %v1238, %v1289
        %v1299 = vmul.f32 %v1241, %v1291
        %v1300 = vld [vmem:[#allocation8] sm:$0x1]
        %v1301 = vld [vmem:[#allocation10] sm:$0x1]
        %1302 = vadd.xlane.f32.xlu0 %v1292
        %v1303 = vpop.xlane.xlu0 %1302
        %1304 = vadd.xlane.f32.xlu0 %v1293
        %v1305 = vpop.xlane.xlu0 %1304
        %1306 = vadd.xlane.f32.xlu0 %v1294
        %v1307 = vpop.xlane.xlu0 %1306
        %1308 = vadd.xlane.f32.xlu0 %v1295
        %v1309 = vpop.xlane.xlu0 %1308
        %1310 = vadd.xlane.f32.xlu0 %v1296
        %v1311 = vpop.xlane.xlu0 %1310
        %1312 = vadd.xlane.f32.xlu0 %v1297
        %v1313 = vpop.xlane.xlu0 %1312
        %1314 = vadd.xlane.f32.xlu0 %v1298
        %v1315 = vpop.xlane.xlu0 %1314
        %1316 = vadd.xlane.f32.xlu0 %v1299
        %v1317 = vpop.xlane.xlu0 %1316
        %v1318 = vrcp.pop 128.0
        %v1319 = vmul.f32 %v1303, %v1318
        %v1320 = vmul.f32 %v1305, %v1318
        %v1321 = vmul.f32 %v1307, %v1318
        %v1322 = vmul.f32 %v1309, %v1318
        %v1323 = vmul.f32 %v1311, %v1318
        %v1324 = vmul.f32 %v1313, %v1318
        %v1325 = vmul.f32 %v1315, %v1318
        %v1326 = vmul.f32 %v1317, %v1318
        %v1327 = vsub.f32 %v1292, %v1319
        %v1328 = vsub.f32 %v1293, %v1320
        %v1329 = vsub.f32 %v1294, %v1321
        %v1330 = vsub.f32 %v1295, %v1322
        %v1331 = vsub.f32 %v1296, %v1323
        %v1332 = vsub.f32 %v1297, %v1324
        %v1333 = vsub.f32 %v1298, %v1325
        %v1334 = vsub.f32 %v1299, %v1326
        %v1335 = vmul.f32 %v1327, %v1327
        %v1336 = vmul.f32 %v1328, %v1328
        %v1337 = vmul.f32 %v1329, %v1329
        %v1338 = vmul.f32 %v1330, %v1330
        %v1339 = vmul.f32 %v1331, %v1331
        %v1340 = vmul.f32 %v1332, %v1332
        %v1341 = vmul.f32 %v1333, %v1333
        %v1342 = vmul.f32 %v1334, %v1334
        %1343 = vadd.xlane.f32.xlu0 %v1335
        %v1344 = vpop.xlane.xlu0 %1343
        %1345 = vadd.xlane.f32.xlu0 %v1336
        %v1346 = vpop.xlane.xlu0 %1345
        %1347 = vadd.xlane.f32.xlu0 %v1337
        %v1348 = vpop.xlane.xlu0 %1347
        %1349 = vadd.xlane.f32.xlu0 %v1338
        %v1350 = vpop.xlane.xlu0 %1349
        %1351 = vadd.xlane.f32.xlu0 %v1339
        %v1352 = vpop.xlane.xlu0 %1351
        %1353 = vadd.xlane.f32.xlu0 %v1340
        %v1354 = vpop.xlane.xlu0 %1353
        %1355 = vadd.xlane.f32.xlu0 %v1341
        %v1356 = vpop.xlane.xlu0 %1355
        %1357 = vadd.xlane.f32.xlu0 %v1342
        %v1358 = vpop.xlane.xlu0 %1357
        %v1359 = vmul.f32 %v1344, %v1318
        %v1360 = vmul.f32 %v1346, %v1318
        %v1361 = vmul.f32 %v1348, %v1318
        %v1362 = vmul.f32 %v1350, %v1318
        %v1363 = vmul.f32 %v1352, %v1318
        %v1364 = vmul.f32 %v1354, %v1318
        %v1365 = vmul.f32 %v1356, %v1318
        %v1366 = vmul.f32 %v1358, %v1318
        %v1367 = vadd.f32 %v1359, 0.1
        %v1368 = vadd.f32 %v1360, 0.1
        %v1369 = vadd.f32 %v1361, 0.1
        %v1370 = vadd.f32 %v1362, 0.1
        %v1371 = vadd.f32 %v1363, 0.1
        %v1372 = vadd.f32 %v1364, 0.1
        %v1373 = vadd.f32 %v1365, 0.1
        %v1374 = vadd.f32 %v1366, 0.1
        %v1375 = vrsqrt.pop %v1367
        %v1376 = vrsqrt.pop %v1368
        %v1377 = vrsqrt.pop %v1369
        %v1378 = vrsqrt.pop %v1370
        %v1379 = vrsqrt.pop %v1371
        %v1380 = vrsqrt.pop %v1372
        %v1381 = vrsqrt.pop %v1373
        %v1382 = vrsqrt.pop %v1374
        %v1383 = vmul.f32 %v1327, %v1375
        %v1384 = vmul.f32 %v1328, %v1376
        %v1385 = vmul.f32 %v1329, %v1377
        %v1386 = vmul.f32 %v1330, %v1378
        %v1387 = vmul.f32 %v1331, %v1379
        %v1388 = vmul.f32 %v1332, %v1380
        %v1389 = vmul.f32 %v1333, %v1381
        %v1390 = vmul.f32 %v1334, %v1382
        %v1392 = vlaneseq
        %v1393 = vshrl.u32 %v1392, 7
        %v1394 = vsub.s32 0, %v1393
        %v1395 = vrot.slane %v1300, %v1394
        %v1397 = vmul.f32 %v1383, %v1395
        %v1398 = vmul.f32 %v1384, %v1395
        %v1399 = vmul.f32 %v1385, %v1395
        %v1400 = vmul.f32 %v1386, %v1395
        %v1401 = vmul.f32 %v1387, %v1395
        %v1402 = vmul.f32 %v1388, %v1395
        %v1403 = vmul.f32 %v1389, %v1395
        %v1404 = vmul.f32 %v1390, %v1395
        %v1406 = vlaneseq
        %v1407 = vshrl.u32 %v1406, 7
        %v1408 = vsub.s32 0, %v1407
        %v1409 = vrot.slane %v1301, %v1408
        %v1411 = vadd.f32 %v1397, %v1409
        %v1412 = vadd.f32 %v1398, %v1409
        %v1413 = vadd.f32 %v1399, %v1409
        %v1414 = vadd.f32 %v1400, %v1409
        %v1415 = vadd.f32 %v1401, %v1409
        %v1416 = vadd.f32 %v1402, %v1409
        %v1417 = vadd.f32 %v1403, %v1409
        %v1418 = vadd.f32 %v1404, %v1409
        %v1419 = vpack.c.bf16 %v1412, %v1411
        %v1420 = vpack.c.bf16 %v1414, %v1413
        %v1421 = vpack.c.bf16 %v1416, %v1415
        %v1422 = vpack.c.bf16 %v1418, %v1417
        %v1423 = vld [vmem:[#allocation11] sm:$0xf]
        %v1424 = vld [vmem:[#allocation11 + $0x4] sm:$0xf]
        %v1425 = vld [vmem:[#allocation11 + $0x8] sm:$0xf]
        %v1426 = vld [vmem:[#allocation11 + $0xc] sm:$0xf]
        %v1427 = vld [vmem:[#allocation11 + $0x10] sm:$0xf]
        %v1428 = vld [vmem:[#allocation11 + $0x14] sm:$0xf]
        %v1429 = vld [vmem:[#allocation11 + $0x18] sm:$0xf]
        %v1430 = vld [vmem:[#allocation11 + $0x1c] sm:$0xf]
        %v1431 = vld [vmem:[#allocation11 + $0x20] sm:$0xf]
        %v1432 = vld [vmem:[#allocation11 + $0x24] sm:$0xf]
        %v1433 = vld [vmem:[#allocation11 + $0x28] sm:$0xf]
        %v1434 = vld [vmem:[#allocation11 + $0x2c] sm:$0xf]
        %v1435 = vld [vmem:[#allocation11 + $0x30] sm:$0xf]
        %v1436 = vld [vmem:[#allocation11 + $0x34] sm:$0xf]
        %v1437 = vld [vmem:[#allocation11 + $0x38] sm:$0xf]
        %v1438 = vld [vmem:[#allocation11 + $0x3c] sm:$0xf]
        %v1439 = vld [vmem:[#allocation13] sm:$0x1]
        %v1441 = vlaneseq
        %v1442 = vshrl.u32 %v1441, 7
        %v1443 = vsub.s32 0, %v1442
        %v1444 = vrot.slane %v1439, %v1443
        %v1462 = vunpack.c.l.b16 %v1423
        %v1463 = vunpack.c.l.b16 %v1424
        %v1464 = vunpack.c.l.b16 %v1425
        %v1465 = vunpack.c.l.b16 %v1426
        %v1466 = vunpack.c.l.b16 %v1427
        %v1467 = vunpack.c.l.b16 %v1428
        %v1468 = vunpack.c.l.b16 %v1429
        %v1469 = vunpack.c.l.b16 %v1430
        %v1470 = vunpack.c.l.b16 %v1431
        %v1471 = vunpack.c.l.b16 %v1432
        %v1472 = vunpack.c.l.b16 %v1433
        %v1473 = vunpack.c.l.b16 %v1434
        %v1474 = vunpack.c.l.b16 %v1435
        %v1475 = vunpack.c.l.b16 %v1436
        %v1476 = vunpack.c.l.b16 %v1437
        %v1477 = vunpack.c.l.b16 %v1438
        %v1478 = vpack.c.b16 %v1463, %v1462
        %v1479 = vpack.c.b16 %v1465, %v1464
        %v1480 = vpack.c.b16 %v1467, %v1466
        %v1481 = vpack.c.b16 %v1469, %v1468
        %v1482 = vpack.c.b16 %v1471, %v1470
        %v1483 = vpack.c.b16 %v1473, %v1472
        %v1484 = vpack.c.b16 %v1475, %v1474
        %v1485 = vpack.c.b16 %v1477, %v1476
        %1494 = vmatprep.subr.bf16.mxu0 0
        %1495 = vmatpush1.bf16.msra.mxu0 %v1478
        %1496 = vmatprep.subr.bf16.mxu0 0
        %1497 = vmatpush1.bf16.msra.mxu0 %v1479
        %1498 = vmatprep.subr.bf16.mxu0 0
        %1499 = vmatpush1.bf16.msra.mxu0 %v1480
        %1500 = vmatprep.subr.bf16.mxu0 0
        %1501 = vmatpush1.bf16.msra.mxu0 %v1481
        %1502 = vmatprep.subr.bf16.mxu0 0
        %1503 = vmatpush1.bf16.msra.mxu0 %v1482
        %1504 = vmatprep.subr.bf16.mxu0 0
        %1505 = vmatpush1.bf16.msra.mxu0 %v1483
        %1506 = vmatprep.subr.bf16.mxu0 0
        %1507 = vmatpush1.bf16.msra.mxu0 %v1484
        %1508 = vmatprep.subr.bf16.mxu0 0
        %1509 = vmatpush1.bf16.msra.mxu0 %v1485
        %1510 = vmatprep.subr.bf16.mxu0 0
        %1511 = vmatpush1.bf16.msra.mxu0 0
        %1512 = vmatprep.subr.bf16.mxu0 0
        %1513 = vmatpush1.bf16.msra.mxu0 0
        %1514 = vmatprep.subr.bf16.mxu0 0
        %1515 = vmatpush1.bf16.msra.mxu0 0
        %1516 = vmatprep.subr.bf16.mxu0 0
        %1517 = vmatpush1.bf16.msra.mxu0 0
        %1518 = vmatprep.subr.bf16.mxu0 0
        %1519 = vmatpush1.bf16.msra.mxu0 0
        %1520 = vmatprep.subr.bf16.mxu0 0
        %1521 = vmatpush1.bf16.msra.mxu0 0
        %1522 = vmatprep.subr.bf16.mxu0 0
        %1523 = vmatpush1.bf16.msra.mxu0 0
        %1524 = vmatprep.subr.bf16.mxu0 0
        %1525 = vmatpush1.bf16.msra.mxu0 0
        %1526 = vmatprep.mubr.bf16.mxu0 0
        %1527 = vmatmul.mubr.bf16.gmra.mrb[0].mxu0 %v1419
        %v1528 = vpop.f32.mrb[0].mxu0
        %v1529 = vadd.f32 %v1444, %v1528
        %v1530 = vpop.f32.mrb[0].mxu0
        %v1531 = vpop.f32.mrb[0].mxu0
        %v1532 = vadd.f32 %v1444, %v1531
        %v1533 = vpop.f32.mrb[0].mxu0
        %1534 = vmatprep.mubr.bf16.mxu0 0
        %1535 = vmatmul.mubr.bf16.gmra.mrb[0].mxu0 %v1420
        %v1536 = vpop.f32.mrb[0].mxu0
        %v1537 = vadd.f32 %v1444, %v1536
        %v1538 = vpop.f32.mrb[0].mxu0
        %v1539 = vpop.f32.mrb[0].mxu0
        %v1540 = vadd.f32 %v1444, %v1539
        %v1541 = vpop.f32.mrb[0].mxu0
        %1542 = vmatprep.mubr.bf16.mxu0 0
        %1543 = vmatmul.mubr.bf16.gmra.mrb[0].mxu0 %v1421
        %v1544 = vpop.f32.mrb[0].mxu0
        %v1545 = vadd.f32 %v1444, %v1544
        %v1546 = vpop.f32.mrb[0].mxu0
        %v1547 = vpop.f32.mrb[0].mxu0
        %v1548 = vadd.f32 %v1444, %v1547
        %v1549 = vpop.f32.mrb[0].mxu0
        %1550 = vmatprep.mubr.bf16.mxu0 0
        %1551 = vmatmul.mubr.bf16.gmra.mrb[0].mxu0 %v1422
        %v1552 = vpop.f32.mrb[0].mxu0
        %v1553 = vadd.f32 %v1444, %v1552
        %v1554 = vpop.f32.mrb[0].mxu0
        %v1555 = vpop.f32.mrb[0].mxu0
        %v1556 = vadd.f32 %v1444, %v1555
        %v1557 = vpop.f32.mrb[0].mxu0
        %1558 = vdwg.mxu0
        %v1559 = vadd.f32 %v1529, %v1411
        %v1560 = vadd.f32 %v1532, %v1412
        %v1561 = vadd.f32 %v1537, %v1413
        %v1562 = vadd.f32 %v1540, %v1414
        %v1563 = vadd.f32 %v1545, %v1415
        %v1564 = vadd.f32 %v1548, %v1416
        %v1565 = vadd.f32 %v1553, %v1417
        %v1566 = vadd.f32 %v1556, %v1418
        %v1567 = vxor.u32 %v1559, 2147483648
        %v1568 = vxor.u32 %v1560, 2147483648
        %v1569 = vxor.u32 %v1561, 2147483648
        %v1570 = vxor.u32 %v1562, 2147483648
        %v1571 = vxor.u32 %v1563, 2147483648
        %v1572 = vxor.u32 %v1564, 2147483648
        %v1573 = vxor.u32 %v1565, 2147483648
        %v1574 = vxor.u32 %v1566, 2147483648
        %v1575 = vmul.f32 %v1567, 1.442695
        %v1576 = vpow.pop %v1575
        %v1577 = vmul.f32 %v1568, 1.442695
        %v1578 = vpow.pop %v1577
        %v1579 = vmul.f32 %v1569, 1.442695
        %v1580 = vpow.pop %v1579
        %v1581 = vmul.f32 %v1570, 1.442695
        %v1582 = vpow.pop %v1581
        %v1583 = vmul.f32 %v1571, 1.442695
        %v1584 = vpow.pop %v1583
        %v1585 = vmul.f32 %v1572, 1.442695
        %v1586 = vpow.pop %v1585
        %v1587 = vmul.f32 %v1573, 1.442695
        %v1588 = vpow.pop %v1587
        %v1589 = vmul.f32 %v1574, 1.442695
        %v1590 = vpow.pop %v1589
        %v1591 = vadd.f32 %v1576, 1.0
        %v1592 = vadd.f32 %v1578, 1.0
        %v1593 = vadd.f32 %v1580, 1.0
        %v1594 = vadd.f32 %v1582, 1.0
        %v1595 = vadd.f32 %v1584, 1.0
        %v1596 = vadd.f32 %v1586, 1.0
        %v1597 = vadd.f32 %v1588, 1.0
        %v1598 = vadd.f32 %v1590, 1.0
        %v1599 = vrcp.pop %v1591
        %v1600 = vmul.f32 1.0, %v1599
        %v1601 = vrcp.pop %v1592
        %v1602 = vmul.f32 1.0, %v1601
        %v1603 = vrcp.pop %v1593
        %v1604 = vmul.f32 1.0, %v1603
        %v1605 = vrcp.pop %v1594
        %v1606 = vmul.f32 1.0, %v1605
        %v1607 = vrcp.pop %v1595
        %v1608 = vmul.f32 1.0, %v1607
        %v1609 = vrcp.pop %v1596
        %v1610 = vmul.f32 1.0, %v1609
        %v1611 = vrcp.pop %v1597
        %v1612 = vmul.f32 1.0, %v1611
        %v1613 = vrcp.pop %v1598
        %v1614 = vmul.f32 1.0, %v1613
        %v1615 = vmul.f32 %v1559, %v1600
        %v1616 = vmul.f32 %v1560, %v1602
        %v1617 = vmul.f32 %v1561, %v1604
        %v1618 = vmul.f32 %v1562, %v1606
        %v1619 = vmul.f32 %v1563, %v1608
        %v1620 = vmul.f32 %v1564, %v1610
        %v1621 = vmul.f32 %v1565, %v1612
        %v1622 = vmul.f32 %v1566, %v1614
        %v1623 = vld [vmem:[#allocation14] sm:$0x1]
        %v1624 = vld [vmem:[#allocation16] sm:$0x1]
        %1625 = vadd.xlane.f32.xlu0 %v1615
        %v1626 = vpop.xlane.xlu0 %1625
        %1627 = vadd.xlane.f32.xlu0 %v1616
        %v1628 = vpop.xlane.xlu0 %1627
        %1629 = vadd.xlane.f32.xlu0 %v1617
        %v1630 = vpop.xlane.xlu0 %1629
        %1631 = vadd.xlane.f32.xlu0 %v1618
        %v1632 = vpop.xlane.xlu0 %1631
        %1633 = vadd.xlane.f32.xlu0 %v1619
        %v1634 = vpop.xlane.xlu0 %1633
        %1635 = vadd.xlane.f32.xlu0 %v1620
        %v1636 = vpop.xlane.xlu0 %1635
        %1637 = vadd.xlane.f32.xlu0 %v1621
        %v1638 = vpop.xlane.xlu0 %1637
        %1639 = vadd.xlane.f32.xlu0 %v1622
        %v1640 = vpop.xlane.xlu0 %1639
        %v1641 = vmul.f32 %v1626, %v1318
        %v1642 = vmul.f32 %v1628, %v1318
        %v1643 = vmul.f32 %v1630, %v1318
        %v1644 = vmul.f32 %v1632, %v1318
        %v1645 = vmul.f32 %v1634, %v1318
        %v1646 = vmul.f32 %v1636, %v1318
        %v1647 = vmul.f32 %v1638, %v1318
        %v1648 = vmul.f32 %v1640, %v1318
        %v1649 = vsub.f32 %v1615, %v1641
        %v1650 = vsub.f32 %v1616, %v1642
        %v1651 = vsub.f32 %v1617, %v1643
        %v1652 = vsub.f32 %v1618, %v1644
        %v1653 = vsub.f32 %v1619, %v1645
        %v1654 = vsub.f32 %v1620, %v1646
        %v1655 = vsub.f32 %v1621, %v1647
        %v1656 = vsub.f32 %v1622, %v1648
        %v1657 = vmul.f32 %v1649, %v1649
        %v1658 = vmul.f32 %v1650, %v1650
        %v1659 = vmul.f32 %v1651, %v1651
        %v1660 = vmul.f32 %v1652, %v1652
        %v1661 = vmul.f32 %v1653, %v1653
        %v1662 = vmul.f32 %v1654, %v1654
        %v1663 = vmul.f32 %v1655, %v1655
        %v1664 = vmul.f32 %v1656, %v1656
        %1665 = vadd.xlane.f32.xlu0 %v1657
        %v1666 = vpop.xlane.xlu0 %1665
        %1667 = vadd.xlane.f32.xlu0 %v1658
        %v1668 = vpop.xlane.xlu0 %1667
        %1669 = vadd.xlane.f32.xlu0 %v1659
        %v1670 = vpop.xlane.xlu0 %1669
        %1671 = vadd.xlane.f32.xlu0 %v1660
        %v1672 = vpop.xlane.xlu0 %1671
        %1673 = vadd.xlane.f32.xlu0 %v1661
        %v1674 = vpop.xlane.xlu0 %1673
        %1675 = vadd.xlane.f32.xlu0 %v1662
        %v1676 = vpop.xlane.xlu0 %1675
        %1677 = vadd.xlane.f32.xlu0 %v1663
        %v1678 = vpop.xlane.xlu0 %1677
        %1679 = vadd.xlane.f32.xlu0 %v1664
        %v1680 = vpop.xlane.xlu0 %1679
        %v1681 = vmul.f32 %v1666, %v1318
        %v1682 = vmul.f32 %v1668, %v1318
        %v1683 = vmul.f32 %v1670, %v1318
        %v1684 = vmul.f32 %v1672, %v1318
        %v1685 = vmul.f32 %v1674, %v1318
        %v1686 = vmul.f32 %v1676, %v1318
        %v1687 = vmul.f32 %v1678, %v1318
        %v1688 = vmul.f32 %v1680, %v1318
        %v1689 = vadd.f32 %v1681, 0.1
        %v1690 = vadd.f32 %v1682, 0.1
        %v1691 = vadd.f32 %v1683, 0.1
        %v1692 = vadd.f32 %v1684, 0.1
        %v1693 = vadd.f32 %v1685, 0.1
        %v1694 = vadd.f32 %v1686, 0.1
        %v1695 = vadd.f32 %v1687, 0.1
        %v1696 = vadd.f32 %v1688, 0.1
        %v1697 = vrsqrt.pop %v1689
        %v1698 = vrsqrt.pop %v1690
        %v1699 = vrsqrt.pop %v1691
        %v1700 = vrsqrt.pop %v1692
        %v1701 = vrsqrt.pop %v1693
        %v1702 = vrsqrt.pop %v1694
        %v1703 = vrsqrt.pop %v1695
        %v1704 = vrsqrt.pop %v1696
        %v1705 = vmul.f32 %v1649, %v1697
        %v1706 = vmul.f32 %v1650, %v1698
        %v1707 = vmul.f32 %v1651, %v1699
        %v1708 = vmul.f32 %v1652, %v1700
        %v1709 = vmul.f32 %v1653, %v1701
        %v1710 = vmul.f32 %v1654, %v1702
        %v1711 = vmul.f32 %v1655, %v1703
        %v1712 = vmul.f32 %v1656, %v1704
        %v1714 = vlaneseq
        %v1715 = vshrl.u32 %v1714, 7
        %v1716 = vsub.s32 0, %v1715
        %v1717 = vrot.slane %v1623, %v1716
        %v1719 = vmul.f32 %v1705, %v1717
        %v1720 = vmul.f32 %v1706, %v1717
        %v1721 = vmul.f32 %v1707, %v1717
        %v1722 = vmul.f32 %v1708, %v1717
        %v1723 = vmul.f32 %v1709, %v1717
        %v1724 = vmul.f32 %v1710, %v1717
        %v1725 = vmul.f32 %v1711, %v1717
        %v1726 = vmul.f32 %v1712, %v1717
        %v1728 = vlaneseq
        %v1729 = vshrl.u32 %v1728, 7
        %v1730 = vsub.s32 0, %v1729
        %v1731 = vrot.slane %v1624, %v1730
        %v1733 = vadd.f32 %v1719, %v1731
        %v1734 = vadd.f32 %v1720, %v1731
        %v1735 = vadd.f32 %v1721, %v1731
        %v1736 = vadd.f32 %v1722, %v1731
        %v1737 = vadd.f32 %v1723, %v1731
        %v1738 = vadd.f32 %v1724, %v1731
        %v1739 = vadd.f32 %v1725, %v1731
        %v1740 = vadd.f32 %v1726, %v1731
        %v1741 = vadd.f32 %v1411, %v1733
        %v1742 = vadd.f32 %v1412, %v1734
        %v1743 = vadd.f32 %v1413, %v1735
        %v1744 = vadd.f32 %v1414, %v1736
        %v1745 = vadd.f32 %v1415, %v1737
        %v1746 = vadd.f32 %v1416, %v1738
        %v1747 = vadd.f32 %v1417, %v1739
        %v1748 = vadd.f32 %v1418, %v1740
        %v1749 = vpack.c.bf16 %v1734, %v1733
        %v1750 = vpack.c.bf16 %v1736, %v1735
        %v1751 = vpack.c.bf16 %v1738, %v1737
        %v1752 = vpack.c.bf16 %v1740, %v1739
        %v1753 = vld [vmem:[#allocation17] sm:$0xf]
        %v1754 = vld [vmem:[#allocation17 + $0x4] sm:$0xf]
        %v1755 = vld [vmem:[#allocation17 + $0x8] sm:$0xf]
        %v1756 = vld [vmem:[#allocation17 + $0xc] sm:$0xf]
        %v1757 = vld [vmem:[#allocation17 + $0x10] sm:$0xf]
        %v1758 = vld [vmem:[#allocation17 + $0x14] sm:$0xf]
        %v1759 = vld [vmem:[#allocation17 + $0x18] sm:$0xf]
        %v1760 = vld [vmem:[#allocation17 + $0x1c] sm:$0xf]
        %v1761 = vld [vmem:[#allocation17 + $0x20] sm:$0xf]
        %v1762 = vld [vmem:[#allocation17 + $0x24] sm:$0xf]
        %v1763 = vld [vmem:[#allocation17 + $0x28] sm:$0xf]
        %v1764 = vld [vmem:[#allocation17 + $0x2c] sm:$0xf]
        %v1765 = vld [vmem:[#allocation17 + $0x30] sm:$0xf]
        %v1766 = vld [vmem:[#allocation17 + $0x34] sm:$0xf]
        %v1767 = vld [vmem:[#allocation17 + $0x38] sm:$0xf]
        %v1768 = vld [vmem:[#allocation17 + $0x3c] sm:$0xf]
        %v1769 = vld [vmem:[#allocation19] sm:$0x1]
        %v1771 = vlaneseq
        %v1772 = vshrl.u32 %v1771, 7
        %v1773 = vsub.s32 0, %v1772
        %v1774 = vrot.slane %v1769, %v1773
        %v1792 = vunpack.c.l.b16 %v1753
        %v1793 = vunpack.c.l.b16 %v1754
        %v1794 = vunpack.c.l.b16 %v1755
        %v1795 = vunpack.c.l.b16 %v1756
        %v1796 = vunpack.c.l.b16 %v1757
        %v1797 = vunpack.c.l.b16 %v1758
        %v1798 = vunpack.c.l.b16 %v1759
        %v1799 = vunpack.c.l.b16 %v1760
        %v1800 = vunpack.c.l.b16 %v1761
        %v1801 = vunpack.c.l.b16 %v1762
        %v1802 = vunpack.c.l.b16 %v1763
        %v1803 = vunpack.c.l.b16 %v1764
        %v1804 = vunpack.c.l.b16 %v1765
        %v1805 = vunpack.c.l.b16 %v1766
        %v1806 = vunpack.c.l.b16 %v1767
        %v1807 = vunpack.c.l.b16 %v1768
        %v1808 = vpack.c.b16 %v1793, %v1792
        %v1809 = vpack.c.b16 %v1795, %v1794
        %v1810 = vpack.c.b16 %v1797, %v1796
        %v1811 = vpack.c.b16 %v1799, %v1798
        %v1812 = vpack.c.b16 %v1801, %v1800
        %v1813 = vpack.c.b16 %v1803, %v1802
        %v1814 = vpack.c.b16 %v1805, %v1804
        %v1815 = vpack.c.b16 %v1807, %v1806
        %1824 = vmatprep.subr.bf16.mxu0 0
        %1825 = vmatpush1.bf16.msra.mxu0 %v1808
        %1826 = vmatprep.subr.bf16.mxu0 0
        %1827 = vmatpush1.bf16.msra.mxu0 %v1809
        %1828 = vmatprep.subr.bf16.mxu0 0
        %1829 = vmatpush1.bf16.msra.mxu0 %v1810
        %1830 = vmatprep.subr.bf16.mxu0 0
        %1831 = vmatpush1.bf16.msra.mxu0 %v1811
        %1832 = vmatprep.subr.bf16.mxu0 0
        %1833 = vmatpush1.bf16.msra.mxu0 %v1812
        %1834 = vmatprep.subr.bf16.mxu0 0
        %1835 = vmatpush1.bf16.msra.mxu0 %v1813
        %1836 = vmatprep.subr.bf16.mxu0 0
        %1837 = vmatpush1.bf16.msra.mxu0 %v1814
        %1838 = vmatprep.subr.bf16.mxu0 0
        %1839 = vmatpush1.bf16.msra.mxu0 %v1815
        %1840 = vmatprep.subr.bf16.mxu0 0
        %1841 = vmatpush1.bf16.msra.mxu0 0
        %1842 = vmatprep.subr.bf16.mxu0 0
        %1843 = vmatpush1.bf16.msra.mxu0 0
        %1844 = vmatprep.subr.bf16.mxu0 0
        %1845 = vmatpush1.bf16.msra.mxu0 0
        %1846 = vmatprep.subr.bf16.mxu0 0
        %1847 = vmatpush1.bf16.msra.mxu0 0
        %1848 = vmatprep.subr.bf16.mxu0 0
        %1849 = vmatpush1.bf16.msra.mxu0 0
        %1850 = vmatprep.subr.bf16.mxu0 0
        %1851 = vmatpush1.bf16.msra.mxu0 0
        %1852 = vmatprep.subr.bf16.mxu0 0
        %1853 = vmatpush1.bf16.msra.mxu0 0
        %1854 = vmatprep.subr.bf16.mxu0 0
        %1855 = vmatpush1.bf16.msra.mxu0 0
        %1856 = vmatprep.mubr.bf16.mxu0 0
        %1857 = vmatmul.mubr.bf16.gmra.mrb[0].mxu0 %v1749
        %v1858 = vpop.f32.mrb[0].mxu0
        %v1859 = vadd.f32 %v1774, %v1858
        %v1860 = vpop.f32.mrb[0].mxu0
        %v1861 = vpop.f32.mrb[0].mxu0
        %v1862 = vadd.f32 %v1774, %v1861
        %v1863 = vpop.f32.mrb[0].mxu0
        %1864 = vmatprep.mubr.bf16.mxu0 0
        %1865 = vmatmul.mubr.bf16.gmra.mrb[0].mxu0 %v1750
        %v1866 = vpop.f32.mrb[0].mxu0
        %v1867 = vadd.f32 %v1774, %v1866
        %v1868 = vpop.f32.mrb[0].mxu0
        %v1869 = vpop.f32.mrb[0].mxu0
        %v1870 = vadd.f32 %v1774, %v1869
        %v1871 = vpop.f32.mrb[0].mxu0
        %1872 = vmatprep.mubr.bf16.mxu0 0
        %1873 = vmatmul.mubr.bf16.gmra.mrb[0].mxu0 %v1751
        %v1874 = vpop.f32.mrb[0].mxu0
        %v1875 = vadd.f32 %v1774, %v1874
        %v1876 = vpop.f32.mrb[0].mxu0
        %v1877 = vpop.f32.mrb[0].mxu0
        %v1878 = vadd.f32 %v1774, %v1877
        %v1879 = vpop.f32.mrb[0].mxu0
        %1880 = vmatprep.mubr.bf16.mxu0 0
        %1881 = vmatmul.mubr.bf16.gmra.mrb[0].mxu0 %v1752
        %v1882 = vpop.f32.mrb[0].mxu0
        %v1883 = vadd.f32 %v1774, %v1882
        %v1884 = vpop.f32.mrb[0].mxu0
        %v1885 = vpop.f32.mrb[0].mxu0
        %v1886 = vadd.f32 %v1774, %v1885
        %v1887 = vpop.f32.mrb[0].mxu0
        %1888 = vdwg.mxu0
        %v1889 = vadd.f32 %v1859, %v1741
        %v1890 = vadd.f32 %v1862, %v1742
        %v1891 = vadd.f32 %v1867, %v1743
        %v1892 = vadd.f32 %v1870, %v1744
        %v1893 = vadd.f32 %v1875, %v1745
        %v1894 = vadd.f32 %v1878, %v1746
        %v1895 = vadd.f32 %v1883, %v1747
        %v1896 = vadd.f32 %v1886, %v1748
        %v1897 = vxor.u32 %v1889, 2147483648
        %v1898 = vxor.u32 %v1890, 2147483648
        %v1899 = vxor.u32 %v1891, 2147483648
        %v1900 = vxor.u32 %v1892, 2147483648
        %v1901 = vxor.u32 %v1893, 2147483648
        %v1902 = vxor.u32 %v1894, 2147483648
        %v1903 = vxor.u32 %v1895, 2147483648
        %v1904 = vxor.u32 %v1896, 2147483648
        %v1905 = vmul.f32 %v1897, 1.442695
        %v1906 = vpow.pop %v1905
        %v1907 = vmul.f32 %v1898, 1.442695
        %v1908 = vpow.pop %v1907
        %v1909 = vmul.f32 %v1899, 1.442695
        %v1910 = vpow.pop %v1909
        %v1911 = vmul.f32 %v1900, 1.442695
        %v1912 = vpow.pop %v1911
        %v1913 = vmul.f32 %v1901, 1.442695
        %v1914 = vpow.pop %v1913
        %v1915 = vmul.f32 %v1902, 1.442695
        %v1916 = vpow.pop %v1915
        %v1917 = vmul.f32 %v1903, 1.442695
        %v1918 = vpow.pop %v1917
        %v1919 = vmul.f32 %v1904, 1.442695
        %v1920 = vpow.pop %v1919
        %v1921 = vadd.f32 %v1906, 1.0
        %v1922 = vadd.f32 %v1908, 1.0
        %v1923 = vadd.f32 %v1910, 1.0
        %v1924 = vadd.f32 %v1912, 1.0
        %v1925 = vadd.f32 %v1914, 1.0
        %v1926 = vadd.f32 %v1916, 1.0
        %v1927 = vadd.f32 %v1918, 1.0
        %v1928 = vadd.f32 %v1920, 1.0
        %v1929 = vrcp.pop %v1921
        %v1930 = vmul.f32 1.0, %v1929
        %v1931 = vrcp.pop %v1922
        %v1932 = vmul.f32 1.0, %v1931
        %v1933 = vrcp.pop %v1923
        %v1934 = vmul.f32 1.0, %v1933
        %v1935 = vrcp.pop %v1924
        %v1936 = vmul.f32 1.0, %v1935
        %v1937 = vrcp.pop %v1925
        %v1938 = vmul.f32 1.0, %v1937
        %v1939 = vrcp.pop %v1926
        %v1940 = vmul.f32 1.0, %v1939
        %v1941 = vrcp.pop %v1927
        %v1942 = vmul.f32 1.0, %v1941
        %v1943 = vrcp.pop %v1928
        %v1944 = vmul.f32 1.0, %v1943
        %v1945 = vmul.f32 %v1889, %v1930
        %v1946 = vmul.f32 %v1890, %v1932
        %v1947 = vmul.f32 %v1891, %v1934
        %v1948 = vmul.f32 %v1892, %v1936
        %v1949 = vmul.f32 %v1893, %v1938
        %v1950 = vmul.f32 %v1894, %v1940
        %v1951 = vmul.f32 %v1895, %v1942
        %v1952 = vmul.f32 %v1896, %v1944
        %v1953 = vld [vmem:[#allocation20] sm:$0x1]
        %v1954 = vld [vmem:[#allocation22] sm:$0x1]
        %1955 = vadd.xlane.f32.xlu0 %v1945
        %v1956 = vpop.xlane.xlu0 %1955
        %1957 = vadd.xlane.f32.xlu0 %v1946
        %v1958 = vpop.xlane.xlu0 %1957
        %1959 = vadd.xlane.f32.xlu0 %v1947
        %v1960 = vpop.xlane.xlu0 %1959
        %1961 = vadd.xlane.f32.xlu0 %v1948
        %v1962 = vpop.xlane.xlu0 %1961
        %1963 = vadd.xlane.f32.xlu0 %v1949
        %v1964 = vpop.xlane.xlu0 %1963
        %1965 = vadd.xlane.f32.xlu0 %v1950
        %v1966 = vpop.xlane.xlu0 %1965
        %1967 = vadd.xlane.f32.xlu0 %v1951
        %v1968 = vpop.xlane.xlu0 %1967
        %1969 = vadd.xlane.f32.xlu0 %v1952
        %v1970 = vpop.xlane.xlu0 %1969
        %v1971 = vmul.f32 %v1956, %v1318
        %v1972 = vmul.f32 %v1958, %v1318
        %v1973 = vmul.f32 %v1960, %v1318
        %v1974 = vmul.f32 %v1962, %v1318
        %v1975 = vmul.f32 %v1964, %v1318
        %v1976 = vmul.f32 %v1966, %v1318
        %v1977 = vmul.f32 %v1968, %v1318
        %v1978 = vmul.f32 %v1970, %v1318
        %v1979 = vsub.f32 %v1945, %v1971
        %v1980 = vsub.f32 %v1946, %v1972
        %v1981 = vsub.f32 %v1947, %v1973
        %v1982 = vsub.f32 %v1948, %v1974
        %v1983 = vsub.f32 %v1949, %v1975
        %v1984 = vsub.f32 %v1950, %v1976
        %v1985 = vsub.f32 %v1951, %v1977
        %v1986 = vsub.f32 %v1952, %v1978
        %v1987 = vmul.f32 %v1979, %v1979
        %v1988 = vmul.f32 %v1980, %v1980
        %v1989 = vmul.f32 %v1981, %v1981
        %v1990 = vmul.f32 %v1982, %v1982
        %v1991 = vmul.f32 %v1983, %v1983
        %v1992 = vmul.f32 %v1984, %v1984
        %v1993 = vmul.f32 %v1985, %v1985
        %v1994 = vmul.f32 %v1986, %v1986
        %1995 = vadd.xlane.f32.xlu0 %v1987
        %v1996 = vpop.xlane.xlu0 %1995
        %1997 = vadd.xlane.f32.xlu0 %v1988
        %v1998 = vpop.xlane.xlu0 %1997
        %1999 = vadd.xlane.f32.xlu0 %v1989
        %v2000 = vpop.xlane.xlu0 %1999
        %2001 = vadd.xlane.f32.xlu0 %v1990
        %v2002 = vpop.xlane.xlu0 %2001
        %2003 = vadd.xlane.f32.xlu0 %v1991
        %v2004 = vpop.xlane.xlu0 %2003
        %2005 = vadd.xlane.f32.xlu0 %v1992
        %v2006 = vpop.xlane.xlu0 %2005
        %2007 = vadd.xlane.f32.xlu0 %v1993
        %v2008 = vpop.xlane.xlu0 %2007
        %2009 = vadd.xlane.f32.xlu0 %v1994
        %v2010 = vpop.xlane.xlu0 %2009
        %v2011 = vmul.f32 %v1996, %v1318
        %v2012 = vmul.f32 %v1998, %v1318
        %v2013 = vmul.f32 %v2000, %v1318
        %v2014 = vmul.f32 %v2002, %v1318
        %v2015 = vmul.f32 %v2004, %v1318
        %v2016 = vmul.f32 %v2006, %v1318
        %v2017 = vmul.f32 %v2008, %v1318
        %v2018 = vmul.f32 %v2010, %v1318
        %v2019 = vadd.f32 %v2011, 0.1
        %v2020 = vadd.f32 %v2012, 0.1
        %v2021 = vadd.f32 %v2013, 0.1
        %v2022 = vadd.f32 %v2014, 0.1
        %v2023 = vadd.f32 %v2015, 0.1
        %v2024 = vadd.f32 %v2016, 0.1
        %v2025 = vadd.f32 %v2017, 0.1
        %v2026 = vadd.f32 %v2018, 0.1
        %v2027 = vrsqrt.pop %v2019
        %v2028 = vrsqrt.pop %v2020
        %v2029 = vrsqrt.pop %v2021
        %v2030 = vrsqrt.pop %v2022
        %v2031 = vrsqrt.pop %v2023
        %v2032 = vrsqrt.pop %v2024
        %v2033 = vrsqrt.pop %v2025
        %v2034 = vrsqrt.pop %v2026
        %v2035 = vmul.f32 %v1979, %v2027
        %v2036 = vmul.f32 %v1980, %v2028
        %v2037 = vmul.f32 %v1981, %v2029
        %v2038 = vmul.f32 %v1982, %v2030
        %v2039 = vmul.f32 %v1983, %v2031
        %v2040 = vmul.f32 %v1984, %v2032
        %v2041 = vmul.f32 %v1985, %v2033
        %v2042 = vmul.f32 %v1986, %v2034
        %v2044 = vlaneseq
        %v2045 = vshrl.u32 %v2044, 7
        %v2046 = vsub.s32 0, %v2045
        %v2047 = vrot.slane %v1953, %v2046
        %v2049 = vmul.f32 %v2035, %v2047
        %v2050 = vmul.f32 %v2036, %v2047
        %v2051 = vmul.f32 %v2037, %v2047
        %v2052 = vmul.f32 %v2038, %v2047
        %v2053 = vmul.f32 %v2039, %v2047
        %v2054 = vmul.f32 %v2040, %v2047
        %v2055 = vmul.f32 %v2041, %v2047
        %v2056 = vmul.f32 %v2042, %v2047
        %v2058 = vlaneseq
        %v2059 = vshrl.u32 %v2058, 7
        %v2060 = vsub.s32 0, %v2059
        %v2061 = vrot.slane %v1954, %v2060
        %v2063 = vadd.f32 %v2049, %v2061
        %v2064 = vadd.f32 %v2050, %v2061
        %v2065 = vadd.f32 %v2051, %v2061
        %v2066 = vadd.f32 %v2052, %v2061
        %v2067 = vadd.f32 %v2053, %v2061
        %v2068 = vadd.f32 %v2054, %v2061
        %v2069 = vadd.f32 %v2055, %v2061
        %v2070 = vadd.f32 %v2056, %v2061
        %v2071 = vadd.f32 %v1741, %v2063
        %v2072 = vadd.f32 %v1742, %v2064
        %v2073 = vadd.f32 %v1743, %v2065
        %v2074 = vadd.f32 %v1744, %v2066
        %v2075 = vadd.f32 %v1745, %v2067
        %v2076 = vadd.f32 %v1746, %v2068
        %v2077 = vadd.f32 %v1747, %v2069
        %v2078 = vadd.f32 %v1748, %v2070
        %v2079 = vpack.c.bf16 %v2064, %v2063
        %v2080 = vpack.c.bf16 %v2066, %v2065
        %v2081 = vpack.c.bf16 %v2068, %v2067
        %v2082 = vpack.c.bf16 %v2070, %v2069
        %v2083 = vld [vmem:[#allocation23] sm:$0xf]
        %v2084 = vld [vmem:[#allocation23 + $0x4] sm:$0xf]
        %v2085 = vld [vmem:[#allocation23 + $0x8] sm:$0xf]
        %v2086 = vld [vmem:[#allocation23 + $0xc] sm:$0xf]
        %v2087 = vld [vmem:[#allocation23 + $0x10] sm:$0xf]
        %v2088 = vld [vmem:[#allocation23 + $0x14] sm:$0xf]
        %v2089 = vld [vmem:[#allocation23 + $0x18] sm:$0xf]
        %v2090 = vld [vmem:[#allocation23 + $0x1c] sm:$0xf]
        %v2091 = vld [vmem:[#allocation23 + $0x20] sm:$0xf]
        %v2092 = vld [vmem:[#allocation23 + $0x24] sm:$0xf]
        %v2093 = vld [vmem:[#allocation23 + $0x28] sm:$0xf]
        %v2094 = vld [vmem:[#allocation23 + $0x2c] sm:$0xf]
        %v2095 = vld [vmem:[#allocation23 + $0x30] sm:$0xf]
        %v2096 = vld [vmem:[#allocation23 + $0x34] sm:$0xf]
        %v2097 = vld [vmem:[#allocation23 + $0x38] sm:$0xf]
        %v2098 = vld [vmem:[#allocation23 + $0x3c] sm:$0xf]
        %v2099 = vld [vmem:[#allocation25] sm:$0x1]
        %v2101 = vlaneseq
        %v2102 = vshrl.u32 %v2101, 7
        %v2103 = vsub.s32 0, %v2102
        %v2104 = vrot.slane %v2099, %v2103
        %v2122 = vunpack.c.l.b16 %v2083
        %v2123 = vunpack.c.l.b16 %v2084
        %v2124 = vunpack.c.l.b16 %v2085
        %v2125 = vunpack.c.l.b16 %v2086
        %v2126 = vunpack.c.l.b16 %v2087
        %v2127 = vunpack.c.l.b16 %v2088
        %v2128 = vunpack.c.l.b16 %v2089
        %v2129 = vunpack.c.l.b16 %v2090
        %v2130 = vunpack.c.l.b16 %v2091
        %v2131 = vunpack.c.l.b16 %v2092
        %v2132 = vunpack.c.l.b16 %v2093
        %v2133 = vunpack.c.l.b16 %v2094
        %v2134 = vunpack.c.l.b16 %v2095
        %v2135 = vunpack.c.l.b16 %v2096
        %v2136 = vunpack.c.l.b16 %v2097
        %v2137 = vunpack.c.l.b16 %v2098
        %v2138 = vpack.c.b16 %v2123, %v2122
        %v2139 = vpack.c.b16 %v2125, %v2124
        %v2140 = vpack.c.b16 %v2127, %v2126
        %v2141 = vpack.c.b16 %v2129, %v2128
        %v2142 = vpack.c.b16 %v2131, %v2130
        %v2143 = vpack.c.b16 %v2133, %v2132
        %v2144 = vpack.c.b16 %v2135, %v2134
        %v2145 = vpack.c.b16 %v2137, %v2136
        %2154 = vmatprep.subr.bf16.mxu0 0
        %2155 = vmatpush1.bf16.msra.mxu0 %v2138
        %2156 = vmatprep.subr.bf16.mxu0 0
        %2157 = vmatpush1.bf16.msra.mxu0 %v2139
        %2158 = vmatprep.subr.bf16.mxu0 0
        %2159 = vmatpush1.bf16.msra.mxu0 %v2140
        %2160 = vmatprep.subr.bf16.mxu0 0
        %2161 = vmatpush1.bf16.msra.mxu0 %v2141
        %2162 = vmatprep.subr.bf16.mxu0 0
        %2163 = vmatpush1.bf16.msra.mxu0 %v2142
        %2164 = vmatprep.subr.bf16.mxu0 0
        %2165 = vmatpush1.bf16.msra.mxu0 %v2143
        %2166 = vmatprep.subr.bf16.mxu0 0
        %2167 = vmatpush1.bf16.msra.mxu0 %v2144
        %2168 = vmatprep.subr.bf16.mxu0 0
        %2169 = vmatpush1.bf16.msra.mxu0 %v2145
        %2170 = vmatprep.subr.bf16.mxu0 0
        %2171 = vmatpush1.bf16.msra.mxu0 0
        %2172 = vmatprep.subr.bf16.mxu0 0
        %2173 = vmatpush1.bf16.msra.mxu0 0
        %2174 = vmatprep.subr.bf16.mxu0 0
        %2175 = vmatpush1.bf16.msra.mxu0 0
        %2176 = vmatprep.subr.bf16.mxu0 0
        %2177 = vmatpush1.bf16.msra.mxu0 0
        %2178 = vmatprep.subr.bf16.mxu0 0
        %2179 = vmatpush1.bf16.msra.mxu0 0
        %2180 = vmatprep.subr.bf16.mxu0 0
        %2181 = vmatpush1.bf16.msra.mxu0 0
        %2182 = vmatprep.subr.bf16.mxu0 0
        %2183 = vmatpush1.bf16.msra.mxu0 0
        %2184 = vmatprep.subr.bf16.mxu0 0
        %2185 = vmatpush1.bf16.msra.mxu0 0
        %2186 = vmatprep.mubr.bf16.mxu0 0
        %2187 = vmatmul.mubr.bf16.gmra.mrb[0].mxu0 %v2079
        %v2188 = vpop.f32.mrb[0].mxu0
        %v2189 = vadd.f32 %v2104, %v2188
        %v2190 = vpop.f32.mrb[0].mxu0
        %v2191 = vpop.f32.mrb[0].mxu0
        %v2192 = vadd.f32 %v2104, %v2191
        %v2193 = vpop.f32.mrb[0].mxu0
        %2194 = vmatprep.mubr.bf16.mxu0 0
        %2195 = vmatmul.mubr.bf16.gmra.mrb[0].mxu0 %v2080
        %v2196 = vpop.f32.mrb[0].mxu0
        %v2197 = vadd.f32 %v2104, %v2196
        %v2198 = vpop.f32.mrb[0].mxu0
        %v2199 = vpop.f32.mrb[0].mxu0
        %v2200 = vadd.f32 %v2104, %v2199
        %v2201 = vpop.f32.mrb[0].mxu0
        %2202 = vmatprep.mubr.bf16.mxu0 0
        %2203 = vmatmul.mubr.bf16.gmra.mrb[0].mxu0 %v2081
        %v2204 = vpop.f32.mrb[0].mxu0
        %v2205 = vadd.f32 %v2104, %v2204
        %v2206 = vpop.f32.mrb[0].mxu0
        %v2207 = vpop.f32.mrb[0].mxu0
        %v2208 = vadd.f32 %v2104, %v2207
        %v2209 = vpop.f32.mrb[0].mxu0
        %2210 = vmatprep.mubr.bf16.mxu0 0
        %2211 = vmatmul.mubr.bf16.gmra.mrb[0].mxu0 %v2082
        %v2212 = vpop.f32.mrb[0].mxu0
        %v2213 = vadd.f32 %v2104, %v2212
        %v2214 = vpop.f32.mrb[0].mxu0
        %v2215 = vpop.f32.mrb[0].mxu0
        %v2216 = vadd.f32 %v2104, %v2215
        %v2217 = vpop.f32.mrb[0].mxu0
        %2218 = vdwg.mxu0
        %v2219 = vadd.f32 %v2189, %v2071
        %v2220 = vadd.f32 %v2192, %v2072
        %v2221 = vadd.f32 %v2197, %v2073
        %v2222 = vadd.f32 %v2200, %v2074
        %v2223 = vadd.f32 %v2205, %v2075
        %v2224 = vadd.f32 %v2208, %v2076
        %v2225 = vadd.f32 %v2213, %v2077
        %v2226 = vadd.f32 %v2216, %v2078
        %v2227 = vxor.u32 %v2219, 2147483648
        %v2228 = vxor.u32 %v2220, 2147483648
        %v2229 = vxor.u32 %v2221, 2147483648
        %v2230 = vxor.u32 %v2222, 2147483648
        %v2231 = vxor.u32 %v2223, 2147483648
        %v2232 = vxor.u32 %v2224, 2147483648
        %v2233 = vxor.u32 %v2225, 2147483648
        %v2234 = vxor.u32 %v2226, 2147483648
        %v2235 = vmul.f32 %v2227, 1.442695
        %v2236 = vpow.pop %v2235
        %v2237 = vmul.f32 %v2228, 1.442695
        %v2238 = vpow.pop %v2237
        %v2239 = vmul.f32 %v2229, 1.442695
        %v2240 = vpow.pop %v2239
        %v2241 = vmul.f32 %v2230, 1.442695
        %v2242 = vpow.pop %v2241
        %v2243 = vmul.f32 %v2231, 1.442695
        %v2244 = vpow.pop %v2243
        %v2245 = vmul.f32 %v2232, 1.442695
        %v2246 = vpow.pop %v2245
        %v2247 = vmul.f32 %v2233, 1.442695
        %v2248 = vpow.pop %v2247
        %v2249 = vmul.f32 %v2234, 1.442695
        %v2250 = vpow.pop %v2249
        %v2251 = vadd.f32 %v2236, 1.0
        %v2252 = vadd.f32 %v2238, 1.0
        %v2253 = vadd.f32 %v2240, 1.0
        %v2254 = vadd.f32 %v2242, 1.0
        %v2255 = vadd.f32 %v2244, 1.0
        %v2256 = vadd.f32 %v2246, 1.0
        %v2257 = vadd.f32 %v2248, 1.0
        %v2258 = vadd.f32 %v2250, 1.0
        %v2259 = vrcp.pop %v2251
        %v2260 = vmul.f32 1.0, %v2259
        %v2261 = vrcp.pop %v2252
        %v2262 = vmul.f32 1.0, %v2261
        %v2263 = vrcp.pop %v2253
        %v2264 = vmul.f32 1.0, %v2263
        %v2265 = vrcp.pop %v2254
        %v2266 = vmul.f32 1.0, %v2265
        %v2267 = vrcp.pop %v2255
        %v2268 = vmul.f32 1.0, %v2267
        %v2269 = vrcp.pop %v2256
        %v2270 = vmul.f32 1.0, %v2269
        %v2271 = vrcp.pop %v2257
        %v2272 = vmul.f32 1.0, %v2271
        %v2273 = vrcp.pop %v2258
        %v2274 = vmul.f32 1.0, %v2273
        %v2275 = vmul.f32 %v2219, %v2260
        %v2276 = vmul.f32 %v2220, %v2262
        %v2277 = vmul.f32 %v2221, %v2264
        %v2278 = vmul.f32 %v2222, %v2266
        %v2279 = vmul.f32 %v2223, %v2268
        %v2280 = vmul.f32 %v2224, %v2270
        %v2281 = vmul.f32 %v2225, %v2272
        %v2282 = vmul.f32 %v2226, %v2274
        %v2283 = vld [vmem:[#allocation26] sm:$0x1]
        %v2284 = vld [vmem:[#allocation28] sm:$0x1]
        %2285 = vadd.xlane.f32.xlu0 %v2275
        %v2286 = vpop.xlane.xlu0 %2285
        %2287 = vadd.xlane.f32.xlu0 %v2276
        %v2288 = vpop.xlane.xlu0 %2287
        %2289 = vadd.xlane.f32.xlu0 %v2277
        %v2290 = vpop.xlane.xlu0 %2289
        %2291 = vadd.xlane.f32.xlu0 %v2278
        %v2292 = vpop.xlane.xlu0 %2291
        %2293 = vadd.xlane.f32.xlu0 %v2279
        %v2294 = vpop.xlane.xlu0 %2293
        %2295 = vadd.xlane.f32.xlu0 %v2280
        %v2296 = vpop.xlane.xlu0 %2295
        %2297 = vadd.xlane.f32.xlu0 %v2281
        %v2298 = vpop.xlane.xlu0 %2297
        %2299 = vadd.xlane.f32.xlu0 %v2282
        %v2300 = vpop.xlane.xlu0 %2299
        %v2301 = vmul.f32 %v2286, %v1318
        %v2302 = vmul.f32 %v2288, %v1318
        %v2303 = vmul.f32 %v2290, %v1318
        %v2304 = vmul.f32 %v2292, %v1318
        %v2305 = vmul.f32 %v2294, %v1318
        %v2306 = vmul.f32 %v2296, %v1318
        %v2307 = vmul.f32 %v2298, %v1318
        %v2308 = vmul.f32 %v2300, %v1318
        %v2309 = vsub.f32 %v2275, %v2301
        %v2310 = vsub.f32 %v2276, %v2302
        %v2311 = vsub.f32 %v2277, %v2303
        %v2312 = vsub.f32 %v2278, %v2304
        %v2313 = vsub.f32 %v2279, %v2305
        %v2314 = vsub.f32 %v2280, %v2306
        %v2315 = vsub.f32 %v2281, %v2307
        %v2316 = vsub.f32 %v2282, %v2308
        %v2317 = vmul.f32 %v2309, %v2309
        %v2318 = vmul.f32 %v2310, %v2310
        %v2319 = vmul.f32 %v2311, %v2311
        %v2320 = vmul.f32 %v2312, %v2312
        %v2321 = vmul.f32 %v2313, %v2313
        %v2322 = vmul.f32 %v2314, %v2314
        %v2323 = vmul.f32 %v2315, %v2315
        %v2324 = vmul.f32 %v2316, %v2316
        %2325 = vadd.xlane.f32.xlu0 %v2317
        %v2326 = vpop.xlane.xlu0 %2325
        %2327 = vadd.xlane.f32.xlu0 %v2318
        %v2328 = vpop.xlane.xlu0 %2327
        %2329 = vadd.xlane.f32.xlu0 %v2319
        %v2330 = vpop.xlane.xlu0 %2329
        %2331 = vadd.xlane.f32.xlu0 %v2320
        %v2332 = vpop.xlane.xlu0 %2331
        %2333 = vadd.xlane.f32.xlu0 %v2321
        %v2334 = vpop.xlane.xlu0 %2333
        %2335 = vadd.xlane.f32.xlu0 %v2322
        %v2336 = vpop.xlane.xlu0 %2335
        %2337 = vadd.xlane.f32.xlu0 %v2323
        %v2338 = vpop.xlane.xlu0 %2337
        %2339 = vadd.xlane.f32.xlu0 %v2324
        %v2340 = vpop.xlane.xlu0 %2339
        %v2341 = vmul.f32 %v2326, %v1318
        %v2342 = vmul.f32 %v2328, %v1318
        %v2343 = vmul.f32 %v2330, %v1318
        %v2344 = vmul.f32 %v2332, %v1318
        %v2345 = vmul.f32 %v2334, %v1318
        %v2346 = vmul.f32 %v2336, %v1318
        %v2347 = vmul.f32 %v2338, %v1318
        %v2348 = vmul.f32 %v2340, %v1318
        %v2349 = vadd.f32 %v2341, 0.1
        %v2350 = vadd.f32 %v2342, 0.1
        %v2351 = vadd.f32 %v2343, 0.1
        %v2352 = vadd.f32 %v2344, 0.1
        %v2353 = vadd.f32 %v2345, 0.1
        %v2354 = vadd.f32 %v2346, 0.1
        %v2355 = vadd.f32 %v2347, 0.1
        %v2356 = vadd.f32 %v2348, 0.1
        %v2357 = vrsqrt.pop %v2349
        %v2358 = vrsqrt.pop %v2350
        %v2359 = vrsqrt.pop %v2351
        %v2360 = vrsqrt.pop %v2352
        %v2361 = vrsqrt.pop %v2353
        %v2362 = vrsqrt.pop %v2354
        %v2363 = vrsqrt.pop %v2355
        %v2364 = vrsqrt.pop %v2356
        %v2365 = vmul.f32 %v2309, %v2357
        %v2366 = vmul.f32 %v2310, %v2358
        %v2367 = vmul.f32 %v2311, %v2359
        %v2368 = vmul.f32 %v2312, %v2360
        %v2369 = vmul.f32 %v2313, %v2361
        %v2370 = vmul.f32 %v2314, %v2362
        %v2371 = vmul.f32 %v2315, %v2363
        %v2372 = vmul.f32 %v2316, %v2364
        %v2374 = vlaneseq
        %v2375 = vshrl.u32 %v2374, 7
        %v2376 = vsub.s32 0, %v2375
        %v2377 = vrot.slane %v2283, %v2376
        %v2379 = vmul.f32 %v2365, %v2377
        %v2380 = vmul.f32 %v2366, %v2377
        %v2381 = vmul.f32 %v2367, %v2377
        %v2382 = vmul.f32 %v2368, %v2377
        %v2383 = vmul.f32 %v2369, %v2377
        %v2384 = vmul.f32 %v2370, %v2377
        %v2385 = vmul.f32 %v2371, %v2377
        %v2386 = vmul.f32 %v2372, %v2377
        %v2388 = vlaneseq
        %v2389 = vshrl.u32 %v2388, 7
        %v2390 = vsub.s32 0, %v2389
        %v2391 = vrot.slane %v2284, %v2390
        %v2393 = vadd.f32 %v2379, %v2391
        %v2394 = vadd.f32 %v2380, %v2391
        %v2395 = vadd.f32 %v2381, %v2391
        %v2396 = vadd.f32 %v2382, %v2391
        %v2397 = vadd.f32 %v2383, %v2391
        %v2398 = vadd.f32 %v2384, %v2391
        %v2399 = vadd.f32 %v2385, %v2391
        %v2400 = vadd.f32 %v2386, %v2391
        %v2401 = vadd.f32 %v2071, %v2393
        %v2402 = vadd.f32 %v2072, %v2394
        %v2403 = vadd.f32 %v2073, %v2395
        %v2404 = vadd.f32 %v2074, %v2396
        %v2405 = vadd.f32 %v2075, %v2397
        %v2406 = vadd.f32 %v2076, %v2398
        %v2407 = vadd.f32 %v2077, %v2399
        %v2408 = vadd.f32 %v2078, %v2400
        %v2409 = vpack.c.bf16 %v2394, %v2393
        %v2410 = vpack.c.bf16 %v2396, %v2395
        %v2411 = vpack.c.bf16 %v2398, %v2397
        %v2412 = vpack.c.bf16 %v2400, %v2399
        %v2413 = vld [vmem:[%s17] sm:$0xf]
        %v2414 = vld [vmem:[%s17 + $0x4] sm:$0xf]
        %v2415 = vld [vmem:[%s17 + $0x8] sm:$0xf]
        %v2416 = vld [vmem:[%s17 + $0xc] sm:$0xf]
        %v2417 = vld [vmem:[%s17 + $0x10] sm:$0xf]
        %v2418 = vld [vmem:[%s17 + $0x14] sm:$0xf]
        %v2419 = vld [vmem:[%s17 + $0x18] sm:$0xf]
        %v2420 = vld [vmem:[%s17 + $0x1c] sm:$0xf]
        %v2421 = vld [vmem:[%s17 + $0x20] sm:$0xf]
        %v2422 = vld [vmem:[%s17 + $0x24] sm:$0xf]
        %v2423 = vld [vmem:[%s17 + $0x28] sm:$0xf]
        %v2424 = vld [vmem:[%s17 + $0x2c] sm:$0xf]
        %v2425 = vld [vmem:[%s17 + $0x30] sm:$0xf]
        %v2426 = vld [vmem:[%s17 + $0x34] sm:$0xf]
        %v2427 = vld [vmem:[%s17 + $0x38] sm:$0xf]
        %v2428 = vld [vmem:[%s17 + $0x3c] sm:$0xf]
        %v2429 = vld [vmem:[%s18] sm:$0x1]
        %v2431 = vlaneseq
        %v2432 = vshrl.u32 %v2431, 7
        %v2433 = vsub.s32 0, %v2432
        %v2434 = vrot.slane %v2429, %v2433
        %v2452 = vunpack.c.l.b16 %v2413
        %v2453 = vunpack.c.l.b16 %v2414
        %v2454 = vunpack.c.l.b16 %v2415
        %v2455 = vunpack.c.l.b16 %v2416
        %v2456 = vunpack.c.l.b16 %v2417
        %v2457 = vunpack.c.l.b16 %v2418
        %v2458 = vunpack.c.l.b16 %v2419
        %v2459 = vunpack.c.l.b16 %v2420
        %v2460 = vunpack.c.l.b16 %v2421
        %v2461 = vunpack.c.l.b16 %v2422
        %v2462 = vunpack.c.l.b16 %v2423
        %v2463 = vunpack.c.l.b16 %v2424
        %v2464 = vunpack.c.l.b16 %v2425
        %v2465 = vunpack.c.l.b16 %v2426
        %v2466 = vunpack.c.l.b16 %v2427
        %v2467 = vunpack.c.l.b16 %v2428
        %v2468 = vpack.c.b16 %v2453, %v2452
        %v2469 = vpack.c.b16 %v2455, %v2454
        %v2470 = vpack.c.b16 %v2457, %v2456
        %v2471 = vpack.c.b16 %v2459, %v2458
        %v2472 = vpack.c.b16 %v2461, %v2460
        %v2473 = vpack.c.b16 %v2463, %v2462
        %v2474 = vpack.c.b16 %v2465, %v2464
        %v2475 = vpack.c.b16 %v2467, %v2466
        %2484 = vmatprep.subr.bf16.mxu0 0
        %2485 = vmatpush1.bf16.msra.mxu0 %v2468
        %2486 = vmatprep.subr.bf16.mxu0 0
        %2487 = vmatpush1.bf16.msra.mxu0 %v2469
        %2488 = vmatprep.subr.bf16.mxu0 0
        %2489 = vmatpush1.bf16.msra.mxu0 %v2470
        %2490 = vmatprep.subr.bf16.mxu0 0
        %2491 = vmatpush1.bf16.msra.mxu0 %v2471
        %2492 = vmatprep.subr.bf16.mxu0 0
        %2493 = vmatpush1.bf16.msra.mxu0 %v2472
        %2494 = vmatprep.subr.bf16.mxu0 0
        %2495 = vmatpush1.bf16.msra.mxu0 %v2473
        %2496 = vmatprep.subr.bf16.mxu0 0
        %2497 = vmatpush1.bf16.msra.mxu0 %v2474
        %2498 = vmatprep.subr.bf16.mxu0 0
        %2499 = vmatpush1.bf16.msra.mxu0 %v2475
        %2500 = vmatprep.subr.bf16.mxu0 0
        %2501 = vmatpush1.bf16.msra.mxu0 0
        %2502 = vmatprep.subr.bf16.mxu0 0
        %2503 = vmatpush1.bf16.msra.mxu0 0
        %2504 = vmatprep.subr.bf16.mxu0 0
        %2505 = vmatpush1.bf16.msra.mxu0 0
        %2506 = vmatprep.subr.bf16.mxu0 0
        %2507 = vmatpush1.bf16.msra.mxu0 0
        %2508 = vmatprep.subr.bf16.mxu0 0
        %2509 = vmatpush1.bf16.msra.mxu0 0
        %2510 = vmatprep.subr.bf16.mxu0 0
        %2511 = vmatpush1.bf16.msra.mxu0 0
        %2512 = vmatprep.subr.bf16.mxu0 0
        %2513 = vmatpush1.bf16.msra.mxu0 0
        %2514 = vmatprep.subr.bf16.mxu0 0
        %2515 = vmatpush1.bf16.msra.mxu0 0
        %2516 = vmatprep.mubr.bf16.mxu0 0
        %2517 = vmatmul.mubr.bf16.gmra.mrb[0].mxu0 %v2409
        %v2518 = vpop.f32.mrb[0].mxu0
        %v2519 = vadd.f32 %v2434, %v2518
        %v2520 = vpop.f32.mrb[0].mxu0
        %v2521 = vpop.f32.mrb[0].mxu0
        %v2522 = vadd.f32 %v2434, %v2521
        %v2523 = vpop.f32.mrb[0].mxu0
        %2524 = vmatprep.mubr.bf16.mxu0 0
        %2525 = vmatmul.mubr.bf16.gmra.mrb[0].mxu0 %v2410
        %v2526 = vpop.f32.mrb[0].mxu0
        %v2527 = vadd.f32 %v2434, %v2526
        %v2528 = vpop.f32.mrb[0].mxu0
        %v2529 = vpop.f32.mrb[0].mxu0
        %v2530 = vadd.f32 %v2434, %v2529
        %v2531 = vpop.f32.mrb[0].mxu0
        %2532 = vmatprep.mubr.bf16.mxu0 0
        %2533 = vmatmul.mubr.bf16.gmra.mrb[0].mxu0 %v2411
        %v2534 = vpop.f32.mrb[0].mxu0
        %v2535 = vadd.f32 %v2434, %v2534
        %v2536 = vpop.f32.mrb[0].mxu0
        %v2537 = vpop.f32.mrb[0].mxu0
        %v2538 = vadd.f32 %v2434, %v2537
        %v2539 = vpop.f32.mrb[0].mxu0
        %2540 = vmatprep.mubr.bf16.mxu0 0
        %2541 = vmatmul.mubr.bf16.gmra.mrb[0].mxu0 %v2412
        %v2542 = vpop.f32.mrb[0].mxu0
        %v2543 = vadd.f32 %v2434, %v2542
        %v2544 = vpop.f32.mrb[0].mxu0
        %v2545 = vpop.f32.mrb[0].mxu0
        %v2546 = vadd.f32 %v2434, %v2545
        %v2547 = vpop.f32.mrb[0].mxu0
        %2548 = vdwg.mxu0
        %v2549 = vadd.f32 %v2519, %v2401
        %v2550 = vadd.f32 %v2522, %v2402
        %v2551 = vadd.f32 %v2527, %v2403
        %v2552 = vadd.f32 %v2530, %v2404
        %v2553 = vadd.f32 %v2535, %v2405
        %v2554 = vadd.f32 %v2538, %v2406
        %v2555 = vadd.f32 %v2543, %v2407
        %v2556 = vadd.f32 %v2546, %v2408
        %v2557 = vxor.u32 %v2549, 2147483648
        %v2558 = vxor.u32 %v2550, 2147483648
        %v2559 = vxor.u32 %v2551, 2147483648
        %v2560 = vxor.u32 %v2552, 2147483648
        %v2561 = vxor.u32 %v2553, 2147483648
        %v2562 = vxor.u32 %v2554, 2147483648
        %v2563 = vxor.u32 %v2555, 2147483648
        %v2564 = vxor.u32 %v2556, 2147483648
        %v2565 = vmul.f32 %v2557, 1.442695
        %v2566 = vpow.pop %v2565
        %v2567 = vmul.f32 %v2558, 1.442695
        %v2568 = vpow.pop %v2567
        %v2569 = vmul.f32 %v2559, 1.442695
        %v2570 = vpow.pop %v2569
        %v2571 = vmul.f32 %v2560, 1.442695
        %v2572 = vpow.pop %v2571
        %v2573 = vmul.f32 %v2561, 1.442695
        %v2574 = vpow.pop %v2573
        %v2575 = vmul.f32 %v2562, 1.442695
        %v2576 = vpow.pop %v2575
        %v2577 = vmul.f32 %v2563, 1.442695
        %v2578 = vpow.pop %v2577
        %v2579 = vmul.f32 %v2564, 1.442695
        %v2580 = vpow.pop %v2579
        %v2581 = vadd.f32 %v2566, 1.0
        %v2582 = vadd.f32 %v2568, 1.0
        %v2583 = vadd.f32 %v2570, 1.0
        %v2584 = vadd.f32 %v2572, 1.0
        %v2585 = vadd.f32 %v2574, 1.0
        %v2586 = vadd.f32 %v2576, 1.0
        %v2587 = vadd.f32 %v2578, 1.0
        %v2588 = vadd.f32 %v2580, 1.0
        %v2589 = vrcp.pop %v2581
        %v2590 = vmul.f32 1.0, %v2589
        %v2591 = vrcp.pop %v2582
        %v2592 = vmul.f32 1.0, %v2591
        %v2593 = vrcp.pop %v2583
        %v2594 = vmul.f32 1.0, %v2593
        %v2595 = vrcp.pop %v2584
        %v2596 = vmul.f32 1.0, %v2595
        %v2597 = vrcp.pop %v2585
        %v2598 = vmul.f32 1.0, %v2597
        %v2599 = vrcp.pop %v2586
        %v2600 = vmul.f32 1.0, %v2599
        %v2601 = vrcp.pop %v2587
        %v2602 = vmul.f32 1.0, %v2601
        %v2603 = vrcp.pop %v2588
        %v2604 = vmul.f32 1.0, %v2603
        %v2605 = vmul.f32 %v2549, %v2590
        %v2606 = vmul.f32 %v2550, %v2592
        %v2607 = vmul.f32 %v2551, %v2594
        %v2608 = vmul.f32 %v2552, %v2596
        %v2609 = vmul.f32 %v2553, %v2598
        %v2610 = vmul.f32 %v2554, %v2600
        %v2611 = vmul.f32 %v2555, %v2602
        %v2612 = vmul.f32 %v2556, %v2604
        %v2613 = vld [vmem:[%s19] sm:$0x1]
        %v2614 = vld [vmem:[%s20] sm:$0x1]
        %2615 = vadd.xlane.f32.xlu0 %v2605
        %v2616 = vpop.xlane.xlu0 %2615
        %2617 = vadd.xlane.f32.xlu0 %v2606
        %v2618 = vpop.xlane.xlu0 %2617
        %2619 = vadd.xlane.f32.xlu0 %v2607
        %v2620 = vpop.xlane.xlu0 %2619
        %2621 = vadd.xlane.f32.xlu0 %v2608
        %v2622 = vpop.xlane.xlu0 %2621
        %2623 = vadd.xlane.f32.xlu0 %v2609
        %v2624 = vpop.xlane.xlu0 %2623
        %2625 = vadd.xlane.f32.xlu0 %v2610
        %v2626 = vpop.xlane.xlu0 %2625
        %2627 = vadd.xlane.f32.xlu0 %v2611
        %v2628 = vpop.xlane.xlu0 %2627
        %2629 = vadd.xlane.f32.xlu0 %v2612
        %v2630 = vpop.xlane.xlu0 %2629
        %v2631 = vmul.f32 %v2616, %v1318
        %v2632 = vmul.f32 %v2618, %v1318
        %v2633 = vmul.f32 %v2620, %v1318
        %v2634 = vmul.f32 %v2622, %v1318
        %v2635 = vmul.f32 %v2624, %v1318
        %v2636 = vmul.f32 %v2626, %v1318
        %v2637 = vmul.f32 %v2628, %v1318
        %v2638 = vmul.f32 %v2630, %v1318
        %v2639 = vsub.f32 %v2605, %v2631
        %v2640 = vsub.f32 %v2606, %v2632
        %v2641 = vsub.f32 %v2607, %v2633
        %v2642 = vsub.f32 %v2608, %v2634
        %v2643 = vsub.f32 %v2609, %v2635
        %v2644 = vsub.f32 %v2610, %v2636
        %v2645 = vsub.f32 %v2611, %v2637
        %v2646 = vsub.f32 %v2612, %v2638
        %v2647 = vmul.f32 %v2639, %v2639
        %v2648 = vmul.f32 %v2640, %v2640
        %v2649 = vmul.f32 %v2641, %v2641
        %v2650 = vmul.f32 %v2642, %v2642
        %v2651 = vmul.f32 %v2643, %v2643
        %v2652 = vmul.f32 %v2644, %v2644
        %v2653 = vmul.f32 %v2645, %v2645
        %v2654 = vmul.f32 %v2646, %v2646
        %2655 = vadd.xlane.f32.xlu0 %v2647
        %v2656 = vpop.xlane.xlu0 %2655
        %2657 = vadd.xlane.f32.xlu0 %v2648
        %v2658 = vpop.xlane.xlu0 %2657
        %2659 = vadd.xlane.f32.xlu0 %v2649
        %v2660 = vpop.xlane.xlu0 %2659
        %2661 = vadd.xlane.f32.xlu0 %v2650
        %v2662 = vpop.xlane.xlu0 %2661
        %2663 = vadd.xlane.f32.xlu0 %v2651
        %v2664 = vpop.xlane.xlu0 %2663
        %2665 = vadd.xlane.f32.xlu0 %v2652
        %v2666 = vpop.xlane.xlu0 %2665
        %2667 = vadd.xlane.f32.xlu0 %v2653
        %v2668 = vpop.xlane.xlu0 %2667
        %2669 = vadd.xlane.f32.xlu0 %v2654
        %v2670 = vpop.xlane.xlu0 %2669
        %v2671 = vmul.f32 %v2656, %v1318
        %v2672 = vmul.f32 %v2658, %v1318
        %v2673 = vmul.f32 %v2660, %v1318
        %v2674 = vmul.f32 %v2662, %v1318
        %v2675 = vmul.f32 %v2664, %v1318
        %v2676 = vmul.f32 %v2666, %v1318
        %v2677 = vmul.f32 %v2668, %v1318
        %v2678 = vmul.f32 %v2670, %v1318
        %v2679 = vadd.f32 %v2671, 0.1
        %v2680 = vadd.f32 %v2672, 0.1
        %v2681 = vadd.f32 %v2673, 0.1
        %v2682 = vadd.f32 %v2674, 0.1
        %v2683 = vadd.f32 %v2675, 0.1
        %v2684 = vadd.f32 %v2676, 0.1
        %v2685 = vadd.f32 %v2677, 0.1
        %v2686 = vadd.f32 %v2678, 0.1
        %v2687 = vrsqrt.pop %v2679
        %v2688 = vrsqrt.pop %v2680
        %v2689 = vrsqrt.pop %v2681
        %v2690 = vrsqrt.pop %v2682
        %v2691 = vrsqrt.pop %v2683
        %v2692 = vrsqrt.pop %v2684
        %v2693 = vrsqrt.pop %v2685
        %v2694 = vrsqrt.pop %v2686
        %v2695 = vmul.f32 %v2639, %v2687
        %v2696 = vmul.f32 %v2640, %v2688
        %v2697 = vmul.f32 %v2641, %v2689
        %v2698 = vmul.f32 %v2642, %v2690
        %v2699 = vmul.f32 %v2643, %v2691
        %v2700 = vmul.f32 %v2644, %v2692
        %v2701 = vmul.f32 %v2645, %v2693
        %v2702 = vmul.f32 %v2646, %v2694
        %v2704 = vlaneseq
        %v2705 = vshrl.u32 %v2704, 7
        %v2706 = vsub.s32 0, %v2705
        %v2707 = vrot.slane %v2613, %v2706
        %v2709 = vmul.f32 %v2695, %v2707
        %v2710 = vmul.f32 %v2696, %v2707
        %v2711 = vmul.f32 %v2697, %v2707
        %v2712 = vmul.f32 %v2698, %v2707
        %v2713 = vmul.f32 %v2699, %v2707
        %v2714 = vmul.f32 %v2700, %v2707
        %v2715 = vmul.f32 %v2701, %v2707
        %v2716 = vmul.f32 %v2702, %v2707
        %v2718 = vlaneseq
        %v2719 = vshrl.u32 %v2718, 7
        %v2720 = vsub.s32 0, %v2719
        %v2721 = vrot.slane %v2614, %v2720
        %v2723 = vadd.f32 %v2709, %v2721
        %v2724 = vadd.f32 %v2710, %v2721
        %v2725 = vadd.f32 %v2711, %v2721
        %v2726 = vadd.f32 %v2712, %v2721
        %v2727 = vadd.f32 %v2713, %v2721
        %v2728 = vadd.f32 %v2714, %v2721
        %v2729 = vadd.f32 %v2715, %v2721
        %v2730 = vadd.f32 %v2716, %v2721
        %v2731 = vpack.c.bf16 %v2724, %v2723
        %v2732 = vpack.c.bf16 %v2726, %v2725
        %v2733 = vpack.c.bf16 %v2728, %v2727
        %v2734 = vpack.c.bf16 %v2730, %v2729
        %v2735 = vld [vmem:[#allocation29] sm:$0xf]
        %v2736 = vld [vmem:[#allocation29 + $0x4] sm:$0xf]
        %v2737 = vld [vmem:[#allocation29 + $0x8] sm:$0xf]
        %v2738 = vld [vmem:[#allocation29 + $0xc] sm:$0xf]
        %v2739 = vld [vmem:[#allocation29 + $0x10] sm:$0xf]
        %v2740 = vld [vmem:[#allocation29 + $0x14] sm:$0xf]
        %v2741 = vld [vmem:[#allocation29 + $0x18] sm:$0xf]
        %v2742 = vld [vmem:[#allocation29 + $0x1c] sm:$0xf]
        %v2743 = vld [vmem:[#allocation29 + $0x20] sm:$0xf]
        %v2744 = vld [vmem:[#allocation29 + $0x24] sm:$0xf]
        %v2745 = vld [vmem:[#allocation29 + $0x28] sm:$0xf]
        %v2746 = vld [vmem:[#allocation29 + $0x2c] sm:$0xf]
        %v2747 = vld [vmem:[#allocation29 + $0x30] sm:$0xf]
        %v2748 = vld [vmem:[#allocation29 + $0x34] sm:$0xf]
        %v2749 = vld [vmem:[#allocation29 + $0x38] sm:$0xf]
        %v2750 = vld [vmem:[#allocation29 + $0x3c] sm:$0xf]
        %v2751 = vld [vmem:[%s22] sm:$0x1]
        %v2753 = vlaneseq
        %v2754 = vshrl.u32 %v2753, 7
        %v2755 = vsub.s32 0, %v2754
        %v2756 = vrot.slane %v2751, %v2755
        %v2774 = vunpack.c.l.b16 %v2735
        %v2775 = vunpack.c.l.b16 %v2736
        %v2776 = vunpack.c.l.b16 %v2737
        %v2777 = vunpack.c.l.b16 %v2738
        %v2778 = vunpack.c.l.b16 %v2739
        %v2779 = vunpack.c.l.b16 %v2740
        %v2780 = vunpack.c.l.b16 %v2741
        %v2781 = vunpack.c.l.b16 %v2742
        %v2782 = vunpack.c.l.b16 %v2743
        %v2783 = vunpack.c.l.b16 %v2744
        %v2784 = vunpack.c.l.b16 %v2745
        %v2785 = vunpack.c.l.b16 %v2746
        %v2786 = vunpack.c.l.b16 %v2747
        %v2787 = vunpack.c.l.b16 %v2748
        %v2788 = vunpack.c.l.b16 %v2749
        %v2789 = vunpack.c.l.b16 %v2750
        %v2790 = vpack.c.b16 %v2775, %v2774
        %v2791 = vpack.c.b16 %v2777, %v2776
        %v2792 = vpack.c.b16 %v2779, %v2778
        %v2793 = vpack.c.b16 %v2781, %v2780
        %v2794 = vpack.c.b16 %v2783, %v2782
        %v2795 = vpack.c.b16 %v2785, %v2784
        %v2796 = vpack.c.b16 %v2787, %v2786
        %v2797 = vpack.c.b16 %v2789, %v2788
        %2806 = vmatprep.subr.bf16.mxu0 0
        %2807 = vmatpush1.bf16.msra.mxu0 %v2790
        %2808 = vmatprep.subr.bf16.mxu0 0
        %2809 = vmatpush1.bf16.msra.mxu0 %v2791
        %2810 = vmatprep.subr.bf16.mxu0 0
        %2811 = vmatpush1.bf16.msra.mxu0 %v2792
        %2812 = vmatprep.subr.bf16.mxu0 0
        %2813 = vmatpush1.bf16.msra.mxu0 %v2793
        %2814 = vmatprep.subr.bf16.mxu0 0
        %2815 = vmatpush1.bf16.msra.mxu0 %v2794
        %2816 = vmatprep.subr.bf16.mxu0 0
        %2817 = vmatpush1.bf16.msra.mxu0 %v2795
        %2818 = vmatprep.subr.bf16.mxu0 0
        %2819 = vmatpush1.bf16.msra.mxu0 %v2796
        %2820 = vmatprep.subr.bf16.mxu0 0
        %2821 = vmatpush1.bf16.msra.mxu0 %v2797
        %2822 = vmatprep.subr.bf16.mxu0 0
        %2823 = vmatpush1.bf16.msra.mxu0 0
        %2824 = vmatprep.subr.bf16.mxu0 0
        %2825 = vmatpush1.bf16.msra.mxu0 0
        %2826 = vmatprep.subr.bf16.mxu0 0
        %2827 = vmatpush1.bf16.msra.mxu0 0
        %2828 = vmatprep.subr.bf16.mxu0 0
        %2829 = vmatpush1.bf16.msra.mxu0 0
        %2830 = vmatprep.subr.bf16.mxu0 0
        %2831 = vmatpush1.bf16.msra.mxu0 0
        %2832 = vmatprep.subr.bf16.mxu0 0
        %2833 = vmatpush1.bf16.msra.mxu0 0
        %2834 = vmatprep.subr.bf16.mxu0 0
        %2835 = vmatpush1.bf16.msra.mxu0 0
        %2836 = vmatprep.subr.bf16.mxu0 0
        %2837 = vmatpush1.bf16.msra.mxu0 0
        %2838 = vmatprep.mubr.bf16.mxu0 0
        %2839 = vmatmul.mubr.bf16.gmra.mrb[0].mxu0 %v2731
        %v2840 = vpop.f32.mrb[0].mxu0
        %v2841 = vadd.f32 %v2756, %v2840
        %v2842 = vpop.f32.mrb[0].mxu0
        %v2843 = vpop.f32.mrb[0].mxu0
        %v2844 = vadd.f32 %v2756, %v2843
        %v2845 = vpop.f32.mrb[0].mxu0
        %2846 = vmatprep.mubr.bf16.mxu0 0
        %2847 = vmatmul.mubr.bf16.gmra.mrb[0].mxu0 %v2732
        %v2848 = vpop.f32.mrb[0].mxu0
        %v2849 = vadd.f32 %v2756, %v2848
        %v2850 = vpop.f32.mrb[0].mxu0
        %v2851 = vpop.f32.mrb[0].mxu0
        %v2852 = vadd.f32 %v2756, %v2851
        %v2853 = vpop.f32.mrb[0].mxu0
        %2854 = vmatprep.mubr.bf16.mxu0 0
        %2855 = vmatmul.mubr.bf16.gmra.mrb[0].mxu0 %v2733
        %v2856 = vpop.f32.mrb[0].mxu0
        %v2857 = vadd.f32 %v2756, %v2856
        %v2858 = vpop.f32.mrb[0].mxu0
        %v2859 = vpop.f32.mrb[0].mxu0
        %v2860 = vadd.f32 %v2756, %v2859
        %v2861 = vpop.f32.mrb[0].mxu0
        %2862 = vmatprep.mubr.bf16.mxu0 0
        %2863 = vmatmul.mubr.bf16.gmra.mrb[0].mxu0 %v2734
        %v2864 = vpop.f32.mrb[0].mxu0
        %v2865 = vadd.f32 %v2756, %v2864
        %v2866 = vpop.f32.mrb[0].mxu0
        %v2867 = vpop.f32.mrb[0].mxu0
        %v2868 = vadd.f32 %v2756, %v2867
        %v2869 = vpop.f32.mrb[0].mxu0
        %2870 = vdwg.mxu0
        %2871 = vst [vmem:[%s952] sm:$0xff] %v2841
        %2872 = vst [vmem:[%s952 + $0x8] sm:$0xff] %v2844
        %2873 = vst [vmem:[%s952 + $0x10] sm:$0xff] %v2849
        %2874 = vst [vmem:[%s952 + $0x18] sm:$0xff] %v2852
        %2875 = vst [vmem:[%s952 + $0x20] sm:$0xff] %v2857
        %2876 = vst [vmem:[%s952 + $0x28] sm:$0xff] %v2860
        %2877 = vst [vmem:[%s952 + $0x30] sm:$0xff] %v2865
        %2878 = vst [vmem:[%s952 + $0x38] sm:$0xff] %v2868
        %s2879 = sand.u32 %s545, 1
        %s2880 = scalar_lea.sflag [#allocation4], %s2879
        %s2881 = sand.u32 %s545, 1
        %s2882 = smul.addr %s2881, 64
        %s2883 = scalar_lea.vmem [#allocation31], %s2882
        // Predicated region
        $region185: #{tpu_custom_call.1} parent=111 // pred_check
          %p2884 = pneg %p555
        $region186: #{tpu_custom_call.1} parent=111 // pred_check_branch
          %2886 = sbr.rel (%p2884) target = $region188
        $region187: #{tpu_custom_call.1} parent=111 // pred_region
          %s2887 = smul.u32 8, %s49
          %s2889 = ssub.s32 1024, 1024
          %2890 = vsyncadd %s2880, %s2889
          %s2891 = smul.addr %s2887, 128
          %s2892 = scalar_lea.hbm %s23, %s2891
          %s2893 = sshll.u32 %s2883, 4
          %s2894 = int_to_ptr.vmem [resolvable:$true] %s2893
          %2899 = dma.vmem_to_hbm [thread:$0]  %s2894, 1024, %s2892, %s2880, 128, 128, 8
        $region188: #{tpu_custom_call.1} parent=111 // pred_fallthru
          _
      $region112: #{tpu_custom_call.1} parent=5 // pred_fallthru
        _
      %p2900 = scmp.le.s32.totalorder 2, %s44
      // Predicated region
      $region189: #{tpu_custom_call.1} parent=5 // pred_check
        %p2901 = pneg %p2900
      $region190: #{tpu_custom_call.1} parent=5 // pred_check_branch
        %2903 = sbr.rel (%p2901) target = $region192
      $region191: #{tpu_custom_call.1} parent=5 // pred_region
        %s2904 = ssub.s32 %s44, 2
        // Predicated region
        $region193: #{tpu_custom_call.1} parent=191 // pred_check
          %p2905 = pneg %p561
        $region194: #{tpu_custom_call.1} parent=191 // pred_check_branch
          %2907 = sbr.rel (%p2905) target = $region196
        $region195: #{tpu_custom_call.1} parent=191 // pred_region
          %s2908 = sand.u32 %s546, 1
          %s2909 = scalar_lea.sflag [#allocation4], %s2908
          %s2910 = sand.u32 %s546, 1
          %s2911 = smul.addr %s2910, 64
          %s2912 = scalar_lea.vmem [#allocation31], %s2911
          %2913 = dma.done %s2909, 1024
        $region196: #{tpu_custom_call.1} parent=191 // pred_fallthru
          _
      $region192: #{tpu_custom_call.1} parent=5 // pred_fallthru
        _
    $region6: #{tpu_custom_call.1} parent=1 // loop_footer
      %s48 = sadd.s32 1, %s44
    $region7: #{tpu_custom_call.1} parent=1 // loop_footer_branch
      %43 = sbr.rel target = $region3
    $region8: #{tpu_custom_call.1} parent=1 // loop_exit
      _
    %2914 = vsyncpa [#allocation3], 1
    %s2915 = scalar_lea.sflag [#allocation3], 1
    %2916 = vsyncpa %s2915, 1
    %2917 = vsyncpa [#allocation6], 1
    %2918 = vsyncpa [#allocation9], 1
    %2919 = vsyncpa [#allocation12], 1
    %2920 = vsyncpa [#allocation15], 1
    %2921 = vsyncpa [#allocation18], 1
    %2922 = vsyncpa [#allocation21], 1
    %2923 = vsyncpa [#allocation24], 1
    %2924 = vsyncpa [#allocation27], 1
    %2925 = vsyncpa [#allocation30], 1
    %2926 = vsyncpa [#allocation4], 1
    %s2927 = scalar_lea.sflag [#allocation4], 1
    %2928 = vsyncpa %s2927, 1

</llo_original>
